<compile_context>
chip_gen: v6e
topology: v6e:2x2x1
jax: 0.10.0
libtpu: 0.0.40
codegen_flags: <defaults>
</compile_context>

<pallas_src>
import functools

import jax
import jax.numpy as jnp
from jax.experimental import pallas as pl
from jax.experimental.pallas import tpu as pltpu

_NEG = -1e30          # mask value folded into the dense edge-logit tensor (off-graph entries)
_LEAKY_SLOPE = 0.2
_LANE = 128


# ----------------------------------- Pallas kernel ----------------------------------------

def _gat_layer_kernel(a_dst_ref, a_src_ref, xw_ref, el_ref, bias_ref, out_ref,
                      m_sc, l_sc, acc_sc, *, heads, out_ch, concat, apply_elu):
    """One (dst tile, src tile) step of one GATConv layer (flash-style online softmax).

    a_dst_ref: [T_dst, H]  f32   per-head alpha_dst for this dst tile
    a_src_ref: [H, T_src]  f32   per-head alpha_src for this src tile
    xw_ref:    [T_src, H*C] bf16 transformed source features (x @ W)
    el_ref:    [H, T_dst, T_src] bf16  edge attention contribution, _NEG off-graph
    bias_ref:  [1, out_dim] f32
    out_ref:   [T_dst, out_dim] f32    written only at the last src block
    m_sc/l_sc: [H, T_dst, 1] f32       running max / running sum
    acc_sc:    [H, T_dst, C] f32       running weighted aggregation
    """
    f32 = jnp.float32
    bf16 = jnp.bfloat16
    j = pl.program_id(1)

    @pl.when(j == 0)
    def _():
        m_sc[...] = jnp.full_like(m_sc, -jnp.inf)
        l_sc[...] = jnp.zeros_like(l_sc)
        acc_sc[...] = jnp.zeros_like(acc_sc)

    a_dst = a_dst_ref[...]                                   # [T_dst, H]
    xw_src = xw_ref[...]                                     # [T_src, H*C] bf16

    for h in range(heads):                                   # heads tiny & static -> unrolled
        # bf16 el promotes to f32 inside the add (no separate cast pass over the big tensor).
        logits = (a_dst[:, h:h + 1] + a_src_ref[h:h + 1, :]) + el_ref[h]   # [T_dst, T_src]
        logits = jnp.maximum(logits, _LEAKY_SLOPE * logits)                # leaky_relu(0.2)

        m_prev = m_sc[h]                                                   # [T_dst, 1]
        m_new = jnp.maximum(m_prev, jnp.max(logits, axis=-1, keepdims=True))
        alpha = jnp.exp(m_prev - m_new)
        p = jnp.exp(logits - m_new)            # off-graph entries underflow to exactly 0
        l_sc[h] = alpha * l_sc[h] + jnp.sum(p, axis=-1, keepdims=True)
        acc_sc[h] = alpha * acc_sc[h] + jnp.dot(
            p.astype(bf16), xw_src[:, h * out_ch:(h + 1) * out_ch],
            preferred_element_type=f32)                                    # [T_dst, C]
        m_sc[h] = m_new

    @pl.when(j == pl.num_programs(1) - 1)
    def _():
        outs = []
        for h in range(heads):
            # normalize AFTER aggregation: a tiny [T, C] multiply instead of a [T, N] one.
            inv = pl.reciprocal(jnp.maximum(l_sc[h], 1e-20), approx=True)  # EUP reciprocal
            outs.append(acc_sc[h] * inv)
        if concat:
            res = jnp.concatenate(outs, axis=-1)                           # [T_dst, H*C]
        else:
            res = outs[0]
            for o in outs[1:]:
                res = res + o
            if heads > 1:
                res = res * (1.0 / heads)
        res = res + bias_ref[...]
        if apply_elu:
            res = jnp.where(res > 0, res, jnp.exp(res) - 1.0)              # fused ELU epilogue
        out_ref[...] = res.astype(out_ref.dtype)                           # single store per tile


# ------------------------------ VMEM budget / tile selection ------------------------------

def _vmem_budget_bytes():
    cap = None
    try:
        cap = int(pltpu.get_tpu_info().vmem_capacity_bytes)
    except Exception:
        cap = None
    if not cap or cap <= 0:
        cap = 64 * 1024 * 1024            # conservative (v7x per-TC) fallback
    return max(cap - 16 * 1024 * 1024, 32 * 1024 * 1024)


def _estimate_vmem_bytes(t_dst, t_src, heads, hc, out_dim, out_ch):
    # Double-buffered pipelined blocks (lane-padded to 128 where the last dim is narrower).
    el = heads * t_dst * t_src * 2
    xw = t_src * max(hc, _LANE) * 2
    a_src = max(heads, 8) * t_src * 4
    a_dst = t_dst * _LANE * 4
    out = t_dst * max(out_dim, _LANE) * 4
    dbuf = 2 * (el + xw + a_src + a_dst + out)
    # Resident scratch (m, l, acc; lane-padded), not double-buffered.
    scratch = heads * t_dst * (2 * _LANE + max(out_ch, _LANE)) * 4
    # In-flight f32 intermediates of the softmax chain (logits / p), with slack.
    work = 4 * t_dst * t_src * 4
    return dbuf + scratch + work


def _choose_tiles(n_pad, heads, hc, out_dim, out_ch, budget):
    dst_cands = [t for t in (1024, 512, 256, 128, 64, 32, 16) if t <= n_pad and n_pad % t == 0]
    src_cands = [t for t in (4096, 2048, 1024, 512, 256, 128) if t <= n_pad and n_pad % t == 0]
    if not dst_cands:
        dst_cands = [n_pad]
    if not src_cands:
        src_cands = [n_pad]
    best = None
    for td in dst_cands:
        for ts in src_cands:
            if _estimate_vmem_bytes(td, ts, heads, hc, out_dim, out_ch) > budget:
                continue
            key = (td * ts, ts)
            if best is None or key > best[0]:
                best = (key, td, ts)
    if best is None:
        return dst_cands[-1], src_cands[-1]
    return best[1], best[2]


# ----------------------------------- layer wrapper -----------------------------------------

def gat_layer(a_dst, a_src_t, xw, edge_logit, bias, *, concat, apply_elu):
    n_pad, heads = a_dst.shape
    hc = xw.shape[1]
    out_ch = hc // heads
    out_dim = hc if concat else out_ch

    budget = _vmem_budget_bytes()
    t_dst, t_src = _choose_tiles(n_pad, heads, hc, out_dim, out_ch, budget)
    grid = (n_pad // t_dst, n_pad // t_src)

    kern = functools.partial(_gat_layer_kernel, heads=heads, out_ch=out_ch,
                             concat=concat, apply_elu=apply_elu)
    return pl.pallas_call(
        kern,
        out_shape=jax.ShapeDtypeStruct((n_pad, out_dim), jnp.float32),
        grid=grid,
        in_specs=[
            pl.BlockSpec((t_dst, heads), lambda i, j: (i, 0)),            # alpha_dst
            pl.BlockSpec((heads, t_src), lambda i, j: (0, j)),            # alpha_src (transposed)
            pl.BlockSpec((t_src, hc), lambda i, j: (j, 0)),               # x @ W (bf16)
            pl.BlockSpec((heads, t_dst, t_src), lambda i, j: (0, i, j)),  # edge logits (bf16)
            pl.BlockSpec((1, out_dim), lambda i, j: (0, 0)),              # bias
        ],
        out_specs=pl.BlockSpec((t_dst, out_dim), lambda i, j: (i, 0)),
        scratch_shapes=[
            pltpu.VMEM((heads, t_dst, 1), jnp.float32),       # running max
            pltpu.VMEM((heads, t_dst, 1), jnp.float32),       # running sum
            pltpu.VMEM((heads, t_dst, out_ch), jnp.float32),  # running accumulator
        ],
        compiler_params=pltpu.CompilerParams(
            dimension_semantics=("parallel", "arbitrary"),    # megacore over dst, reduce over src
            vmem_limit_bytes=int(budget),
        ),
    )(a_dst, a_src_t, xw, edge_logit, bias.reshape(1, out_dim))


# ----------------------- JAX glue: sparse graph -> dense structures ------------------------

def _round_up(x, m):
    return ((x + m - 1) // m) * m


def build_dense_graphs(edge_index, edge_attr, num_nodes, n_pad, layer_edge_params):
    """Densify the graph ONCE for all layers (PyG add_self_loops=True, fill_value='mean').

    Returns one bf16 edge_logit[H, N_pad, N_pad] per layer with _NEG at off-graph entries
    (padding rows/cols included), so no separate adjacency mask is shipped to the kernel.
    """
    src, dst = edge_index[0], edge_index[1]
    e_dim = edge_attr.shape[1]
    sums = jnp.zeros((num_nodes, e_dim), edge_attr.dtype).at[dst].add(edge_attr)
    cnts = jnp.zeros((num_nodes,), edge_attr.dtype).at[dst].add(1.0)
    loop_attr = sums / jnp.maximum(cnts, 1.0)[:, None]

    loop_idx = jnp.arange(num_nodes)
    src_all = jnp.concatenate([src, loop_idx])
    dst_all = jnp.concatenate([dst, loop_idx])
    attr_all = jnp.concatenate([edge_attr, loop_attr], axis=0)       # [E+N, edge_dim]

    outs = []
    for w_edge, att_edge in layer_edge_params:
        heads, c = att_edge.shape
        e = (attr_all @ w_edge).reshape(-1, heads, c)                # lin_edge (tiny)
        alpha = jnp.sum(e * att_edge[None], axis=-1)                 # [E+N, H]
        el = jnp.full((heads, n_pad, n_pad), _NEG, jnp.bfloat16)     # built directly in bf16
        el = el.at[:, dst_all, src_all].set(alpha.T.astype(jnp.bfloat16))
        outs.append(el)
    return outs


def _layer_projections(x_pad, w, att_src, att_dst):
    """Hoisted per-layer node math: x@W (bf16) + per-head attention coefficients."""
    heads, c = att_src.shape
    xw = x_pad @ w                                           # [N_pad, H*C] f32
    xw3 = xw.reshape(-1, heads, c)
    a_src_t = jnp.einsum('nhc,hc->hn', xw3, att_src)         # [H, N_pad]
    a_dst = jnp.einsum('nhc,hc->nh', xw3, att_dst)           # [N_pad, H]
    return xw.astype(jnp.bfloat16), a_src_t, a_dst


# ----------------------------------- model -------------------------------------------------

def init_params(key, input_dim, hidden_dim, output_dim, heads=4, edge_dim=2):
    ks = jax.random.split(key, 12)
    s = 0.1

    def rnd(k, shape):
        return s * jax.random.normal(k, shape, jnp.float32)

    gat1 = dict(
        w=rnd(ks[0], (input_dim, heads * hidden_dim)),
        att_src=rnd(ks[1], (heads, hidden_dim)),
        att_dst=rnd(ks[2], (heads, hidden_dim)),
        att_edge=rnd(ks[3], (heads, hidden_dim)),
        w_edge=rnd(ks[4], (edge_dim, heads * hidden_dim)),
        bias=rnd(ks[5], (heads * hidden_dim,)),
    )
    gat2 = dict(
        w=rnd(ks[6], (heads * hidden_dim, output_dim)),
        att_src=rnd(ks[7], (1, output_dim)),
        att_dst=rnd(ks[8], (1, output_dim)),
        att_edge=rnd(ks[9], (1, output_dim)),
        w_edge=rnd(ks[10], (edge_dim, output_dim)),
        bias=rnd(ks[11], (output_dim,)),
    )
    return dict(gat1=gat1, gat2=gat2)


def gat_encoder_forward(params, x, edge_index, edge_attr):
    # TODO(synk): F.dropout / attention dropout are identity here (eval mode, training=False).
    p1, p2 = params["gat1"], params["gat2"]
    n = x.shape[0]
    n_pad = _round_up(max(n, _LANE), _LANE)

    el1, el2 = build_dense_graphs(
        edge_index, edge_attr, n, n_pad,
        [(p1["w_edge"], p1["att_edge"]), (p2["w_edge"], p2["att_edge"])])

    x_pad = jnp.zeros((n_pad, x.shape[1]), jnp.float32).at[:n].set(x)

    xw1, asrc1, adst1 = _layer_projections(x_pad, p1["w"], p1["att_src"], p1["att_dst"])
    h = gat_layer(adst1, asrc1, xw1, el1, p1["bias"], concat=True, apply_elu=True)

    valid = (jnp.arange(n_pad) < n)[:, None]
    h = jnp.where(valid, h, 0.0)     # padded rows carry bounded garbage; zero before layer 2

    xw2, asrc2, adst2 = _layer_projections(h, p2["w"], p2["att_src"], p2["att_dst"])
    out = gat_layer(adst2, asrc2, xw2, el2, p2["bias"], concat=False, apply_elu=False)
    return out[:n]


if __name__ == "__main__":
    key = jax.random.PRNGKey(0)
    kx, ke, kp = jax.random.split(key, 3)

    N, INPUT_DIM, HIDDEN_DIM, OUTPUT_DIM = 32, 8, 8, 16

    x = jax.random.normal(kx, (N, INPUT_DIM), jnp.float32)

    # Deterministic simple digraph: node i receives edges from (i+1)%N, (i+3)%N, (i+5)%N
    # (no self loops, no duplicate edges).
    dst = jnp.repeat(jnp.arange(N), 3)
    offs = jnp.tile(jnp.array([1, 3, 5]), N)
    src = (dst + offs) % N
    edge_index = jnp.stack([src, dst], axis=0)           # [2, E], row0 = source, row1 = dest
    edge_attr = jax.random.normal(ke, (src.shape[0], 2), jnp.float32)

    params = init_params(kp, INPUT_DIM, HIDDEN_DIM, OUTPUT_DIM)

    fwd = jax.jit(gat_encoder_forward)
    out = fwd(params, x, edge_index, edge_attr)
    out = jax.block_until_ready(out)

    assert out.shape == (N, OUTPUT_DIM), out.shape
    assert bool(jnp.all(jnp.isfinite(out)))
    print("KERNEL_OK")
</pallas_src>

<mosaic_0001>
module attributes {stable_mosaic.version = 11 : i64} {
  func.func private @main(%arg0: i32) attributes {dimension_semantics = [#tpu.dimension_semantics<core_parallel>], iteration_bounds = array<i64: 2>, tpu.core_type = #tpu.core_type<sc_scalar_subcore>, window_params = []} {
    return
  }
}

module attributes {stable_mosaic.version = 11 : i64} {
  func.func private @main(%arg0: i32) attributes {dimension_semantics = [#tpu.dimension_semantics<core_parallel>], iteration_bounds = array<i64: 2>, tpu.core_type = #tpu.core_type<sc_scalar_subcore>, window_params = []} {
    return
  }
}

module attributes {stable_mosaic.version = 11 : i64} {
  func.func @_gat_layer_kernel(%arg0: i32, %arg1: i32, %arg2: memref<128x4xf32, #tpu.memory_space<vmem>>, %arg3: memref<4x128xf32, #tpu.memory_space<vmem>>, %arg4: memref<128x32xbf16, #tpu.memory_space<vmem>>, %arg5: memref<4x128x128xbf16, #tpu.memory_space<vmem>>, %arg6: memref<1x32xf32, #tpu.memory_space<vmem>>, %arg7: memref<128x32xf32, #tpu.memory_space<vmem>>, %arg8: memref<4x128x1xf32, #tpu.memory_space<vmem>>, %arg9: memref<4x128x1xf32, #tpu.memory_space<vmem>>, %arg10: memref<4x128x8xf32, #tpu.memory_space<vmem>>) attributes {dimension_semantics = [#tpu.dimension_semantics<parallel>, #tpu.dimension_semantics<arbitrary>], iteration_bounds = array<i64: 1, 1>, scalar_prefetch = 0 : i64, scratch_operands = 3 : i64, tpu.core_type = #tpu.core_type<tc>, window_params = [{transform_indices = @transform_0, window_bounds = array<i64: 128, 4>}, {transform_indices = @transform_1, window_bounds = array<i64: 4, 128>}, {transform_indices = @transform_2, window_bounds = array<i64: 128, 32>}, {transform_indices = @transform_3, window_bounds = array<i64: 4, 128, 128>}, {pipeline_mode = #tpu.pipeline_mode<synchronous>, transform_indices = @transform_4, window_bounds = array<i64: 1, 32>}, {transform_indices = @transform_5, window_bounds = array<i64: 128, 32>}]} {
    %c0_i32 = arith.constant 0 : i32
    %0 = arith.cmpi eq, %arg1, %c0_i32 : i32
    %1 = arith.extui %0 : i1 to i32
    %c0_i32_0 = arith.constant 0 : i32
    %2 = arith.cmpi ne, %1, %c0_i32_0 : i32
    scf.if %2 {
      %cst_110 = arith.constant 0xFF800000 : f32
      %188 = vector.broadcast %cst_110 : f32 to vector<4x128x1xf32>
      %c0_111 = arith.constant 0 : index
      %c0_112 = arith.constant 0 : index
      %c0_113 = arith.constant 0 : index
      %189 = vector.load %arg8[%c0_111, %c0_112, %c0_113] : memref<4x128x1xf32, #tpu.memory_space<vmem>>, vector<4x128x1xf32>
      tpu.vector_store %arg8[%c0_111, %c0_112, %c0_113], %188 {strides = array<i32>} : memref<4x128x1xf32, #tpu.memory_space<vmem>>, vector<4x128x1xf32>,
      %cst_114 = arith.constant 0.000000e+00 : f32
      %190 = vector.broadcast %cst_114 : f32 to vector<4x128x1xf32>
      %c0_115 = arith.constant 0 : index
      %c0_116 = arith.constant 0 : index
      %c0_117 = arith.constant 0 : index
      %191 = vector.load %arg9[%c0_115, %c0_116, %c0_117] : memref<4x128x1xf32, #tpu.memory_space<vmem>>, vector<4x128x1xf32>
      tpu.vector_store %arg9[%c0_115, %c0_116, %c0_117], %190 {strides = array<i32>} : memref<4x128x1xf32, #tpu.memory_space<vmem>>, vector<4x128x1xf32>,
      %cst_118 = arith.constant 0.000000e+00 : f32
      %192 = vector.broadcast %cst_118 : f32 to vector<4x128x8xf32>
      %c0_119 = arith.constant 0 : index
      %c0_120 = arith.constant 0 : index
      %c0_121 = arith.constant 0 : index
      %193 = vector.load %arg10[%c0_119, %c0_120, %c0_121] : memref<4x128x8xf32, #tpu.memory_space<vmem>>, vector<4x128x8xf32>
      tpu.vector_store %arg10[%c0_119, %c0_120, %c0_121], %192 {strides = array<i32>} : memref<4x128x8xf32, #tpu.memory_space<vmem>>, vector<4x128x8xf32>,
    } else {
    }
    %c0 = arith.constant 0 : index
    %c0_1 = arith.constant 0 : index
    %3 = vector.load %arg2[%c0, %c0_1] : memref<128x4xf32, #tpu.memory_space<vmem>>, vector<128x4xf32>
    %c0_2 = arith.constant 0 : index
    %c0_3 = arith.constant 0 : index
    %4 = vector.load %arg4[%c0_2, %c0_3] : memref<128x32xbf16, #tpu.memory_space<vmem>>, vector<128x32xbf16>
    %5 = vector.extract_strided_slice %3 {offsets = [0, 0], sizes = [128, 1], strides = [1, 1]} : vector<128x4xf32> to vector<128x1xf32>
    %c0_4 = arith.constant 0 : index
    %c0_5 = arith.constant 0 : index
    %6 = vector.load %arg3[%c0_4, %c0_5] : memref<4x128xf32, #tpu.memory_space<vmem>>, vector<1x128xf32>
    %7 = vector.broadcast %5 : vector<128x1xf32> to vector<128x128xf32>
    %8 = vector.broadcast %6 : vector<1x128xf32> to vector<128x128xf32>
    %9 = arith.addf %7, %8 : vector<128x128xf32>
    %c0_6 = arith.constant 0 : index
    %c0_7 = arith.constant 0 : index
    %c0_8 = arith.constant 0 : index
    %10 = vector.load %arg5[%c0_6, %c0_7, %c0_8] : memref<4x128x128xbf16, #tpu.memory_space<vmem>>, vector<1x128x128xbf16>
    %11 = vector.shape_cast %10 : vector<1x128x128xbf16> to vector<128x128xbf16>
    %12 = arith.extf %11 : vector<128x128xbf16> to vector<128x128xf32>
    %13 = arith.addf %9, %12 : vector<128x128xf32>
    %cst = arith.constant 2.000000e-01 : f32
    %14 = vector.broadcast %cst : f32 to vector<128x128xf32>
    %15 = arith.mulf %14, %13 : vector<128x128xf32>
    %16 = arith.maximumf %13, %15 : vector<128x128xf32>
    %c0_9 = arith.constant 0 : index
    %c0_10 = arith.constant 0 : index
    %c0_11 = arith.constant 0 : index
    %17 = vector.load %arg8[%c0_9, %c0_10, %c0_11] : memref<4x128x1xf32, #tpu.memory_space<vmem>>, vector<1x128x1xf32>
    %18 = vector.shape_cast %17 : vector<1x128x1xf32> to vector<128x1xf32>
    %cst_12 = arith.constant dense<0xFF800000> : vector<128xf32>
    %19 = vector.multi_reduction <maximumf>, %16, %cst_12 [1] : vector<128x128xf32> to vector<128xf32>
    %20 = vector.shape_cast %19 : vector<128xf32> to vector<128x1xf32>
    %21 = arith.maximumf %18, %20 : vector<128x1xf32>
    %22 = arith.subf %18, %21 : vector<128x1xf32>
    %23 = math.exp %22 : vector<128x1xf32>
    %24 = vector.broadcast %21 : vector<128x1xf32> to vector<128x128xf32>
    %25 = arith.subf %16, %24 : vector<128x128xf32>
    %26 = math.exp %25 : vector<128x128xf32>
    %c0_13 = arith.constant 0 : index
    %c0_14 = arith.constant 0 : index
    %c0_15 = arith.constant 0 : index
    %27 = vector.load %arg9[%c0_13, %c0_14, %c0_15] : memref<4x128x1xf32, #tpu.memory_space<vmem>>, vector<1x128x1xf32>
    %28 = vector.shape_cast %27 : vector<1x128x1xf32> to vector<128x1xf32>
    %29 = arith.mulf %23, %28 : vector<128x1xf32>
    %cst_16 = arith.constant dense<0.000000e+00> : vector<128xf32>
    %30 = vector.multi_reduction <add>, %26, %cst_16 [1] : vector<128x128xf32> to vector<128xf32>
    %31 = vector.shape_cast %30 : vector<128xf32> to vector<128x1xf32>
    %32 = arith.addf %29, %31 : vector<128x1xf32>
    %c0_17 = arith.constant 0 : index
    %c0_18 = arith.constant 0 : index
    %c0_19 = arith.constant 0 : index
    %33 = vector.load %arg9[%c0_17, %c0_18, %c0_19] : memref<4x128x1xf32, #tpu.memory_space<vmem>>, vector<1x128x1xf32>
    %34 = vector.shape_cast %33 : vector<1x128x1xf32> to vector<128x1xf32>
    %35 = vector.shape_cast %32 : vector<128x1xf32> to vector<1x128x1xf32>
    tpu.vector_store %arg9[%c0_17, %c0_18, %c0_19], %35 {strides = array<i32>} : memref<4x128x1xf32, #tpu.memory_space<vmem>>, vector<1x128x1xf32>,
    %c0_20 = arith.constant 0 : index
    %c0_21 = arith.constant 0 : index
    %c0_22 = arith.constant 0 : index
    %36 = vector.load %arg10[%c0_20, %c0_21, %c0_22] : memref<4x128x8xf32, #tpu.memory_space<vmem>>, vector<1x128x8xf32>
    %37 = vector.shape_cast %36 : vector<1x128x8xf32> to vector<128x8xf32>
    %38 = vector.broadcast %23 : vector<128x1xf32> to vector<128x8xf32>
    %39 = arith.mulf %38, %37 : vector<128x8xf32>
    %40 = arith.truncf %26 : vector<128x128xf32> to vector<128x128xbf16>
    %41 = vector.extract_strided_slice %4 {offsets = [0, 0], sizes = [128, 8], strides = [1, 1]} : vector<128x32xbf16> to vector<128x8xbf16>
    %cst_23 = arith.constant dense<0.000000e+00> : vector<128x8xf32>
    %42 = tpu.matmul %40, %41, %cst_23 {dimension_numbers = #tpu.dot_dimension_numbers<[1], [0], [0], [1], [0, 0, 1, 1], [], []>} : vector<128x128xbf16>, vector<128x8xbf16>, vector<128x8xf32> -> vector<128x8xf32>
    %43 = arith.addf %39, %42 : vector<128x8xf32>
    %c0_24 = arith.constant 0 : index
    %c0_25 = arith.constant 0 : index
    %c0_26 = arith.constant 0 : index
    %44 = vector.load %arg10[%c0_24, %c0_25, %c0_26] : memref<4x128x8xf32, #tpu.memory_space<vmem>>, vector<1x128x8xf32>
    %45 = vector.shape_cast %44 : vector<1x128x8xf32> to vector<128x8xf32>
    %46 = vector.shape_cast %43 : vector<128x8xf32> to vector<1x128x8xf32>
    tpu.vector_store %arg10[%c0_24, %c0_25, %c0_26], %46 {strides = array<i32>} : memref<4x128x8xf32, #tpu.memory_space<vmem>>, vector<1x128x8xf32>,
    %c0_27 = arith.constant 0 : index
    %c0_28 = arith.constant 0 : index
    %c0_29 = arith.constant 0 : index
    %47 = vector.load %arg8[%c0_27, %c0_28, %c0_29] : memref<4x128x1xf32, #tpu.memory_space<vmem>>, vector<1x128x1xf32>
    %48 = vector.shape_cast %47 : vector<1x128x1xf32> to vector<128x1xf32>
    %49 = vector.shape_cast %21 : vector<128x1xf32> to vector<1x128x1xf32>
    tpu.vector_store %arg8[%c0_27, %c0_28, %c0_29], %49 {strides = array<i32>} : memref<4x128x1xf32, #tpu.memory_space<vmem>>, vector<1x128x1xf32>,
    %50 = vector.extract_strided_slice %3 {offsets = [0, 1], sizes = [128, 1], strides = [1, 1]} : vector<128x4xf32> to vector<128x1xf32>
    %c1 = arith.constant 1 : index
    %c0_30 = arith.constant 0 : index
    %51 = vector.load %arg3[%c1, %c0_30] : memref<4x128xf32, #tpu.memory_space<vmem>>, vector<1x128xf32>
    %52 = vector.broadcast %50 : vector<128x1xf32> to vector<128x128xf32>
    %53 = vector.broadcast %51 : vector<1x128xf32> to vector<128x128xf32>
    %54 = arith.addf %52, %53 : vector<128x128xf32>
    %c1_31 = arith.constant 1 : index
    %c0_32 = arith.constant 0 : index
    %c0_33 = arith.constant 0 : index
    %55 = vector.load %arg5[%c1_31, %c0_32, %c0_33] : memref<4x128x128xbf16, #tpu.memory_space<vmem>>, vector<1x128x128xbf16>
    %56 = vector.shape_cast %55 : vector<1x128x128xbf16> to vector<128x128xbf16>
    %57 = arith.extf %56 : vector<128x128xbf16> to vector<128x128xf32>
    %58 = arith.addf %54, %57 : vector<128x128xf32>
    %cst_34 = arith.constant 2.000000e-01 : f32
    %59 = vector.broadcast %cst_34 : f32 to vector<128x128xf32>
    %60 = arith.mulf %59, %58 : vector<128x128xf32>
    %61 = arith.maximumf %58, %60 : vector<128x128xf32>
    %c1_35 = arith.constant 1 : index
    %c0_36 = arith.constant 0 : index
    %c0_37 = arith.constant 0 : index
    %62 = vector.load %arg8[%c1_35, %c0_36, %c0_37] : memref<4x128x1xf32, #tpu.memory_space<vmem>>, vector<1x128x1xf32>
    %63 = vector.shape_cast %62 : vector<1x128x1xf32> to vector<128x1xf32>
    %cst_38 = arith.constant dense<0xFF800000> : vector<128xf32>
    %64 = vector.multi_reduction <maximumf>, %61, %cst_38 [1] : vector<128x128xf32> to vector<128xf32>
    %65 = vector.shape_cast %64 : vector<128xf32> to vector<128x1xf32>
    %66 = arith.maximumf %63, %65 : vector<128x1xf32>
    %67 = arith.subf %63, %66 : vector<128x1xf32>
    %68 = math.exp %67 : vector<128x1xf32>
    %69 = vector.broadcast %66 : vector<128x1xf32> to vector<128x128xf32>
    %70 = arith.subf %61, %69 : vector<128x128xf32>
    %71 = math.exp %70 : vector<128x128xf32>
    %c1_39 = arith.constant 1 : index
    %c0_40 = arith.constant 0 : index
    %c0_41 = arith.constant 0 : index
    %72 = vector.load %arg9[%c1_39, %c0_40, %c0_41] : memref<4x128x1xf32, #tpu.memory_space<vmem>>, vector<1x128x1xf32>
    %73 = vector.shape_cast %72 : vector<1x128x1xf32> to vector<128x1xf32>
    %74 = arith.mulf %68, %73 : vector<128x1xf32>
    %cst_42 = arith.constant dense<0.000000e+00> : vector<128xf32>
    %75 = vector.multi_reduction <add>, %71, %cst_42 [1] : vector<128x128xf32> to vector<128xf32>
    %76 = vector.shape_cast %75 : vector<128xf32> to vector<128x1xf32>
    %77 = arith.addf %74, %76 : vector<128x1xf32>
    %c1_43 = arith.constant 1 : index
    %c0_44 = arith.constant 0 : index
    %c0_45 = arith.constant 0 : index
    %78 = vector.load %arg9[%c1_43, %c0_44, %c0_45] : memref<4x128x1xf32, #tpu.memory_space<vmem>>, vector<1x128x1xf32>
    %79 = vector.shape_cast %78 : vector<1x128x1xf32> to vector<128x1xf32>
    %80 = vector.shape_cast %77 : vector<128x1xf32> to vector<1x128x1xf32>
    tpu.vector_store %arg9[%c1_43, %c0_44, %c0_45], %80 {strides = array<i32>} : memref<4x128x1xf32, #tpu.memory_space<vmem>>, vector<1x128x1xf32>,
    %c1_46 = arith.constant 1 : index
    %c0_47 = arith.constant 0 : index
    %c0_48 = arith.constant 0 : index
    %81 = vector.load %arg10[%c1_46, %c0_47, %c0_48] : memref<4x128x8xf32, #tpu.memory_space<vmem>>, vector<1x128x8xf32>
    %82 = vector.shape_cast %81 : vector<1x128x8xf32> to vector<128x8xf32>
    %83 = vector.broadcast %68 : vector<128x1xf32> to vector<128x8xf32>
    %84 = arith.mulf %83, %82 : vector<128x8xf32>
    %85 = arith.truncf %71 : vector<128x128xf32> to vector<128x128xbf16>
    %86 = vector.extract_strided_slice %4 {offsets = [0, 8], sizes = [128, 8], strides = [1, 1]} : vector<128x32xbf16> to vector<128x8xbf16>
    %cst_49 = arith.constant dense<0.000000e+00> : vector<128x8xf32>
    %87 = tpu.matmul %85, %86, %cst_49 {dimension_numbers = #tpu.dot_dimension_numbers<[1], [0], [0], [1], [0, 0, 1, 1], [], []>} : vector<128x128xbf16>, vector<128x8xbf16>, vector<128x8xf32> -> vector<128x8xf32>
    %88 = arith.addf %84, %87 : vector<128x8xf32>
    %c1_50 = arith.constant 1 : index
    %c0_51 = arith.constant 0 : index
    %c0_52 = arith.constant 0 : index
    %89 = vector.load %arg10[%c1_50, %c0_51, %c0_52] : memref<4x128x8xf32, #tpu.memory_space<vmem>>, vector<1x128x8xf32>
    %90 = vector.shape_cast %89 : vector<1x128x8xf32> to vector<128x8xf32>
    %91 = vector.shape_cast %88 : vector<128x8xf32> to vector<1x128x8xf32>
    tpu.vector_store %arg10[%c1_50, %c0_51, %c0_52], %91 {strides = array<i32>} : memref<4x128x8xf32, #tpu.memory_space<vmem>>, vector<1x128x8xf32>,
    %c1_53 = arith.constant 1 : index
    %c0_54 = arith.constant 0 : index
    %c0_55 = arith.constant 0 : index
    %92 = vector.load %arg8[%c1_53, %c0_54, %c0_55] : memref<4x128x1xf32, #tpu.memory_space<vmem>>, vector<1x128x1xf32>
    %93 = vector.shape_cast %92 : vector<1x128x1xf32> to vector<128x1xf32>
    %94 = vector.shape_cast %66 : vector<128x1xf32> to vector<1x128x1xf32>
    tpu.vector_store %arg8[%c1_53, %c0_54, %c0_55], %94 {strides = array<i32>} : memref<4x128x1xf32, #tpu.memory_space<vmem>>, vector<1x128x1xf32>,
    %95 = vector.extract_strided_slice %3 {offsets = [0, 2], sizes = [128, 1], strides = [1, 1]} : vector<128x4xf32> to vector<128x1xf32>
    %c2 = arith.constant 2 : index
    %c0_56 = arith.constant 0 : index
    %96 = vector.load %arg3[%c2, %c0_56] : memref<4x128xf32, #tpu.memory_space<vmem>>, vector<1x128xf32>
    %97 = vector.broadcast %95 : vector<128x1xf32> to vector<128x128xf32>
    %98 = vector.broadcast %96 : vector<1x128xf32> to vector<128x128xf32>
    %99 = arith.addf %97, %98 : vector<128x128xf32>
    %c2_57 = arith.constant 2 : index
    %c0_58 = arith.constant 0 : index
    %c0_59 = arith.constant 0 : index
    %100 = vector.load %arg5[%c2_57, %c0_58, %c0_59] : memref<4x128x128xbf16, #tpu.memory_space<vmem>>, vector<1x128x128xbf16>
    %101 = vector.shape_cast %100 : vector<1x128x128xbf16> to vector<128x128xbf16>
    %102 = arith.extf %101 : vector<128x128xbf16> to vector<128x128xf32>
    %103 = arith.addf %99, %102 : vector<128x128xf32>
    %cst_60 = arith.constant 2.000000e-01 : f32
    %104 = vector.broadcast %cst_60 : f32 to vector<128x128xf32>
    %105 = arith.mulf %104, %103 : vector<128x128xf32>
    %106 = arith.maximumf %103, %105 : vector<128x128xf32>
    %c2_61 = arith.constant 2 : index
    %c0_62 = arith.constant 0 : index
    %c0_63 = arith.constant 0 : index
    %107 = vector.load %arg8[%c2_61, %c0_62, %c0_63] : memref<4x128x1xf32, #tpu.memory_space<vmem>>, vector<1x128x1xf32>
    %108 = vector.shape_cast %107 : vector<1x128x1xf32> to vector<128x1xf32>
    %cst_64 = arith.constant dense<0xFF800000> : vector<128xf32>
    %109 = vector.multi_reduction <maximumf>, %106, %cst_64 [1] : vector<128x128xf32> to vector<128xf32>
    %110 = vector.shape_cast %109 : vector<128xf32> to vector<128x1xf32>
    %111 = arith.maximumf %108, %110 : vector<128x1xf32>
    %112 = arith.subf %108, %111 : vector<128x1xf32>
    %113 = math.exp %112 : vector<128x1xf32>
    %114 = vector.broadcast %111 : vector<128x1xf32> to vector<128x128xf32>
    %115 = arith.subf %106, %114 : vector<128x128xf32>
    %116 = math.exp %115 : vector<128x128xf32>
    %c2_65 = arith.constant 2 : index
    %c0_66 = arith.constant 0 : index
    %c0_67 = arith.constant 0 : index
    %117 = vector.load %arg9[%c2_65, %c0_66, %c0_67] : memref<4x128x1xf32, #tpu.memory_space<vmem>>, vector<1x128x1xf32>
    %118 = vector.shape_cast %117 : vector<1x128x1xf32> to vector<128x1xf32>
    %119 = arith.mulf %113, %118 : vector<128x1xf32>
    %cst_68 = arith.constant dense<0.000000e+00> : vector<128xf32>
    %120 = vector.multi_reduction <add>, %116, %cst_68 [1] : vector<128x128xf32> to vector<128xf32>
    %121 = vector.shape_cast %120 : vector<128xf32> to vector<128x1xf32>
    %122 = arith.addf %119, %121 : vector<128x1xf32>
    %c2_69 = arith.constant 2 : index
    %c0_70 = arith.constant 0 : index
    %c0_71 = arith.constant 0 : index
    %123 = vector.load %arg9[%c2_69, %c0_70, %c0_71] : memref<4x128x1xf32, #tpu.memory_space<vmem>>, vector<1x128x1xf32>
    %124 = vector.shape_cast %123 : vector<1x128x1xf32> to vector<128x1xf32>
    %125 = vector.shape_cast %122 : vector<128x1xf32> to vector<1x128x1xf32>
    tpu.vector_store %arg9[%c2_69, %c0_70, %c0_71], %125 {strides = array<i32>} : memref<4x128x1xf32, #tpu.memory_space<vmem>>, vector<1x128x1xf32>,
    %c2_72 = arith.constant 2 : index
    %c0_73 = arith.constant 0 : index
    %c0_74 = arith.constant 0 : index
    %126 = vector.load %arg10[%c2_72, %c0_73, %c0_74] : memref<4x128x8xf32, #tpu.memory_space<vmem>>, vector<1x128x8xf32>
    %127 = vector.shape_cast %126 : vector<1x128x8xf32> to vector<128x8xf32>
    %128 = vector.broadcast %113 : vector<128x1xf32> to vector<128x8xf32>
    %129 = arith.mulf %128, %127 : vector<128x8xf32>
    %130 = arith.truncf %116 : vector<128x128xf32> to vector<128x128xbf16>
    %131 = vector.extract_strided_slice %4 {offsets = [0, 16], sizes = [128, 8], strides = [1, 1]} : vector<128x32xbf16> to vector<128x8xbf16>
    %cst_75 = arith.constant dense<0.000000e+00> : vector<128x8xf32>
    %132 = tpu.matmul %130, %131, %cst_75 {dimension_numbers = #tpu.dot_dimension_numbers<[1], [0], [0], [1], [0, 0, 1, 1], [], []>} : vector<128x128xbf16>, vector<128x8xbf16>, vector<128x8xf32> -> vector<128x8xf32>
    %133 = arith.addf %129, %132 : vector<128x8xf32>
    %c2_76 = arith.constant 2 : index
    %c0_77 = arith.constant 0 : index
    %c0_78 = arith.constant 0 : index
    %134 = vector.load %arg10[%c2_76, %c0_77, %c0_78] : memref<4x128x8xf32, #tpu.memory_space<vmem>>, vector<1x128x8xf32>
    %135 = vector.shape_cast %134 : vector<1x128x8xf32> to vector<128x8xf32>
    %136 = vector.shape_cast %133 : vector<128x8xf32> to vector<1x128x8xf32>
    tpu.vector_store %arg10[%c2_76, %c0_77, %c0_78], %136 {strides = array<i32>} : memref<4x128x8xf32, #tpu.memory_space<vmem>>, vector<1x128x8xf32>,
    %c2_79 = arith.constant 2 : index
    %c0_80 = arith.constant 0 : index
    %c0_81 = arith.constant 0 : index
    %137 = vector.load %arg8[%c2_79, %c0_80, %c0_81] : memref<4x128x1xf32, #tpu.memory_space<vmem>>, vector<1x128x1xf32>
    %138 = vector.shape_cast %137 : vector<1x128x1xf32> to vector<128x1xf32>
    %139 = vector.shape_cast %111 : vector<128x1xf32> to vector<1x128x1xf32>
    tpu.vector_store %arg8[%c2_79, %c0_80, %c0_81], %139 {strides = array<i32>} : memref<4x128x1xf32, #tpu.memory_space<vmem>>, vector<1x128x1xf32>,
    %140 = vector.extract_strided_slice %3 {offsets = [0, 3], sizes = [128, 1], strides = [1, 1]} : vector<128x4xf32> to vector<128x1xf32>
    %c3 = arith.constant 3 : index
    %c0_82 = arith.constant 0 : index
    %141 = vector.load %arg3[%c3, %c0_82] : memref<4x128xf32, #tpu.memory_space<vmem>>, vector<1x128xf32>
    %142 = vector.broadcast %140 : vector<128x1xf32> to vector<128x128xf32>
    %143 = vector.broadcast %141 : vector<1x128xf32> to vector<128x128xf32>
    %144 = arith.addf %142, %143 : vector<128x128xf32>
    %c3_83 = arith.constant 3 : index
    %c0_84 = arith.constant 0 : index
    %c0_85 = arith.constant 0 : index
    %145 = vector.load %arg5[%c3_83, %c0_84, %c0_85] : memref<4x128x128xbf16, #tpu.memory_space<vmem>>, vector<1x128x128xbf16>
    %146 = vector.shape_cast %145 : vector<1x128x128xbf16> to vector<128x128xbf16>
    %147 = arith.extf %146 : vector<128x128xbf16> to vector<128x128xf32>
    %148 = arith.addf %144, %147 : vector<128x128xf32>
    %cst_86 = arith.constant 2.000000e-01 : f32
    %149 = vector.broadcast %cst_86 : f32 to vector<128x128xf32>
    %150 = arith.mulf %149, %148 : vector<128x128xf32>
    %151 = arith.maximumf %148, %150 : vector<128x128xf32>
    %c3_87 = arith.constant 3 : index
    %c0_88 = arith.constant 0 : index
    %c0_89 = arith.constant 0 : index
    %152 = vector.load %arg8[%c3_87, %c0_88, %c0_89] : memref<4x128x1xf32, #tpu.memory_space<vmem>>, vector<1x128x1xf32>
    %153 = vector.shape_cast %152 : vector<1x128x1xf32> to vector<128x1xf32>
    %cst_90 = arith.constant dense<0xFF800000> : vector<128xf32>
    %154 = vector.multi_reduction <maximumf>, %151, %cst_90 [1] : vector<128x128xf32> to vector<128xf32>
    %155 = vector.shape_cast %154 : vector<128xf32> to vector<128x1xf32>
    %156 = arith.maximumf %153, %155 : vector<128x1xf32>
    %157 = arith.subf %153, %156 : vector<128x1xf32>
    %158 = math.exp %157 : vector<128x1xf32>
    %159 = vector.broadcast %156 : vector<128x1xf32> to vector<128x128xf32>
    %160 = arith.subf %151, %159 : vector<128x128xf32>
    %161 = math.exp %160 : vector<128x128xf32>
    %c3_91 = arith.constant 3 : index
    %c0_92 = arith.constant 0 : index
    %c0_93 = arith.constant 0 : index
    %162 = vector.load %arg9[%c3_91, %c0_92, %c0_93] : memref<4x128x1xf32, #tpu.memory_space<vmem>>, vector<1x128x1xf32>
    %163 = vector.shape_cast %162 : vector<1x128x1xf32> to vector<128x1xf32>
    %164 = arith.mulf %158, %163 : vector<128x1xf32>
    %cst_94 = arith.constant dense<0.000000e+00> : vector<128xf32>
    %165 = vector.multi_reduction <add>, %161, %cst_94 [1] : vector<128x128xf32> to vector<128xf32>
    %166 = vector.shape_cast %165 : vector<128xf32> to vector<128x1xf32>
    %167 = arith.addf %164, %166 : vector<128x1xf32>
    %c3_95 = arith.constant 3 : index
    %c0_96 = arith.constant 0 : index
    %c0_97 = arith.constant 0 : index
    %168 = vector.load %arg9[%c3_95, %c0_96, %c0_97] : memref<4x128x1xf32, #tpu.memory_space<vmem>>, vector<1x128x1xf32>
    %169 = vector.shape_cast %168 : vector<1x128x1xf32> to vector<128x1xf32>
    %170 = vector.shape_cast %167 : vector<128x1xf32> to vector<1x128x1xf32>
    tpu.vector_store %arg9[%c3_95, %c0_96, %c0_97], %170 {strides = array<i32>} : memref<4x128x1xf32, #tpu.memory_space<vmem>>, vector<1x128x1xf32>,
    %c3_98 = arith.constant 3 : index
    %c0_99 = arith.constant 0 : index
    %c0_100 = arith.constant 0 : index
    %171 = vector.load %arg10[%c3_98, %c0_99, %c0_100] : memref<4x128x8xf32, #tpu.memory_space<vmem>>, vector<1x128x8xf32>
    %172 = vector.shape_cast %171 : vector<1x128x8xf32> to vector<128x8xf32>
    %173 = vector.broadcast %158 : vector<128x1xf32> to vector<128x8xf32>
    %174 = arith.mulf %173, %172 : vector<128x8xf32>
    %175 = arith.truncf %161 : vector<128x128xf32> to vector<128x128xbf16>
    %176 = vector.extract_strided_slice %4 {offsets = [0, 24], sizes = [128, 8], strides = [1, 1]} : vector<128x32xbf16> to vector<128x8xbf16>
    %cst_101 = arith.constant dense<0.000000e+00> : vector<128x8xf32>
    %177 = tpu.matmul %175, %176, %cst_101 {dimension_numbers = #tpu.dot_dimension_numbers<[1], [0], [0], [1], [0, 0, 1, 1], [], []>} : vector<128x128xbf16>, vector<128x8xbf16>, vector<128x8xf32> -> vector<128x8xf32>
    %178 = arith.addf %174, %177 : vector<128x8xf32>
    %c3_102 = arith.constant 3 : index
    %c0_103 = arith.constant 0 : index
    %c0_104 = arith.constant 0 : index
    %179 = vector.load %arg10[%c3_102, %c0_103, %c0_104] : memref<4x128x8xf32, #tpu.memory_space<vmem>>, vector<1x128x8xf32>
    %180 = vector.shape_cast %179 : vector<1x128x8xf32> to vector<128x8xf32>
    %181 = vector.shape_cast %178 : vector<128x8xf32> to vector<1x128x8xf32>
    tpu.vector_store %arg10[%c3_102, %c0_103, %c0_104], %181 {strides = array<i32>} : memref<4x128x8xf32, #tpu.memory_space<vmem>>, vector<1x128x8xf32>,
    %c3_105 = arith.constant 3 : index
    %c0_106 = arith.constant 0 : index
    %c0_107 = arith.constant 0 : index
    %182 = vector.load %arg8[%c3_105, %c0_106, %c0_107] : memref<4x128x1xf32, #tpu.memory_space<vmem>>, vector<1x128x1xf32>
    %183 = vector.shape_cast %182 : vector<1x128x1xf32> to vector<128x1xf32>
    %184 = vector.shape_cast %156 : vector<128x1xf32> to vector<1x128x1xf32>
    tpu.vector_store %arg8[%c3_105, %c0_106, %c0_107], %184 {strides = array<i32>} : memref<4x128x1xf32, #tpu.memory_space<vmem>>, vector<1x128x1xf32>,
    %c0_i32_108 = arith.constant 0 : i32
    %185 = arith.cmpi eq, %arg1, %c0_i32_108 : i32
    %186 = arith.extui %185 : i1 to i32
    %c0_i32_109 = arith.constant 0 : i32
    %187 = arith.cmpi ne, %186, %c0_i32_109 : i32
    scf.if %187 {
      %c0_110 = arith.constant 0 : index
      %c0_111 = arith.constant 0 : index
      %c0_112 = arith.constant 0 : index
      %188 = vector.load %arg9[%c0_110, %c0_111, %c0_112] : memref<4x128x1xf32, #tpu.memory_space<vmem>>, vector<1x128x1xf32>
      %189 = vector.shape_cast %188 : vector<1x128x1xf32> to vector<128x1xf32>
      %cst_113 = arith.constant 9.99999968E-21 : f32
      %190 = vector.broadcast %cst_113 : f32 to vector<128x1xf32>
      %191 = arith.maximumf %189, %190 : vector<128x1xf32>
      %192 = tpu.reciprocal %191 {approx = true} : vector<128x1xf32> -> vector<128x1xf32>
      %c0_114 = arith.constant 0 : index
      %c0_115 = arith.constant 0 : index
      %c0_116 = arith.constant 0 : index
      %193 = vector.load %arg10[%c0_114, %c0_115, %c0_116] : memref<4x128x8xf32, #tpu.memory_space<vmem>>, vector<1x128x8xf32>
      %194 = vector.shape_cast %193 : vector<1x128x8xf32> to vector<128x8xf32>
      %195 = vector.broadcast %192 : vector<128x1xf32> to vector<128x8xf32>
      %196 = arith.mulf %194, %195 : vector<128x8xf32>
      %c1_117 = arith.constant 1 : index
      %c0_118 = arith.constant 0 : index
      %c0_119 = arith.constant 0 : index
      %197 = vector.load %arg9[%c1_117, %c0_118, %c0_119] : memref<4x128x1xf32, #tpu.memory_space<vmem>>, vector<1x128x1xf32>
      %198 = vector.shape_cast %197 : vector<1x128x1xf32> to vector<128x1xf32>
      %cst_120 = arith.constant 9.99999968E-21 : f32
      %199 = vector.broadcast %cst_120 : f32 to vector<128x1xf32>
      %200 = arith.maximumf %198, %199 : vector<128x1xf32>
      %201 = tpu.reciprocal %200 {approx = true} : vector<128x1xf32> -> vector<128x1xf32>
      %c1_121 = arith.constant 1 : index
      %c0_122 = arith.constant 0 : index
      %c0_123 = arith.constant 0 : index
      %202 = vector.load %arg10[%c1_121, %c0_122, %c0_123] : memref<4x128x8xf32, #tpu.memory_space<vmem>>, vector<1x128x8xf32>
      %203 = vector.shape_cast %202 : vector<1x128x8xf32> to vector<128x8xf32>
      %204 = vector.broadcast %201 : vector<128x1xf32> to vector<128x8xf32>
      %205 = arith.mulf %203, %204 : vector<128x8xf32>
      %c2_124 = arith.constant 2 : index
      %c0_125 = arith.constant 0 : index
      %c0_126 = arith.constant 0 : index
      %206 = vector.load %arg9[%c2_124, %c0_125, %c0_126] : memref<4x128x1xf32, #tpu.memory_space<vmem>>, vector<1x128x1xf32>
      %207 = vector.shape_cast %206 : vector<1x128x1xf32> to vector<128x1xf32>
      %cst_127 = arith.constant 9.99999968E-21 : f32
      %208 = vector.broadcast %cst_127 : f32 to vector<128x1xf32>
      %209 = arith.maximumf %207, %208 : vector<128x1xf32>
      %210 = tpu.reciprocal %209 {approx = true} : vector<128x1xf32> -> vector<128x1xf32>
      %c2_128 = arith.constant 2 : index
      %c0_129 = arith.constant 0 : index
      %c0_130 = arith.constant 0 : index
      %211 = vector.load %arg10[%c2_128, %c0_129, %c0_130] : memref<4x128x8xf32, #tpu.memory_space<vmem>>, vector<1x128x8xf32>
      %212 = vector.shape_cast %211 : vector<1x128x8xf32> to vector<128x8xf32>
      %213 = vector.broadcast %210 : vector<128x1xf32> to vector<128x8xf32>
      %214 = arith.mulf %212, %213 : vector<128x8xf32>
      %c3_131 = arith.constant 3 : index
      %c0_132 = arith.constant 0 : index
      %c0_133 = arith.constant 0 : index
      %215 = vector.load %arg9[%c3_131, %c0_132, %c0_133] : memref<4x128x1xf32, #tpu.memory_space<vmem>>, vector<1x128x1xf32>
      %216 = vector.shape_cast %215 : vector<1x128x1xf32> to vector<128x1xf32>
      %cst_134 = arith.constant 9.99999968E-21 : f32
      %217 = vector.broadcast %cst_134 : f32 to vector<128x1xf32>
      %218 = arith.maximumf %216, %217 : vector<128x1xf32>
      %219 = tpu.reciprocal %218 {approx = true} : vector<128x1xf32> -> vector<128x1xf32>
      %c3_135 = arith.constant 3 : index
      %c0_136 = arith.constant 0 : index
      %c0_137 = arith.constant 0 : index
      %220 = vector.load %arg10[%c3_135, %c0_136, %c0_137] : memref<4x128x8xf32, #tpu.memory_space<vmem>>, vector<1x128x8xf32>
      %221 = vector.shape_cast %220 : vector<1x128x8xf32> to vector<128x8xf32>
      %222 = vector.broadcast %219 : vector<128x1xf32> to vector<128x8xf32>
      %223 = arith.mulf %221, %222 : vector<128x8xf32>
      %224 = tpu.concatenate %196, %205, %214, %223 in 1 : vector<128x8xf32>, vector<128x8xf32>, vector<128x8xf32>, vector<128x8xf32> -> vector<128x32xf32>
      %c0_138 = arith.constant 0 : index
      %c0_139 = arith.constant 0 : index
      %225 = vector.load %arg6[%c0_138, %c0_139] : memref<1x32xf32, #tpu.memory_space<vmem>>, vector<1x32xf32>
      %226 = vector.broadcast %225 : vector<1x32xf32> to vector<128x32xf32>
      %227 = arith.addf %224, %226 : vector<128x32xf32>
      %cst_140 = arith.constant 0.000000e+00 : f32
      %228 = vector.broadcast %cst_140 : f32 to vector<128x32xf32>
      %229 = arith.cmpf ogt, %227, %228 : vector<128x32xf32>
      %230 = math.exp %227 : vector<128x32xf32>
      %cst_141 = arith.constant 1.000000e+00 : f32
      %231 = vector.broadcast %cst_141 : f32 to vector<128x32xf32>
      %232 = arith.subf %230, %231 : vector<128x32xf32>
      %233 = arith.select %229, %227, %232 : vector<128x32xi1>, vector<128x32xf32>
      %c0_142 = arith.constant 0 : index
      %c0_143 = arith.constant 0 : index
      %234 = vector.load %arg7[%c0_142, %c0_143] : memref<128x32xf32, #tpu.memory_space<vmem>>, vector<128x32xf32>
      tpu.vector_store %arg7[%c0_142, %c0_143], %233 {strides = array<i32>} : memref<128x32xf32, #tpu.memory_space<vmem>>, vector<128x32xf32>,
    } else {
    }
    return
  }
  func.func @transform_0(%arg0: i32, %arg1: i32) -> (i32, i32) {
    %c0_i32 = arith.constant 0 : i32
    %c0_i32_0 = arith.constant 0 : i32
    return %arg0, %c0_i32 : i32, i32
  }
  func.func @transform_1(%arg0: i32, %arg1: i32) -> (i32, i32) {
    %c0_i32 = arith.constant 0 : i32
    %c0_i32_0 = arith.constant 0 : i32
    return %c0_i32, %arg1 : i32, i32
  }
  func.func @transform_2(%arg0: i32, %arg1: i32) -> (i32, i32) {
    %c0_i32 = arith.constant 0 : i32
    %c0_i32_0 = arith.constant 0 : i32
    return %arg1, %c0_i32 : i32, i32
  }
  func.func @transform_3(%arg0: i32, %arg1: i32) -> (i32, i32, i32) {
    %c0_i32 = arith.constant 0 : i32
    %c0_i32_0 = arith.constant 0 : i32
    return %c0_i32, %arg0, %arg1 : i32, i32, i32
  }
  func.func @transform_4(%arg0: i32, %arg1: i32) -> (i32, i32) {
    %c0_i32 = arith.constant 0 : i32
    %c0_i32_0 = arith.constant 0 : i32
    %c0_i32_1 = arith.constant 0 : i32
    return %c0_i32, %c0_i32_0 : i32, i32
  }
  func.func @transform_5(%arg0: i32, %arg1: i32) -> (i32, i32) {
    %c0_i32 = arith.constant 0 : i32
    %c0_i32_0 = arith.constant 0 : i32
    return %arg0, %c0_i32 : i32, i32
  }
}

module attributes {stable_mosaic.version = 11 : i64} {
  func.func @_gat_layer_kernel(%arg0: i32, %arg1: i32, %arg2: memref<128x1xf32, #tpu.memory_space<vmem>>, %arg3: memref<1x128xf32, #tpu.memory_space<vmem>>, %arg4: memref<128x16xbf16, #tpu.memory_space<vmem>>, %arg5: memref<1x128x128xbf16, #tpu.memory_space<vmem>>, %arg6: memref<1x16xf32, #tpu.memory_space<vmem>>, %arg7: memref<128x16xf32, #tpu.memory_space<vmem>>, %arg8: memref<1x128x1xf32, #tpu.memory_space<vmem>>, %arg9: memref<1x128x1xf32, #tpu.memory_space<vmem>>, %arg10: memref<1x128x16xf32, #tpu.memory_space<vmem>>) attributes {dimension_semantics = [#tpu.dimension_semantics<parallel>, #tpu.dimension_semantics<arbitrary>], iteration_bounds = array<i64: 1, 1>, scalar_prefetch = 0 : i64, scratch_operands = 3 : i64, tpu.core_type = #tpu.core_type<tc>, window_params = [{transform_indices = @transform_0, window_bounds = array<i64: 128, 1>}, {transform_indices = @transform_1, window_bounds = array<i64: 1, 128>}, {transform_indices = @transform_2, window_bounds = array<i64: 128, 16>}, {transform_indices = @transform_3, window_bounds = array<i64: 1, 128, 128>}, {pipeline_mode = #tpu.pipeline_mode<synchronous>, transform_indices = @transform_4, window_bounds = array<i64: 1, 16>}, {transform_indices = @transform_5, window_bounds = array<i64: 128, 16>}]} {
    %c0_i32 = arith.constant 0 : i32
    %0 = arith.cmpi eq, %arg1, %c0_i32 : i32
    %1 = arith.extui %0 : i1 to i32
    %c0_i32_0 = arith.constant 0 : i32
    %2 = arith.cmpi ne, %1, %c0_i32_0 : i32
    scf.if %2 {
      %cst_32 = arith.constant 0xFF800000 : f32
      %51 = vector.broadcast %cst_32 : f32 to vector<1x128x1xf32>
      %c0_33 = arith.constant 0 : index
      %c0_34 = arith.constant 0 : index
      %c0_35 = arith.constant 0 : index
      %52 = vector.load %arg8[%c0_33, %c0_34, %c0_35] : memref<1x128x1xf32, #tpu.memory_space<vmem>>, vector<1x128x1xf32>
      tpu.vector_store %arg8[%c0_33, %c0_34, %c0_35], %51 {strides = array<i32>} : memref<1x128x1xf32, #tpu.memory_space<vmem>>, vector<1x128x1xf32>,
      %cst_36 = arith.constant 0.000000e+00 : f32
      %53 = vector.broadcast %cst_36 : f32 to vector<1x128x1xf32>
      %c0_37 = arith.constant 0 : index
      %c0_38 = arith.constant 0 : index
      %c0_39 = arith.constant 0 : index
      %54 = vector.load %arg9[%c0_37, %c0_38, %c0_39] : memref<1x128x1xf32, #tpu.memory_space<vmem>>, vector<1x128x1xf32>
      tpu.vector_store %arg9[%c0_37, %c0_38, %c0_39], %53 {strides = array<i32>} : memref<1x128x1xf32, #tpu.memory_space<vmem>>, vector<1x128x1xf32>,
      %cst_40 = arith.constant 0.000000e+00 : f32
      %55 = vector.broadcast %cst_40 : f32 to vector<1x128x16xf32>
      %c0_41 = arith.constant 0 : index
      %c0_42 = arith.constant 0 : index
      %c0_43 = arith.constant 0 : index
      %56 = vector.load %arg10[%c0_41, %c0_42, %c0_43] : memref<1x128x16xf32, #tpu.memory_space<vmem>>, vector<1x128x16xf32>
      tpu.vector_store %arg10[%c0_41, %c0_42, %c0_43], %55 {strides = array<i32>} : memref<1x128x16xf32, #tpu.memory_space<vmem>>, vector<1x128x16xf32>,
    } else {
    }
    %c0 = arith.constant 0 : index
    %c0_1 = arith.constant 0 : index
    %3 = vector.load %arg2[%c0, %c0_1] : memref<128x1xf32, #tpu.memory_space<vmem>>, vector<128x1xf32>
    %c0_2 = arith.constant 0 : index
    %c0_3 = arith.constant 0 : index
    %4 = vector.load %arg4[%c0_2, %c0_3] : memref<128x16xbf16, #tpu.memory_space<vmem>>, vector<128x16xbf16>
    %c0_4 = arith.constant 0 : index
    %c0_5 = arith.constant 0 : index
    %5 = vector.load %arg3[%c0_4, %c0_5] : memref<1x128xf32, #tpu.memory_space<vmem>>, vector<1x128xf32>
    %6 = vector.broadcast %3 : vector<128x1xf32> to vector<128x128xf32>
    %7 = vector.broadcast %5 : vector<1x128xf32> to vector<128x128xf32>
    %8 = arith.addf %6, %7 : vector<128x128xf32>
    %c0_6 = arith.constant 0 : index
    %c0_7 = arith.constant 0 : index
    %c0_8 = arith.constant 0 : index
    %9 = vector.load %arg5[%c0_6, %c0_7, %c0_8] : memref<1x128x128xbf16, #tpu.memory_space<vmem>>, vector<1x128x128xbf16>
    %10 = vector.shape_cast %9 : vector<1x128x128xbf16> to vector<128x128xbf16>
    %11 = arith.extf %10 : vector<128x128xbf16> to vector<128x128xf32>
    %12 = arith.addf %8, %11 : vector<128x128xf32>
    %cst = arith.constant 2.000000e-01 : f32
    %13 = vector.broadcast %cst : f32 to vector<128x128xf32>
    %14 = arith.mulf %13, %12 : vector<128x128xf32>
    %15 = arith.maximumf %12, %14 : vector<128x128xf32>
    %c0_9 = arith.constant 0 : index
    %c0_10 = arith.constant 0 : index
    %c0_11 = arith.constant 0 : index
    %16 = vector.load %arg8[%c0_9, %c0_10, %c0_11] : memref<1x128x1xf32, #tpu.memory_space<vmem>>, vector<1x128x1xf32>
    %17 = vector.shape_cast %16 : vector<1x128x1xf32> to vector<128x1xf32>
    %cst_12 = arith.constant dense<0xFF800000> : vector<128xf32>
    %18 = vector.multi_reduction <maximumf>, %15, %cst_12 [1] : vector<128x128xf32> to vector<128xf32>
    %19 = vector.shape_cast %18 : vector<128xf32> to vector<128x1xf32>
    %20 = arith.maximumf %17, %19 : vector<128x1xf32>
    %21 = arith.subf %17, %20 : vector<128x1xf32>
    %22 = math.exp %21 : vector<128x1xf32>
    %23 = vector.broadcast %20 : vector<128x1xf32> to vector<128x128xf32>
    %24 = arith.subf %15, %23 : vector<128x128xf32>
    %25 = math.exp %24 : vector<128x128xf32>
    %c0_13 = arith.constant 0 : index
    %c0_14 = arith.constant 0 : index
    %c0_15 = arith.constant 0 : index
    %26 = vector.load %arg9[%c0_13, %c0_14, %c0_15] : memref<1x128x1xf32, #tpu.memory_space<vmem>>, vector<1x128x1xf32>
    %27 = vector.shape_cast %26 : vector<1x128x1xf32> to vector<128x1xf32>
    %28 = arith.mulf %22, %27 : vector<128x1xf32>
    %cst_16 = arith.constant dense<0.000000e+00> : vector<128xf32>
    %29 = vector.multi_reduction <add>, %25, %cst_16 [1] : vector<128x128xf32> to vector<128xf32>
    %30 = vector.shape_cast %29 : vector<128xf32> to vector<128x1xf32>
    %31 = arith.addf %28, %30 : vector<128x1xf32>
    %c0_17 = arith.constant 0 : index
    %c0_18 = arith.constant 0 : index
    %c0_19 = arith.constant 0 : index
    %32 = vector.load %arg9[%c0_17, %c0_18, %c0_19] : memref<1x128x1xf32, #tpu.memory_space<vmem>>, vector<1x128x1xf32>
    %33 = vector.shape_cast %32 : vector<1x128x1xf32> to vector<128x1xf32>
    %34 = vector.shape_cast %31 : vector<128x1xf32> to vector<1x128x1xf32>
    tpu.vector_store %arg9[%c0_17, %c0_18, %c0_19], %34 {strides = array<i32>} : memref<1x128x1xf32, #tpu.memory_space<vmem>>, vector<1x128x1xf32>,
    %c0_20 = arith.constant 0 : index
    %c0_21 = arith.constant 0 : index
    %c0_22 = arith.constant 0 : index
    %35 = vector.load %arg10[%c0_20, %c0_21, %c0_22] : memref<1x128x16xf32, #tpu.memory_space<vmem>>, vector<1x128x16xf32>
    %36 = vector.shape_cast %35 : vector<1x128x16xf32> to vector<128x16xf32>
    %37 = vector.broadcast %22 : vector<128x1xf32> to vector<128x16xf32>
    %38 = arith.mulf %37, %36 : vector<128x16xf32>
    %39 = arith.truncf %25 : vector<128x128xf32> to vector<128x128xbf16>
    %cst_23 = arith.constant dense<0.000000e+00> : vector<128x16xf32>
    %40 = tpu.matmul %39, %4, %cst_23 {dimension_numbers = #tpu.dot_dimension_numbers<[1], [0], [0], [1], [0, 0, 1, 1], [], []>} : vector<128x128xbf16>, vector<128x16xbf16>, vector<128x16xf32> -> vector<128x16xf32>
    %41 = arith.addf %38, %40 : vector<128x16xf32>
    %c0_24 = arith.constant 0 : index
    %c0_25 = arith.constant 0 : index
    %c0_26 = arith.constant 0 : index
    %42 = vector.load %arg10[%c0_24, %c0_25, %c0_26] : memref<1x128x16xf32, #tpu.memory_space<vmem>>, vector<1x128x16xf32>
    %43 = vector.shape_cast %42 : vector<1x128x16xf32> to vector<128x16xf32>
    %44 = vector.shape_cast %41 : vector<128x16xf32> to vector<1x128x16xf32>
    tpu.vector_store %arg10[%c0_24, %c0_25, %c0_26], %44 {strides = array<i32>} : memref<1x128x16xf32, #tpu.memory_space<vmem>>, vector<1x128x16xf32>,
    %c0_27 = arith.constant 0 : index
    %c0_28 = arith.constant 0 : index
    %c0_29 = arith.constant 0 : index
    %45 = vector.load %arg8[%c0_27, %c0_28, %c0_29] : memref<1x128x1xf32, #tpu.memory_space<vmem>>, vector<1x128x1xf32>
    %46 = vector.shape_cast %45 : vector<1x128x1xf32> to vector<128x1xf32>
    %47 = vector.shape_cast %20 : vector<128x1xf32> to vector<1x128x1xf32>
    tpu.vector_store %arg8[%c0_27, %c0_28, %c0_29], %47 {strides = array<i32>} : memref<1x128x1xf32, #tpu.memory_space<vmem>>, vector<1x128x1xf32>,
    %c0_i32_30 = arith.constant 0 : i32
    %48 = arith.cmpi eq, %arg1, %c0_i32_30 : i32
    %49 = arith.extui %48 : i1 to i32
    %c0_i32_31 = arith.constant 0 : i32
    %50 = arith.cmpi ne, %49, %c0_i32_31 : i32
    scf.if %50 {
      %c0_32 = arith.constant 0 : index
      %c0_33 = arith.constant 0 : index
      %c0_34 = arith.constant 0 : index
      %51 = vector.load %arg9[%c0_32, %c0_33, %c0_34] : memref<1x128x1xf32, #tpu.memory_space<vmem>>, vector<1x128x1xf32>
      %52 = vector.shape_cast %51 : vector<1x128x1xf32> to vector<128x1xf32>
      %cst_35 = arith.constant 9.99999968E-21 : f32
      %53 = vector.broadcast %cst_35 : f32 to vector<128x1xf32>
      %54 = arith.maximumf %52, %53 : vector<128x1xf32>
      %55 = tpu.reciprocal %54 {approx = true} : vector<128x1xf32> -> vector<128x1xf32>
      %c0_36 = arith.constant 0 : index
      %c0_37 = arith.constant 0 : index
      %c0_38 = arith.constant 0 : index
      %56 = vector.load %arg10[%c0_36, %c0_37, %c0_38] : memref<1x128x16xf32, #tpu.memory_space<vmem>>, vector<1x128x16xf32>
      %57 = vector.shape_cast %56 : vector<1x128x16xf32> to vector<128x16xf32>
      %58 = vector.broadcast %55 : vector<128x1xf32> to vector<128x16xf32>
      %59 = arith.mulf %57, %58 : vector<128x16xf32>
      %c0_39 = arith.constant 0 : index
      %c0_40 = arith.constant 0 : index
      %60 = vector.load %arg6[%c0_39, %c0_40] : memref<1x16xf32, #tpu.memory_space<vmem>>, vector<1x16xf32>
      %61 = vector.broadcast %60 : vector<1x16xf32> to vector<128x16xf32>
      %62 = arith.addf %59, %61 : vector<128x16xf32>
      %c0_41 = arith.constant 0 : index
      %c0_42 = arith.constant 0 : index
      %63 = vector.load %arg7[%c0_41, %c0_42] : memref<128x16xf32, #tpu.memory_space<vmem>>, vector<128x16xf32>
      tpu.vector_store %arg7[%c0_41, %c0_42], %62 {strides = array<i32>} : memref<128x16xf32, #tpu.memory_space<vmem>>, vector<128x16xf32>,
    } else {
    }
    return
  }
  func.func @transform_0(%arg0: i32, %arg1: i32) -> (i32, i32) {
    %c0_i32 = arith.constant 0 : i32
    %c0_i32_0 = arith.constant 0 : i32
    return %arg0, %c0_i32 : i32, i32
  }
  func.func @transform_1(%arg0: i32, %arg1: i32) -> (i32, i32) {
    %c0_i32 = arith.constant 0 : i32
    %c0_i32_0 = arith.constant 0 : i32
    return %c0_i32, %arg1 : i32, i32
  }
  func.func @transform_2(%arg0: i32, %arg1: i32) -> (i32, i32) {
    %c0_i32 = arith.constant 0 : i32
    %c0_i32_0 = arith.constant 0 : i32
    return %arg1, %c0_i32 : i32, i32
  }
  func.func @transform_3(%arg0: i32, %arg1: i32) -> (i32, i32, i32) {
    %c0_i32 = arith.constant 0 : i32
    %c0_i32_0 = arith.constant 0 : i32
    return %c0_i32, %arg0, %arg1 : i32, i32, i32
  }
  func.func @transform_4(%arg0: i32, %arg1: i32) -> (i32, i32) {
    %c0_i32 = arith.constant 0 : i32
    %c0_i32_0 = arith.constant 0 : i32
    %c0_i32_1 = arith.constant 0 : i32
    return %c0_i32, %c0_i32_0 : i32, i32
  }
  func.func @transform_5(%arg0: i32, %arg1: i32) -> (i32, i32) {
    %c0_i32 = arith.constant 0 : i32
    %c0_i32_0 = arith.constant 0 : i32
    return %arg0, %c0_i32 : i32, i32
  }
}

</mosaic_0001>

<llo_original>
// kernel: gat_encoder_forward.2
$region0: #{gat_encoder_forward.2}
  #allocation0 [shape = 'u32[]', space=smem, size = 0x4, offset = 0x4, fixed_abs, tag = 'smem constant byte address 0x4 - core index']
  #allocation1 [shape = 'u32[144,128]{1,0:T(1,128)}', space=vmem, size = 0x12000, scoped, tag = 'internal scratch']
  #allocation2 [shape = 'f32[4,128,1]{2,1,0:T(8,128)}', space=vmem, size = 0x40000, scoped, tag = 'scratch operand']
  #allocation3 [shape = 'f32[4,128,1]{2,1,0:T(8,128)}', space=vmem, size = 0x40000, scoped, tag = 'scratch operand']
  #allocation4 [shape = 'f32[4,128,8]{2,1,0:T(8,128)}', space=vmem, size = 0x40000, scoped, tag = 'scratch operand']
  %s0 = inlined_call_operand.vmem [shape: f32[128,4], index: 0, kind: input, shape index: {}]
  %s1 = inlined_call_operand.vmem [shape: f32[4,128], index: 1, kind: input, shape index: {}]
  %s2 = inlined_call_operand.vmem [shape: bf16[128,32], index: 2, kind: input, shape index: {}]
  %s3 = inlined_call_operand.vmem [shape: bf16[4,128,128], index: 3, kind: input, shape index: {}]
  %s4 = inlined_call_operand.vmem [shape: f32[1,32], index: 4, kind: input, shape index: {}]
  %s5 = inlined_call_operand.vmem [shape: f32[128,32], index: 5, kind: output, shape index: {}]
  %s6 = sld [smem:[#allocation0]]
  $region38: #{gat_encoder_forward.2} parent=0
    _
  %s8 = ssub.s32 1, %s6
  %s9 = scalar_select 0, %s8, %s6
  // Predicated region
  $region2: #{gat_encoder_forward.2} parent=0 // pred_check
    _
  $region3: #{gat_encoder_forward.2} parent=0 // pred_check_branch
    %11 = sbr.rel (0) target = $region5
  $region4: #{gat_encoder_forward.2} parent=0 // pred_region
    _
  $region5: #{gat_encoder_forward.2} parent=0 // pred_fallthru
    _
  // Predicated region
  $region6: #{gat_encoder_forward.2} parent=0 // pred_check
    _
  $region7: #{gat_encoder_forward.2} parent=0 // pred_check_branch
    %13 = sbr.rel (0) target = $region9
  $region8: #{gat_encoder_forward.2} parent=0 // pred_region
    _
  $region9: #{gat_encoder_forward.2} parent=0 // pred_fallthru
    _
  // Predicated region
  $region10: #{gat_encoder_forward.2} parent=0 // pred_check
    _
  $region11: #{gat_encoder_forward.2} parent=0 // pred_check_branch
    %15 = sbr.rel (0) target = $region13
  $region12: #{gat_encoder_forward.2} parent=0 // pred_region
    _
  $region13: #{gat_encoder_forward.2} parent=0 // pred_fallthru
    _
  // Predicated region
  $region14: #{gat_encoder_forward.2} parent=0 // pred_check
    _
  $region15: #{gat_encoder_forward.2} parent=0 // pred_check_branch
    %17 = sbr.rel (0) target = $region17
  $region16: #{gat_encoder_forward.2} parent=0 // pred_region
    _
  $region17: #{gat_encoder_forward.2} parent=0 // pred_fallthru
    _
  // Predicated region
  $region18: #{gat_encoder_forward.2} parent=0 // pred_check
    _
  $region19: #{gat_encoder_forward.2} parent=0 // pred_check_branch
    %19 = sbr.rel (0) target = $region21
  $region20: #{gat_encoder_forward.2} parent=0 // pred_region
    _
  $region21: #{gat_encoder_forward.2} parent=0 // pred_fallthru
    _
  %p21 = scmp.eq.s32.totalorder 0, 0
  // Predicated region
  $region22: #{gat_encoder_forward.2} parent=0 // pred_check
    %p22 = pneg %p21
  $region23: #{gat_encoder_forward.2} parent=0 // pred_check_branch
    %24 = sbr.rel (%p22) target = $region25
  $region24: #{gat_encoder_forward.2} parent=0 // pred_region
    %vm25 = vcmask 7168
    %26 = vst.msk [vmem:[#allocation2] sm:$0xff] %vm25, -inf
    %27 = vst.msk [vmem:[#allocation2 + $0x8] sm:$0xff] %vm25, -inf
    %28 = vst.msk [vmem:[#allocation2 + $0x10] sm:$0xff] %vm25, -inf
    %29 = vst.msk [vmem:[#allocation2 + $0x18] sm:$0xff] %vm25, -inf
    %30 = vst.msk [vmem:[#allocation2 + $0x20] sm:$0xff] %vm25, -inf
    %31 = vst.msk [vmem:[#allocation2 + $0x28] sm:$0xff] %vm25, -inf
    %32 = vst.msk [vmem:[#allocation2 + $0x30] sm:$0xff] %vm25, -inf
    %33 = vst.msk [vmem:[#allocation2 + $0x38] sm:$0xff] %vm25, -inf
    %34 = vst.msk [vmem:[#allocation2 + $0x40] sm:$0xff] %vm25, -inf
    %35 = vst.msk [vmem:[#allocation2 + $0x48] sm:$0xff] %vm25, -inf
    %36 = vst.msk [vmem:[#allocation2 + $0x50] sm:$0xff] %vm25, -inf
    %37 = vst.msk [vmem:[#allocation2 + $0x58] sm:$0xff] %vm25, -inf
    %38 = vst.msk [vmem:[#allocation2 + $0x60] sm:$0xff] %vm25, -inf
    %39 = vst.msk [vmem:[#allocation2 + $0x68] sm:$0xff] %vm25, -inf
    %40 = vst.msk [vmem:[#allocation2 + $0x70] sm:$0xff] %vm25, -inf
    %41 = vst.msk [vmem:[#allocation2 + $0x78] sm:$0xff] %vm25, -inf
    %42 = vst.msk [vmem:[#allocation2 + $0x80] sm:$0xff] %vm25, -inf
    %43 = vst.msk [vmem:[#allocation2 + $0x88] sm:$0xff] %vm25, -inf
    %44 = vst.msk [vmem:[#allocation2 + $0x90] sm:$0xff] %vm25, -inf
    %45 = vst.msk [vmem:[#allocation2 + $0x98] sm:$0xff] %vm25, -inf
    %46 = vst.msk [vmem:[#allocation2 + $0xa0] sm:$0xff] %vm25, -inf
    %47 = vst.msk [vmem:[#allocation2 + $0xa8] sm:$0xff] %vm25, -inf
    %48 = vst.msk [vmem:[#allocation2 + $0xb0] sm:$0xff] %vm25, -inf
    %49 = vst.msk [vmem:[#allocation2 + $0xb8] sm:$0xff] %vm25, -inf
    %50 = vst.msk [vmem:[#allocation2 + $0xc0] sm:$0xff] %vm25, -inf
    %51 = vst.msk [vmem:[#allocation2 + $0xc8] sm:$0xff] %vm25, -inf
    %52 = vst.msk [vmem:[#allocation2 + $0xd0] sm:$0xff] %vm25, -inf
    %53 = vst.msk [vmem:[#allocation2 + $0xd8] sm:$0xff] %vm25, -inf
    %54 = vst.msk [vmem:[#allocation2 + $0xe0] sm:$0xff] %vm25, -inf
    %55 = vst.msk [vmem:[#allocation2 + $0xe8] sm:$0xff] %vm25, -inf
    %56 = vst.msk [vmem:[#allocation2 + $0xf0] sm:$0xff] %vm25, -inf
    %57 = vst.msk [vmem:[#allocation2 + $0xf8] sm:$0xff] %vm25, -inf
    %58 = vst.msk [vmem:[#allocation2 + $0x100] sm:$0xff] %vm25, -inf
    %59 = vst.msk [vmem:[#allocation2 + $0x108] sm:$0xff] %vm25, -inf
    %60 = vst.msk [vmem:[#allocation2 + $0x110] sm:$0xff] %vm25, -inf
    %61 = vst.msk [vmem:[#allocation2 + $0x118] sm:$0xff] %vm25, -inf
    %62 = vst.msk [vmem:[#allocation2 + $0x120] sm:$0xff] %vm25, -inf
    %63 = vst.msk [vmem:[#allocation2 + $0x128] sm:$0xff] %vm25, -inf
    %64 = vst.msk [vmem:[#allocation2 + $0x130] sm:$0xff] %vm25, -inf
    %65 = vst.msk [vmem:[#allocation2 + $0x138] sm:$0xff] %vm25, -inf
    %66 = vst.msk [vmem:[#allocation2 + $0x140] sm:$0xff] %vm25, -inf
    %67 = vst.msk [vmem:[#allocation2 + $0x148] sm:$0xff] %vm25, -inf
    %68 = vst.msk [vmem:[#allocation2 + $0x150] sm:$0xff] %vm25, -inf
    %69 = vst.msk [vmem:[#allocation2 + $0x158] sm:$0xff] %vm25, -inf
    %70 = vst.msk [vmem:[#allocation2 + $0x160] sm:$0xff] %vm25, -inf
    %71 = vst.msk [vmem:[#allocation2 + $0x168] sm:$0xff] %vm25, -inf
    %72 = vst.msk [vmem:[#allocation2 + $0x170] sm:$0xff] %vm25, -inf
    %73 = vst.msk [vmem:[#allocation2 + $0x178] sm:$0xff] %vm25, -inf
    %74 = vst.msk [vmem:[#allocation2 + $0x180] sm:$0xff] %vm25, -inf
    %75 = vst.msk [vmem:[#allocation2 + $0x188] sm:$0xff] %vm25, -inf
    %76 = vst.msk [vmem:[#allocation2 + $0x190] sm:$0xff] %vm25, -inf
    %77 = vst.msk [vmem:[#allocation2 + $0x198] sm:$0xff] %vm25, -inf
    %78 = vst.msk [vmem:[#allocation2 + $0x1a0] sm:$0xff] %vm25, -inf
    %79 = vst.msk [vmem:[#allocation2 + $0x1a8] sm:$0xff] %vm25, -inf
    %80 = vst.msk [vmem:[#allocation2 + $0x1b0] sm:$0xff] %vm25, -inf
    %81 = vst.msk [vmem:[#allocation2 + $0x1b8] sm:$0xff] %vm25, -inf
    %82 = vst.msk [vmem:[#allocation2 + $0x1c0] sm:$0xff] %vm25, -inf
    %83 = vst.msk [vmem:[#allocation2 + $0x1c8] sm:$0xff] %vm25, -inf
    %84 = vst.msk [vmem:[#allocation2 + $0x1d0] sm:$0xff] %vm25, -inf
    %85 = vst.msk [vmem:[#allocation2 + $0x1d8] sm:$0xff] %vm25, -inf
    %86 = vst.msk [vmem:[#allocation2 + $0x1e0] sm:$0xff] %vm25, -inf
    %87 = vst.msk [vmem:[#allocation2 + $0x1e8] sm:$0xff] %vm25, -inf
    %88 = vst.msk [vmem:[#allocation2 + $0x1f0] sm:$0xff] %vm25, -inf
    %89 = vst.msk [vmem:[#allocation2 + $0x1f8] sm:$0xff] %vm25, -inf
    %90 = vst.msk [vmem:[#allocation3] sm:$0xff] %vm25, 0.0
    %91 = vst.msk [vmem:[#allocation3 + $0x8] sm:$0xff] %vm25, 0.0
    %92 = vst.msk [vmem:[#allocation3 + $0x10] sm:$0xff] %vm25, 0.0
    %93 = vst.msk [vmem:[#allocation3 + $0x18] sm:$0xff] %vm25, 0.0
    %94 = vst.msk [vmem:[#allocation3 + $0x20] sm:$0xff] %vm25, 0.0
    %95 = vst.msk [vmem:[#allocation3 + $0x28] sm:$0xff] %vm25, 0.0
    %96 = vst.msk [vmem:[#allocation3 + $0x30] sm:$0xff] %vm25, 0.0
    %97 = vst.msk [vmem:[#allocation3 + $0x38] sm:$0xff] %vm25, 0.0
    %98 = vst.msk [vmem:[#allocation3 + $0x40] sm:$0xff] %vm25, 0.0
    %99 = vst.msk [vmem:[#allocation3 + $0x48] sm:$0xff] %vm25, 0.0
    %100 = vst.msk [vmem:[#allocation3 + $0x50] sm:$0xff] %vm25, 0.0
    %101 = vst.msk [vmem:[#allocation3 + $0x58] sm:$0xff] %vm25, 0.0
    %102 = vst.msk [vmem:[#allocation3 + $0x60] sm:$0xff] %vm25, 0.0
    %103 = vst.msk [vmem:[#allocation3 + $0x68] sm:$0xff] %vm25, 0.0
    %104 = vst.msk [vmem:[#allocation3 + $0x70] sm:$0xff] %vm25, 0.0
    %105 = vst.msk [vmem:[#allocation3 + $0x78] sm:$0xff] %vm25, 0.0
    %106 = vst.msk [vmem:[#allocation3 + $0x80] sm:$0xff] %vm25, 0.0
    %107 = vst.msk [vmem:[#allocation3 + $0x88] sm:$0xff] %vm25, 0.0
    %108 = vst.msk [vmem:[#allocation3 + $0x90] sm:$0xff] %vm25, 0.0
    %109 = vst.msk [vmem:[#allocation3 + $0x98] sm:$0xff] %vm25, 0.0
    %110 = vst.msk [vmem:[#allocation3 + $0xa0] sm:$0xff] %vm25, 0.0
    %111 = vst.msk [vmem:[#allocation3 + $0xa8] sm:$0xff] %vm25, 0.0
    %112 = vst.msk [vmem:[#allocation3 + $0xb0] sm:$0xff] %vm25, 0.0
    %113 = vst.msk [vmem:[#allocation3 + $0xb8] sm:$0xff] %vm25, 0.0
    %114 = vst.msk [vmem:[#allocation3 + $0xc0] sm:$0xff] %vm25, 0.0
    %115 = vst.msk [vmem:[#allocation3 + $0xc8] sm:$0xff] %vm25, 0.0
    %116 = vst.msk [vmem:[#allocation3 + $0xd0] sm:$0xff] %vm25, 0.0
    %117 = vst.msk [vmem:[#allocation3 + $0xd8] sm:$0xff] %vm25, 0.0
    %118 = vst.msk [vmem:[#allocation3 + $0xe0] sm:$0xff] %vm25, 0.0
    %119 = vst.msk [vmem:[#allocation3 + $0xe8] sm:$0xff] %vm25, 0.0
    %120 = vst.msk [vmem:[#allocation3 + $0xf0] sm:$0xff] %vm25, 0.0
    %121 = vst.msk [vmem:[#allocation3 + $0xf8] sm:$0xff] %vm25, 0.0
    %122 = vst.msk [vmem:[#allocation3 + $0x100] sm:$0xff] %vm25, 0.0
    %123 = vst.msk [vmem:[#allocation3 + $0x108] sm:$0xff] %vm25, 0.0
    %124 = vst.msk [vmem:[#allocation3 + $0x110] sm:$0xff] %vm25, 0.0
    %125 = vst.msk [vmem:[#allocation3 + $0x118] sm:$0xff] %vm25, 0.0
    %126 = vst.msk [vmem:[#allocation3 + $0x120] sm:$0xff] %vm25, 0.0
    %127 = vst.msk [vmem:[#allocation3 + $0x128] sm:$0xff] %vm25, 0.0
    %128 = vst.msk [vmem:[#allocation3 + $0x130] sm:$0xff] %vm25, 0.0
    %129 = vst.msk [vmem:[#allocation3 + $0x138] sm:$0xff] %vm25, 0.0
    %130 = vst.msk [vmem:[#allocation3 + $0x140] sm:$0xff] %vm25, 0.0
    %131 = vst.msk [vmem:[#allocation3 + $0x148] sm:$0xff] %vm25, 0.0
    %132 = vst.msk [vmem:[#allocation3 + $0x150] sm:$0xff] %vm25, 0.0
    %133 = vst.msk [vmem:[#allocation3 + $0x158] sm:$0xff] %vm25, 0.0
    %134 = vst.msk [vmem:[#allocation3 + $0x160] sm:$0xff] %vm25, 0.0
    %135 = vst.msk [vmem:[#allocation3 + $0x168] sm:$0xff] %vm25, 0.0
    %136 = vst.msk [vmem:[#allocation3 + $0x170] sm:$0xff] %vm25, 0.0
    %137 = vst.msk [vmem:[#allocation3 + $0x178] sm:$0xff] %vm25, 0.0
    %138 = vst.msk [vmem:[#allocation3 + $0x180] sm:$0xff] %vm25, 0.0
    %139 = vst.msk [vmem:[#allocation3 + $0x188] sm:$0xff] %vm25, 0.0
    %140 = vst.msk [vmem:[#allocation3 + $0x190] sm:$0xff] %vm25, 0.0
    %141 = vst.msk [vmem:[#allocation3 + $0x198] sm:$0xff] %vm25, 0.0
    %142 = vst.msk [vmem:[#allocation3 + $0x1a0] sm:$0xff] %vm25, 0.0
    %143 = vst.msk [vmem:[#allocation3 + $0x1a8] sm:$0xff] %vm25, 0.0
    %144 = vst.msk [vmem:[#allocation3 + $0x1b0] sm:$0xff] %vm25, 0.0
    %145 = vst.msk [vmem:[#allocation3 + $0x1b8] sm:$0xff] %vm25, 0.0
    %146 = vst.msk [vmem:[#allocation3 + $0x1c0] sm:$0xff] %vm25, 0.0
    %147 = vst.msk [vmem:[#allocation3 + $0x1c8] sm:$0xff] %vm25, 0.0
    %148 = vst.msk [vmem:[#allocation3 + $0x1d0] sm:$0xff] %vm25, 0.0
    %149 = vst.msk [vmem:[#allocation3 + $0x1d8] sm:$0xff] %vm25, 0.0
    %150 = vst.msk [vmem:[#allocation3 + $0x1e0] sm:$0xff] %vm25, 0.0
    %151 = vst.msk [vmem:[#allocation3 + $0x1e8] sm:$0xff] %vm25, 0.0
    %152 = vst.msk [vmem:[#allocation3 + $0x1f0] sm:$0xff] %vm25, 0.0
    %153 = vst.msk [vmem:[#allocation3 + $0x1f8] sm:$0xff] %vm25, 0.0
    %vm154 = vcmask 64512
    %155 = vst.msk [vmem:[#allocation4] sm:$0xff] %vm154, 0.0
    %156 = vst.msk [vmem:[#allocation4 + $0x8] sm:$0xff] %vm154, 0.0
    %157 = vst.msk [vmem:[#allocation4 + $0x10] sm:$0xff] %vm154, 0.0
    %158 = vst.msk [vmem:[#allocation4 + $0x18] sm:$0xff] %vm154, 0.0
    %159 = vst.msk [vmem:[#allocation4 + $0x20] sm:$0xff] %vm154, 0.0
    %160 = vst.msk [vmem:[#allocation4 + $0x28] sm:$0xff] %vm154, 0.0
    %161 = vst.msk [vmem:[#allocation4 + $0x30] sm:$0xff] %vm154, 0.0
    %162 = vst.msk [vmem:[#allocation4 + $0x38] sm:$0xff] %vm154, 0.0
    %163 = vst.msk [vmem:[#allocation4 + $0x40] sm:$0xff] %vm154, 0.0
    %164 = vst.msk [vmem:[#allocation4 + $0x48] sm:$0xff] %vm154, 0.0
    %165 = vst.msk [vmem:[#allocation4 + $0x50] sm:$0xff] %vm154, 0.0
    %166 = vst.msk [vmem:[#allocation4 + $0x58] sm:$0xff] %vm154, 0.0
    %167 = vst.msk [vmem:[#allocation4 + $0x60] sm:$0xff] %vm154, 0.0
    %168 = vst.msk [vmem:[#allocation4 + $0x68] sm:$0xff] %vm154, 0.0
    %169 = vst.msk [vmem:[#allocation4 + $0x70] sm:$0xff] %vm154, 0.0
    %170 = vst.msk [vmem:[#allocation4 + $0x78] sm:$0xff] %vm154, 0.0
    %171 = vst.msk [vmem:[#allocation4 + $0x80] sm:$0xff] %vm154, 0.0
    %172 = vst.msk [vmem:[#allocation4 + $0x88] sm:$0xff] %vm154, 0.0
    %173 = vst.msk [vmem:[#allocation4 + $0x90] sm:$0xff] %vm154, 0.0
    %174 = vst.msk [vmem:[#allocation4 + $0x98] sm:$0xff] %vm154, 0.0
    %175 = vst.msk [vmem:[#allocation4 + $0xa0] sm:$0xff] %vm154, 0.0
    %176 = vst.msk [vmem:[#allocation4 + $0xa8] sm:$0xff] %vm154, 0.0
    %177 = vst.msk [vmem:[#allocation4 + $0xb0] sm:$0xff] %vm154, 0.0
    %178 = vst.msk [vmem:[#allocation4 + $0xb8] sm:$0xff] %vm154, 0.0
    %179 = vst.msk [vmem:[#allocation4 + $0xc0] sm:$0xff] %vm154, 0.0
    %180 = vst.msk [vmem:[#allocation4 + $0xc8] sm:$0xff] %vm154, 0.0
    %181 = vst.msk [vmem:[#allocation4 + $0xd0] sm:$0xff] %vm154, 0.0
    %182 = vst.msk [vmem:[#allocation4 + $0xd8] sm:$0xff] %vm154, 0.0
    %183 = vst.msk [vmem:[#allocation4 + $0xe0] sm:$0xff] %vm154, 0.0
    %184 = vst.msk [vmem:[#allocation4 + $0xe8] sm:$0xff] %vm154, 0.0
    %185 = vst.msk [vmem:[#allocation4 + $0xf0] sm:$0xff] %vm154, 0.0
    %186 = vst.msk [vmem:[#allocation4 + $0xf8] sm:$0xff] %vm154, 0.0
    %187 = vst.msk [vmem:[#allocation4 + $0x100] sm:$0xff] %vm154, 0.0
    %188 = vst.msk [vmem:[#allocation4 + $0x108] sm:$0xff] %vm154, 0.0
    %189 = vst.msk [vmem:[#allocation4 + $0x110] sm:$0xff] %vm154, 0.0
    %190 = vst.msk [vmem:[#allocation4 + $0x118] sm:$0xff] %vm154, 0.0
    %191 = vst.msk [vmem:[#allocation4 + $0x120] sm:$0xff] %vm154, 0.0
    %192 = vst.msk [vmem:[#allocation4 + $0x128] sm:$0xff] %vm154, 0.0
    %193 = vst.msk [vmem:[#allocation4 + $0x130] sm:$0xff] %vm154, 0.0
    %194 = vst.msk [vmem:[#allocation4 + $0x138] sm:$0xff] %vm154, 0.0
    %195 = vst.msk [vmem:[#allocation4 + $0x140] sm:$0xff] %vm154, 0.0
    %196 = vst.msk [vmem:[#allocation4 + $0x148] sm:$0xff] %vm154, 0.0
    %197 = vst.msk [vmem:[#allocation4 + $0x150] sm:$0xff] %vm154, 0.0
    %198 = vst.msk [vmem:[#allocation4 + $0x158] sm:$0xff] %vm154, 0.0
    %199 = vst.msk [vmem:[#allocation4 + $0x160] sm:$0xff] %vm154, 0.0
    %200 = vst.msk [vmem:[#allocation4 + $0x168] sm:$0xff] %vm154, 0.0
    %201 = vst.msk [vmem:[#allocation4 + $0x170] sm:$0xff] %vm154, 0.0
    %202 = vst.msk [vmem:[#allocation4 + $0x178] sm:$0xff] %vm154, 0.0
    %203 = vst.msk [vmem:[#allocation4 + $0x180] sm:$0xff] %vm154, 0.0
    %204 = vst.msk [vmem:[#allocation4 + $0x188] sm:$0xff] %vm154, 0.0
    %205 = vst.msk [vmem:[#allocation4 + $0x190] sm:$0xff] %vm154, 0.0
    %206 = vst.msk [vmem:[#allocation4 + $0x198] sm:$0xff] %vm154, 0.0
    %207 = vst.msk [vmem:[#allocation4 + $0x1a0] sm:$0xff] %vm154, 0.0
    %208 = vst.msk [vmem:[#allocation4 + $0x1a8] sm:$0xff] %vm154, 0.0
    %209 = vst.msk [vmem:[#allocation4 + $0x1b0] sm:$0xff] %vm154, 0.0
    %210 = vst.msk [vmem:[#allocation4 + $0x1b8] sm:$0xff] %vm154, 0.0
    %211 = vst.msk [vmem:[#allocation4 + $0x1c0] sm:$0xff] %vm154, 0.0
    %212 = vst.msk [vmem:[#allocation4 + $0x1c8] sm:$0xff] %vm154, 0.0
    %213 = vst.msk [vmem:[#allocation4 + $0x1d0] sm:$0xff] %vm154, 0.0
    %214 = vst.msk [vmem:[#allocation4 + $0x1d8] sm:$0xff] %vm154, 0.0
    %215 = vst.msk [vmem:[#allocation4 + $0x1e0] sm:$0xff] %vm154, 0.0
    %216 = vst.msk [vmem:[#allocation4 + $0x1e8] sm:$0xff] %vm154, 0.0
    %217 = vst.msk [vmem:[#allocation4 + $0x1f0] sm:$0xff] %vm154, 0.0
    %218 = vst.msk [vmem:[#allocation4 + $0x1f8] sm:$0xff] %vm154, 0.0
  $region25: #{gat_encoder_forward.2} parent=0 // pred_fallthru
    _
  %v219 = vld [vmem:[%s0] sm:$0xff]
  %v220 = vld [vmem:[%s0 + $0x8] sm:$0xff]
  %v221 = vld [vmem:[%s0 + $0x10] sm:$0xff]
  %v222 = vld [vmem:[%s0 + $0x18] sm:$0xff]
  %v223 = vld [vmem:[%s0 + $0x20] sm:$0xff]
  %v224 = vld [vmem:[%s0 + $0x28] sm:$0xff]
  %v225 = vld [vmem:[%s0 + $0x30] sm:$0xff]
  %v226 = vld [vmem:[%s0 + $0x38] sm:$0xff]
  %v227 = vld [vmem:[%s0 + $0x40] sm:$0xff]
  %v228 = vld [vmem:[%s0 + $0x48] sm:$0xff]
  %v229 = vld [vmem:[%s0 + $0x50] sm:$0xff]
  %v230 = vld [vmem:[%s0 + $0x58] sm:$0xff]
  %v231 = vld [vmem:[%s0 + $0x60] sm:$0xff]
  %v232 = vld [vmem:[%s0 + $0x68] sm:$0xff]
  %v233 = vld [vmem:[%s0 + $0x70] sm:$0xff]
  %v234 = vld [vmem:[%s0 + $0x78] sm:$0xff]
  %v235 = vld [vmem:[%s2] sm:$0xf]
  %v236 = vld [vmem:[%s2 + $0x4] sm:$0xf]
  %v237 = vld [vmem:[%s2 + $0x8] sm:$0xf]
  %v238 = vld [vmem:[%s2 + $0xc] sm:$0xf]
  %v239 = vld [vmem:[%s2 + $0x10] sm:$0xf]
  %v240 = vld [vmem:[%s2 + $0x14] sm:$0xf]
  %v241 = vld [vmem:[%s2 + $0x18] sm:$0xf]
  %v242 = vld [vmem:[%s2 + $0x1c] sm:$0xf]
  %v243 = vld [vmem:[%s2 + $0x20] sm:$0xf]
  %v244 = vld [vmem:[%s2 + $0x24] sm:$0xf]
  %v245 = vld [vmem:[%s2 + $0x28] sm:$0xf]
  %v246 = vld [vmem:[%s2 + $0x2c] sm:$0xf]
  %v247 = vld [vmem:[%s2 + $0x30] sm:$0xf]
  %v248 = vld [vmem:[%s2 + $0x34] sm:$0xf]
  %v249 = vld [vmem:[%s2 + $0x38] sm:$0xf]
  %v250 = vld [vmem:[%s2 + $0x3c] sm:$0xf]
  %v251 = vld [vmem:[%s1] sm:$0x1]
  %253 = vset.pattern.permute.xlu0 0
  %254 = vperm.xlu0 %253, %v219
  %v255 = vpop.permute.xlu0 %254
  %258 = vset.pattern.permute.xlu0 0
  %259 = vperm.xlu0 %258, %v220
  %v260 = vpop.permute.xlu0 %259
  %263 = vset.pattern.permute.xlu0 0
  %264 = vperm.xlu0 %263, %v221
  %v265 = vpop.permute.xlu0 %264
  %268 = vset.pattern.permute.xlu0 0
  %269 = vperm.xlu0 %268, %v222
  %v270 = vpop.permute.xlu0 %269
  %273 = vset.pattern.permute.xlu0 0
  %274 = vperm.xlu0 %273, %v223
  %v275 = vpop.permute.xlu0 %274
  %278 = vset.pattern.permute.xlu0 0
  %279 = vperm.xlu0 %278, %v224
  %v280 = vpop.permute.xlu0 %279
  %283 = vset.pattern.permute.xlu0 0
  %284 = vperm.xlu0 %283, %v225
  %v285 = vpop.permute.xlu0 %284
  %288 = vset.pattern.permute.xlu0 0
  %289 = vperm.xlu0 %288, %v226
  %v290 = vpop.permute.xlu0 %289
  %293 = vset.pattern.permute.xlu0 0
  %294 = vperm.xlu0 %293, %v227
  %v295 = vpop.permute.xlu0 %294
  %298 = vset.pattern.permute.xlu0 0
  %299 = vperm.xlu0 %298, %v228
  %v300 = vpop.permute.xlu0 %299
  %303 = vset.pattern.permute.xlu0 0
  %304 = vperm.xlu0 %303, %v229
  %v305 = vpop.permute.xlu0 %304
  %308 = vset.pattern.permute.xlu0 0
  %309 = vperm.xlu0 %308, %v230
  %v310 = vpop.permute.xlu0 %309
  %313 = vset.pattern.permute.xlu0 0
  %314 = vperm.xlu0 %313, %v231
  %v315 = vpop.permute.xlu0 %314
  %318 = vset.pattern.permute.xlu0 0
  %319 = vperm.xlu0 %318, %v232
  %v320 = vpop.permute.xlu0 %319
  %323 = vset.pattern.permute.xlu0 0
  %324 = vperm.xlu0 %323, %v233
  %v325 = vpop.permute.xlu0 %324
  %328 = vset.pattern.permute.xlu0 0
  %329 = vperm.xlu0 %328, %v234
  %v330 = vpop.permute.xlu0 %329
  %v332 = vlaneseq
  %v333 = vshrl.u32 %v332, 7
  %v334 = vsub.s32 0, %v333
  %v335 = vrot.slane %v251, %v334
  %v336 = vadd.f32 %v255, %v335
  %v337 = vadd.f32 %v260, %v335
  %v338 = vadd.f32 %v265, %v335
  %v339 = vadd.f32 %v270, %v335
  %v340 = vadd.f32 %v275, %v335
  %v341 = vadd.f32 %v280, %v335
  %v342 = vadd.f32 %v285, %v335
  %v343 = vadd.f32 %v290, %v335
  %v344 = vadd.f32 %v295, %v335
  %v345 = vadd.f32 %v300, %v335
  %v346 = vadd.f32 %v305, %v335
  %v347 = vadd.f32 %v310, %v335
  %v348 = vadd.f32 %v315, %v335
  %v349 = vadd.f32 %v320, %v335
  %v350 = vadd.f32 %v325, %v335
  %v351 = vadd.f32 %v330, %v335
  %v352 = vld [vmem:[%s3] sm:$0xf]
  %v353 = vld [vmem:[%s3 + $0x4] sm:$0xf]
  %v354 = vld [vmem:[%s3 + $0x8] sm:$0xf]
  %v355 = vld [vmem:[%s3 + $0xc] sm:$0xf]
  %v356 = vld [vmem:[%s3 + $0x10] sm:$0xf]
  %v357 = vld [vmem:[%s3 + $0x14] sm:$0xf]
  %v358 = vld [vmem:[%s3 + $0x18] sm:$0xf]
  %v359 = vld [vmem:[%s3 + $0x1c] sm:$0xf]
  %v360 = vld [vmem:[%s3 + $0x20] sm:$0xf]
  %v361 = vld [vmem:[%s3 + $0x24] sm:$0xf]
  %v362 = vld [vmem:[%s3 + $0x28] sm:$0xf]
  %v363 = vld [vmem:[%s3 + $0x2c] sm:$0xf]
  %v364 = vld [vmem:[%s3 + $0x30] sm:$0xf]
  %v365 = vld [vmem:[%s3 + $0x34] sm:$0xf]
  %v366 = vld [vmem:[%s3 + $0x38] sm:$0xf]
  %v367 = vld [vmem:[%s3 + $0x3c] sm:$0xf]
  %v368 = vunpack.c.l.bf16 %v352
  %v369 = vunpack.c.l.bf16 %v353
  %v370 = vunpack.c.l.bf16 %v354
  %v371 = vunpack.c.l.bf16 %v355
  %v372 = vunpack.c.l.bf16 %v356
  %v373 = vunpack.c.l.bf16 %v357
  %v374 = vunpack.c.l.bf16 %v358
  %v375 = vunpack.c.l.bf16 %v359
  %v376 = vunpack.c.l.bf16 %v360
  %v377 = vunpack.c.l.bf16 %v361
  %v378 = vunpack.c.l.bf16 %v362
  %v379 = vunpack.c.l.bf16 %v363
  %v380 = vunpack.c.l.bf16 %v364
  %v381 = vunpack.c.l.bf16 %v365
  %v382 = vunpack.c.l.bf16 %v366
  %v383 = vunpack.c.l.bf16 %v367
  %v384 = vadd.f32 %v336, %v368
  %v385 = vadd.f32 %v337, %v369
  %v386 = vadd.f32 %v338, %v370
  %v387 = vadd.f32 %v339, %v371
  %v388 = vadd.f32 %v340, %v372
  %v389 = vadd.f32 %v341, %v373
  %v390 = vadd.f32 %v342, %v374
  %v391 = vadd.f32 %v343, %v375
  %v392 = vadd.f32 %v344, %v376
  %v393 = vadd.f32 %v345, %v377
  %v394 = vadd.f32 %v346, %v378
  %v395 = vadd.f32 %v347, %v379
  %v396 = vadd.f32 %v348, %v380
  %v397 = vadd.f32 %v349, %v381
  %v398 = vadd.f32 %v350, %v382
  %v399 = vadd.f32 %v351, %v383
  %v400 = vmul.f32 %v384, 0.2
  %v401 = vmul.f32 %v385, 0.2
  %v402 = vmul.f32 %v386, 0.2
  %v403 = vmul.f32 %v387, 0.2
  %v404 = vmul.f32 %v388, 0.2
  %v405 = vmul.f32 %v389, 0.2
  %v406 = vmul.f32 %v390, 0.2
  %v407 = vmul.f32 %v391, 0.2
  %v408 = vmul.f32 %v392, 0.2
  %v409 = vmul.f32 %v393, 0.2
  %v410 = vmul.f32 %v394, 0.2
  %v411 = vmul.f32 %v395, 0.2
  %v412 = vmul.f32 %v396, 0.2
  %v413 = vmul.f32 %v397, 0.2
  %v414 = vmul.f32 %v398, 0.2
  %v415 = vmul.f32 %v399, 0.2
  %v416 = vmax.f32 %v384, %v400
  %v417 = vmax.f32 %v385, %v401
  %v418 = vmax.f32 %v386, %v402
  %v419 = vmax.f32 %v387, %v403
  %v420 = vmax.f32 %v388, %v404
  %v421 = vmax.f32 %v389, %v405
  %v422 = vmax.f32 %v390, %v406
  %v423 = vmax.f32 %v391, %v407
  %v424 = vmax.f32 %v392, %v408
  %v425 = vmax.f32 %v393, %v409
  %v426 = vmax.f32 %v394, %v410
  %v427 = vmax.f32 %v395, %v411
  %v428 = vmax.f32 %v396, %v412
  %v429 = vmax.f32 %v397, %v413
  %v430 = vmax.f32 %v398, %v414
  %v431 = vmax.f32 %v399, %v415
  %v432 = vld [vmem:[#allocation2] sm:$0xff]
  %v433 = vld [vmem:[#allocation2 + $0x8] sm:$0xff]
  %v434 = vld [vmem:[#allocation2 + $0x10] sm:$0xff]
  %v435 = vld [vmem:[#allocation2 + $0x18] sm:$0xff]
  %v436 = vld [vmem:[#allocation2 + $0x20] sm:$0xff]
  %v437 = vld [vmem:[#allocation2 + $0x28] sm:$0xff]
  %v438 = vld [vmem:[#allocation2 + $0x30] sm:$0xff]
  %v439 = vld [vmem:[#allocation2 + $0x38] sm:$0xff]
  %v440 = vld [vmem:[#allocation2 + $0x40] sm:$0xff]
  %v441 = vld [vmem:[#allocation2 + $0x48] sm:$0xff]
  %v442 = vld [vmem:[#allocation2 + $0x50] sm:$0xff]
  %v443 = vld [vmem:[#allocation2 + $0x58] sm:$0xff]
  %v444 = vld [vmem:[#allocation2 + $0x60] sm:$0xff]
  %v445 = vld [vmem:[#allocation2 + $0x68] sm:$0xff]
  %v446 = vld [vmem:[#allocation2 + $0x70] sm:$0xff]
  %v447 = vld [vmem:[#allocation2 + $0x78] sm:$0xff]
  %448 = vmax.xlane.f32.xlu0 %v416
  %v449 = vpop.xlane.xlu0 %448
  %450 = vmax.xlane.f32.xlu0 %v417
  %v451 = vpop.xlane.xlu0 %450
  %452 = vmax.xlane.f32.xlu0 %v418
  %v453 = vpop.xlane.xlu0 %452
  %454 = vmax.xlane.f32.xlu0 %v419
  %v455 = vpop.xlane.xlu0 %454
  %456 = vmax.xlane.f32.xlu0 %v420
  %v457 = vpop.xlane.xlu0 %456
  %458 = vmax.xlane.f32.xlu0 %v421
  %v459 = vpop.xlane.xlu0 %458
  %460 = vmax.xlane.f32.xlu0 %v422
  %v461 = vpop.xlane.xlu0 %460
  %462 = vmax.xlane.f32.xlu0 %v423
  %v463 = vpop.xlane.xlu0 %462
  %464 = vmax.xlane.f32.xlu0 %v424
  %v465 = vpop.xlane.xlu0 %464
  %466 = vmax.xlane.f32.xlu0 %v425
  %v467 = vpop.xlane.xlu0 %466
  %468 = vmax.xlane.f32.xlu0 %v426
  %v469 = vpop.xlane.xlu0 %468
  %470 = vmax.xlane.f32.xlu0 %v427
  %v471 = vpop.xlane.xlu0 %470
  %472 = vmax.xlane.f32.xlu0 %v428
  %v473 = vpop.xlane.xlu0 %472
  %474 = vmax.xlane.f32.xlu0 %v429
  %v475 = vpop.xlane.xlu0 %474
  %476 = vmax.xlane.f32.xlu0 %v430
  %v477 = vpop.xlane.xlu0 %476
  %478 = vmax.xlane.f32.xlu0 %v431
  %v479 = vpop.xlane.xlu0 %478
  %v480 = vmax.f32 %v432, %v449
  %v481 = vmax.f32 %v433, %v451
  %v482 = vmax.f32 %v434, %v453
  %v483 = vmax.f32 %v435, %v455
  %v484 = vmax.f32 %v436, %v457
  %v485 = vmax.f32 %v437, %v459
  %v486 = vmax.f32 %v438, %v461
  %v487 = vmax.f32 %v439, %v463
  %v488 = vmax.f32 %v440, %v465
  %v489 = vmax.f32 %v441, %v467
  %v490 = vmax.f32 %v442, %v469
  %v491 = vmax.f32 %v443, %v471
  %v492 = vmax.f32 %v444, %v473
  %v493 = vmax.f32 %v445, %v475
  %v494 = vmax.f32 %v446, %v477
  %v495 = vmax.f32 %v447, %v479
  %v496 = vsub.f32 %v432, %v480
  %v497 = vsub.f32 %v433, %v481
  %v498 = vsub.f32 %v434, %v482
  %v499 = vsub.f32 %v435, %v483
  %v500 = vsub.f32 %v436, %v484
  %v501 = vsub.f32 %v437, %v485
  %v502 = vsub.f32 %v438, %v486
  %v503 = vsub.f32 %v439, %v487
  %v504 = vsub.f32 %v440, %v488
  %v505 = vsub.f32 %v441, %v489
  %v506 = vsub.f32 %v442, %v490
  %v507 = vsub.f32 %v443, %v491
  %v508 = vsub.f32 %v444, %v492
  %v509 = vsub.f32 %v445, %v493
  %v510 = vsub.f32 %v446, %v494
  %v511 = vsub.f32 %v447, %v495
  %v512 = vmul.f32 %v496, 1.442695
  %v513 = vpow.pop %v512
  %v514 = vmul.f32 %v497, 1.442695
  %v515 = vpow.pop %v514
  %v516 = vmul.f32 %v498, 1.442695
  %v517 = vpow.pop %v516
  %v518 = vmul.f32 %v499, 1.442695
  %v519 = vpow.pop %v518
  %v520 = vmul.f32 %v500, 1.442695
  %v521 = vpow.pop %v520
  %v522 = vmul.f32 %v501, 1.442695
  %v523 = vpow.pop %v522
  %v524 = vmul.f32 %v502, 1.442695
  %v525 = vpow.pop %v524
  %v526 = vmul.f32 %v503, 1.442695
  %v527 = vpow.pop %v526
  %v528 = vmul.f32 %v504, 1.442695
  %v529 = vpow.pop %v528
  %v530 = vmul.f32 %v505, 1.442695
  %v531 = vpow.pop %v530
  %v532 = vmul.f32 %v506, 1.442695
  %v533 = vpow.pop %v532
  %v534 = vmul.f32 %v507, 1.442695
  %v535 = vpow.pop %v534
  %v536 = vmul.f32 %v508, 1.442695
  %v537 = vpow.pop %v536
  %v538 = vmul.f32 %v509, 1.442695
  %v539 = vpow.pop %v538
  %v540 = vmul.f32 %v510, 1.442695
  %v541 = vpow.pop %v540
  %v542 = vmul.f32 %v511, 1.442695
  %v543 = vpow.pop %v542
  %545 = vset.pattern.permute.xlu0 0
  %546 = vperm.xlu0 %545, %v480
  %v547 = vpop.permute.xlu0 %546
  %550 = vset.pattern.permute.xlu0 0
  %551 = vperm.xlu0 %550, %v481
  %v552 = vpop.permute.xlu0 %551
  %555 = vset.pattern.permute.xlu0 0
  %556 = vperm.xlu0 %555, %v482
  %v557 = vpop.permute.xlu0 %556
  %560 = vset.pattern.permute.xlu0 0
  %561 = vperm.xlu0 %560, %v483
  %v562 = vpop.permute.xlu0 %561
  %565 = vset.pattern.permute.xlu0 0
  %566 = vperm.xlu0 %565, %v484
  %v567 = vpop.permute.xlu0 %566
  %570 = vset.pattern.permute.xlu0 0
  %571 = vperm.xlu0 %570, %v485
  %v572 = vpop.permute.xlu0 %571
  %575 = vset.pattern.permute.xlu0 0
  %576 = vperm.xlu0 %575, %v486
  %v577 = vpop.permute.xlu0 %576
  %580 = vset.pattern.permute.xlu0 0
  %581 = vperm.xlu0 %580, %v487
  %v582 = vpop.permute.xlu0 %581
  %585 = vset.pattern.permute.xlu0 0
  %586 = vperm.xlu0 %585, %v488
  %v587 = vpop.permute.xlu0 %586
  %590 = vset.pattern.permute.xlu0 0
  %591 = vperm.xlu0 %590, %v489
  %v592 = vpop.permute.xlu0 %591
  %595 = vset.pattern.permute.xlu0 0
  %596 = vperm.xlu0 %595, %v490
  %v597 = vpop.permute.xlu0 %596
  %600 = vset.pattern.permute.xlu0 0
  %601 = vperm.xlu0 %600, %v491
  %v602 = vpop.permute.xlu0 %601
  %605 = vset.pattern.permute.xlu0 0
  %606 = vperm.xlu0 %605, %v492
  %v607 = vpop.permute.xlu0 %606
  %610 = vset.pattern.permute.xlu0 0
  %611 = vperm.xlu0 %610, %v493
  %v612 = vpop.permute.xlu0 %611
  %615 = vset.pattern.permute.xlu0 0
  %616 = vperm.xlu0 %615, %v494
  %v617 = vpop.permute.xlu0 %616
  %620 = vset.pattern.permute.xlu0 0
  %621 = vperm.xlu0 %620, %v495
  %v622 = vpop.permute.xlu0 %621
  %v624 = vsub.f32 %v416, %v547
  %v625 = vsub.f32 %v417, %v552
  %v626 = vsub.f32 %v418, %v557
  %v627 = vsub.f32 %v419, %v562
  %v628 = vsub.f32 %v420, %v567
  %v629 = vsub.f32 %v421, %v572
  %v630 = vsub.f32 %v422, %v577
  %v631 = vsub.f32 %v423, %v582
  %v632 = vsub.f32 %v424, %v587
  %v633 = vsub.f32 %v425, %v592
  %v634 = vsub.f32 %v426, %v597
  %v635 = vsub.f32 %v427, %v602
  %v636 = vsub.f32 %v428, %v607
  %v637 = vsub.f32 %v429, %v612
  %v638 = vsub.f32 %v430, %v617
  %v639 = vsub.f32 %v431, %v622
  %v640 = vmul.f32 %v624, 1.442695
  %v641 = vpow.pop %v640
  %v642 = vmul.f32 %v625, 1.442695
  %v643 = vpow.pop %v642
  %v644 = vmul.f32 %v626, 1.442695
  %v645 = vpow.pop %v644
  %v646 = vmul.f32 %v627, 1.442695
  %v647 = vpow.pop %v646
  %v648 = vmul.f32 %v628, 1.442695
  %v649 = vpow.pop %v648
  %v650 = vmul.f32 %v629, 1.442695
  %v651 = vpow.pop %v650
  %v652 = vmul.f32 %v630, 1.442695
  %v653 = vpow.pop %v652
  %v654 = vmul.f32 %v631, 1.442695
  %v655 = vpow.pop %v654
  %v656 = vmul.f32 %v632, 1.442695
  %v657 = vpow.pop %v656
  %v658 = vmul.f32 %v633, 1.442695
  %v659 = vpow.pop %v658
  %v660 = vmul.f32 %v634, 1.442695
  %v661 = vpow.pop %v660
  %v662 = vmul.f32 %v635, 1.442695
  %v663 = vpow.pop %v662
  %v664 = vmul.f32 %v636, 1.442695
  %v665 = vpow.pop %v664
  %v666 = vmul.f32 %v637, 1.442695
  %v667 = vpow.pop %v666
  %v668 = vmul.f32 %v638, 1.442695
  %v669 = vpow.pop %v668
  %v670 = vmul.f32 %v639, 1.442695
  %v671 = vpow.pop %v670
  %v672 = vld [vmem:[#allocation3] sm:$0xff]
  %v673 = vld [vmem:[#allocation3 + $0x8] sm:$0xff]
  %v674 = vld [vmem:[#allocation3 + $0x10] sm:$0xff]
  %v675 = vld [vmem:[#allocation3 + $0x18] sm:$0xff]
  %v676 = vld [vmem:[#allocation3 + $0x20] sm:$0xff]
  %v677 = vld [vmem:[#allocation3 + $0x28] sm:$0xff]
  %v678 = vld [vmem:[#allocation3 + $0x30] sm:$0xff]
  %v679 = vld [vmem:[#allocation3 + $0x38] sm:$0xff]
  %v680 = vld [vmem:[#allocation3 + $0x40] sm:$0xff]
  %v681 = vld [vmem:[#allocation3 + $0x48] sm:$0xff]
  %v682 = vld [vmem:[#allocation3 + $0x50] sm:$0xff]
  %v683 = vld [vmem:[#allocation3 + $0x58] sm:$0xff]
  %v684 = vld [vmem:[#allocation3 + $0x60] sm:$0xff]
  %v685 = vld [vmem:[#allocation3 + $0x68] sm:$0xff]
  %v686 = vld [vmem:[#allocation3 + $0x70] sm:$0xff]
  %v687 = vld [vmem:[#allocation3 + $0x78] sm:$0xff]
  %v688 = vmul.f32 %v513, %v672
  %v689 = vmul.f32 %v515, %v673
  %v690 = vmul.f32 %v517, %v674
  %v691 = vmul.f32 %v519, %v675
  %v692 = vmul.f32 %v521, %v676
  %v693 = vmul.f32 %v523, %v677
  %v694 = vmul.f32 %v525, %v678
  %v695 = vmul.f32 %v527, %v679
  %v696 = vmul.f32 %v529, %v680
  %v697 = vmul.f32 %v531, %v681
  %v698 = vmul.f32 %v533, %v682
  %v699 = vmul.f32 %v535, %v683
  %v700 = vmul.f32 %v537, %v684
  %v701 = vmul.f32 %v539, %v685
  %v702 = vmul.f32 %v541, %v686
  %v703 = vmul.f32 %v543, %v687
  %704 = vadd.xlane.f32.xlu0 %v641
  %v705 = vpop.xlane.xlu0 %704
  %706 = vadd.xlane.f32.xlu0 %v643
  %v707 = vpop.xlane.xlu0 %706
  %708 = vadd.xlane.f32.xlu0 %v645
  %v709 = vpop.xlane.xlu0 %708
  %710 = vadd.xlane.f32.xlu0 %v647
  %v711 = vpop.xlane.xlu0 %710
  %712 = vadd.xlane.f32.xlu0 %v649
  %v713 = vpop.xlane.xlu0 %712
  %714 = vadd.xlane.f32.xlu0 %v651
  %v715 = vpop.xlane.xlu0 %714
  %716 = vadd.xlane.f32.xlu0 %v653
  %v717 = vpop.xlane.xlu0 %716
  %718 = vadd.xlane.f32.xlu0 %v655
  %v719 = vpop.xlane.xlu0 %718
  %720 = vadd.xlane.f32.xlu0 %v657
  %v721 = vpop.xlane.xlu0 %720
  %722 = vadd.xlane.f32.xlu0 %v659
  %v723 = vpop.xlane.xlu0 %722
  %724 = vadd.xlane.f32.xlu0 %v661
  %v725 = vpop.xlane.xlu0 %724
  %726 = vadd.xlane.f32.xlu0 %v663
  %v727 = vpop.xlane.xlu0 %726
  %728 = vadd.xlane.f32.xlu0 %v665
  %v729 = vpop.xlane.xlu0 %728
  %730 = vadd.xlane.f32.xlu0 %v667
  %v731 = vpop.xlane.xlu0 %730
  %732 = vadd.xlane.f32.xlu0 %v669
  %v733 = vpop.xlane.xlu0 %732
  %734 = vadd.xlane.f32.xlu0 %v671
  %v735 = vpop.xlane.xlu0 %734
  %v736 = vadd.f32 %v688, %v705
  %v737 = vadd.f32 %v689, %v707
  %v738 = vadd.f32 %v690, %v709
  %v739 = vadd.f32 %v691, %v711
  %v740 = vadd.f32 %v692, %v713
  %v741 = vadd.f32 %v693, %v715
  %v742 = vadd.f32 %v694, %v717
  %v743 = vadd.f32 %v695, %v719
  %v744 = vadd.f32 %v696, %v721
  %v745 = vadd.f32 %v697, %v723
  %v746 = vadd.f32 %v698, %v725
  %v747 = vadd.f32 %v699, %v727
  %v748 = vadd.f32 %v700, %v729
  %v749 = vadd.f32 %v701, %v731
  %v750 = vadd.f32 %v702, %v733
  %v751 = vadd.f32 %v703, %v735
  %vm752 = vcmask 7168
  %753 = vst.msk [vmem:[#allocation3] sm:$0xff] %vm752, %v736
  %754 = vst.msk [vmem:[#allocation3 + $0x8] sm:$0xff] %vm752, %v737
  %755 = vst.msk [vmem:[#allocation3 + $0x10] sm:$0xff] %vm752, %v738
  %756 = vst.msk [vmem:[#allocation3 + $0x18] sm:$0xff] %vm752, %v739
  %757 = vst.msk [vmem:[#allocation3 + $0x20] sm:$0xff] %vm752, %v740
  %758 = vst.msk [vmem:[#allocation3 + $0x28] sm:$0xff] %vm752, %v741
  %759 = vst.msk [vmem:[#allocation3 + $0x30] sm:$0xff] %vm752, %v742
  %760 = vst.msk [vmem:[#allocation3 + $0x38] sm:$0xff] %vm752, %v743
  %761 = vst.msk [vmem:[#allocation3 + $0x40] sm:$0xff] %vm752, %v744
  %762 = vst.msk [vmem:[#allocation3 + $0x48] sm:$0xff] %vm752, %v745
  %763 = vst.msk [vmem:[#allocation3 + $0x50] sm:$0xff] %vm752, %v746
  %764 = vst.msk [vmem:[#allocation3 + $0x58] sm:$0xff] %vm752, %v747
  %765 = vst.msk [vmem:[#allocation3 + $0x60] sm:$0xff] %vm752, %v748
  %766 = vst.msk [vmem:[#allocation3 + $0x68] sm:$0xff] %vm752, %v749
  %767 = vst.msk [vmem:[#allocation3 + $0x70] sm:$0xff] %vm752, %v750
  %768 = vst.msk [vmem:[#allocation3 + $0x78] sm:$0xff] %vm752, %v751
  %v769 = vld [vmem:[#allocation4] sm:$0xff]
  %v770 = vld [vmem:[#allocation4 + $0x8] sm:$0xff]
  %v771 = vld [vmem:[#allocation4 + $0x10] sm:$0xff]
  %v772 = vld [vmem:[#allocation4 + $0x18] sm:$0xff]
  %v773 = vld [vmem:[#allocation4 + $0x20] sm:$0xff]
  %v774 = vld [vmem:[#allocation4 + $0x28] sm:$0xff]
  %v775 = vld [vmem:[#allocation4 + $0x30] sm:$0xff]
  %v776 = vld [vmem:[#allocation4 + $0x38] sm:$0xff]
  %v777 = vld [vmem:[#allocation4 + $0x40] sm:$0xff]
  %v778 = vld [vmem:[#allocation4 + $0x48] sm:$0xff]
  %v779 = vld [vmem:[#allocation4 + $0x50] sm:$0xff]
  %v780 = vld [vmem:[#allocation4 + $0x58] sm:$0xff]
  %v781 = vld [vmem:[#allocation4 + $0x60] sm:$0xff]
  %v782 = vld [vmem:[#allocation4 + $0x68] sm:$0xff]
  %v783 = vld [vmem:[#allocation4 + $0x70] sm:$0xff]
  %v784 = vld [vmem:[#allocation4 + $0x78] sm:$0xff]
  %786 = vset.pattern.permute.xlu0 0
  %787 = vperm.xlu0 %786, %v513
  %v788 = vpop.permute.xlu0 %787
  %791 = vset.pattern.permute.xlu0 0
  %792 = vperm.xlu0 %791, %v515
  %v793 = vpop.permute.xlu0 %792
  %796 = vset.pattern.permute.xlu0 0
  %797 = vperm.xlu0 %796, %v517
  %v798 = vpop.permute.xlu0 %797
  %801 = vset.pattern.permute.xlu0 0
  %802 = vperm.xlu0 %801, %v519
  %v803 = vpop.permute.xlu0 %802
  %806 = vset.pattern.permute.xlu0 0
  %807 = vperm.xlu0 %806, %v521
  %v808 = vpop.permute.xlu0 %807
  %811 = vset.pattern.permute.xlu0 0
  %812 = vperm.xlu0 %811, %v523
  %v813 = vpop.permute.xlu0 %812
  %816 = vset.pattern.permute.xlu0 0
  %817 = vperm.xlu0 %816, %v525
  %v818 = vpop.permute.xlu0 %817
  %821 = vset.pattern.permute.xlu0 0
  %822 = vperm.xlu0 %821, %v527
  %v823 = vpop.permute.xlu0 %822
  %826 = vset.pattern.permute.xlu0 0
  %827 = vperm.xlu0 %826, %v529
  %v828 = vpop.permute.xlu0 %827
  %831 = vset.pattern.permute.xlu0 0
  %832 = vperm.xlu0 %831, %v531
  %v833 = vpop.permute.xlu0 %832
  %836 = vset.pattern.permute.xlu0 0
  %837 = vperm.xlu0 %836, %v533
  %v838 = vpop.permute.xlu0 %837
  %841 = vset.pattern.permute.xlu0 0
  %842 = vperm.xlu0 %841, %v535
  %v843 = vpop.permute.xlu0 %842
  %846 = vset.pattern.permute.xlu0 0
  %847 = vperm.xlu0 %846, %v537
  %v848 = vpop.permute.xlu0 %847
  %851 = vset.pattern.permute.xlu0 0
  %852 = vperm.xlu0 %851, %v539
  %v853 = vpop.permute.xlu0 %852
  %856 = vset.pattern.permute.xlu0 0
  %857 = vperm.xlu0 %856, %v541
  %v858 = vpop.permute.xlu0 %857
  %861 = vset.pattern.permute.xlu0 0
  %862 = vperm.xlu0 %861, %v543
  %v863 = vpop.permute.xlu0 %862
  %v865 = vmul.f32 %v788, %v769
  %v866 = vmul.f32 %v793, %v770
  %v867 = vmul.f32 %v798, %v771
  %v868 = vmul.f32 %v803, %v772
  %v869 = vmul.f32 %v808, %v773
  %v870 = vmul.f32 %v813, %v774
  %v871 = vmul.f32 %v818, %v775
  %v872 = vmul.f32 %v823, %v776
  %v873 = vmul.f32 %v828, %v777
  %v874 = vmul.f32 %v833, %v778
  %v875 = vmul.f32 %v838, %v779
  %v876 = vmul.f32 %v843, %v780
  %v877 = vmul.f32 %v848, %v781
  %v878 = vmul.f32 %v853, %v782
  %v879 = vmul.f32 %v858, %v783
  %v880 = vmul.f32 %v863, %v784
  %v881 = vpack.c.bf16 %v643, %v641
  %v882 = vpack.c.bf16 %v647, %v645
  %v883 = vpack.c.bf16 %v651, %v649
  %v884 = vpack.c.bf16 %v655, %v653
  %v885 = vpack.c.bf16 %v659, %v657
  %v886 = vpack.c.bf16 %v663, %v661
  %v887 = vpack.c.bf16 %v667, %v665
  %v888 = vpack.c.bf16 %v671, %v669
  %v905 = vunpack.c.l.b16 %v235
  %v906 = vunpack.c.l.b16 %v236
  %v907 = vunpack.c.l.b16 %v237
  %v908 = vunpack.c.l.b16 %v238
  %v909 = vunpack.c.l.b16 %v239
  %v910 = vunpack.c.l.b16 %v240
  %v911 = vunpack.c.l.b16 %v241
  %v912 = vunpack.c.l.b16 %v242
  %v913 = vunpack.c.l.b16 %v243
  %v914 = vunpack.c.l.b16 %v244
  %v915 = vunpack.c.l.b16 %v245
  %v916 = vunpack.c.l.b16 %v246
  %v917 = vunpack.c.l.b16 %v247
  %v918 = vunpack.c.l.b16 %v248
  %v919 = vunpack.c.l.b16 %v249
  %v920 = vunpack.c.l.b16 %v250
  %v921 = vpack.c.b16 %v906, %v905
  %v922 = vpack.c.b16 %v908, %v907
  %v923 = vpack.c.b16 %v910, %v909
  %v924 = vpack.c.b16 %v912, %v911
  %v925 = vpack.c.b16 %v914, %v913
  %v926 = vpack.c.b16 %v916, %v915
  %v927 = vpack.c.b16 %v918, %v917
  %v928 = vpack.c.b16 %v920, %v919
  %937 = vmatprep.subr.bf16.mxu0 0
  %938 = vmatpush1.bf16.msra.mxu0 %v928
  %939 = vmatprep.subr.bf16.mxu0 0
  %940 = vmatpush1.bf16.msra.mxu0 %v927
  %941 = vmatprep.subr.bf16.mxu0 0
  %942 = vmatpush1.bf16.msra.mxu0 %v926
  %943 = vmatprep.subr.bf16.mxu0 0
  %944 = vmatpush1.bf16.msra.mxu0 %v925
  %945 = vmatprep.subr.bf16.mxu0 0
  %946 = vmatpush1.bf16.msra.mxu0 %v924
  %947 = vmatprep.subr.bf16.mxu0 0
  %948 = vmatpush1.bf16.msra.mxu0 %v923
  %949 = vmatprep.subr.bf16.mxu0 0
  %950 = vmatpush1.bf16.msra.mxu0 %v922
  %951 = vmatprep.subr.bf16.mxu0 0
  %952 = vmatpush1.bf16.msra.mxu0 %v921
  %953 = vmatprep.subr.bf16.mxu0 0
  %954 = vmatpush2.bf16.msra.mxu0 0
  %955 = vmatprep.subr.bf16.mxu0 0
  %956 = vmatpush2.bf16.msra.mxu0 0
  %957 = vmatprep.subr.bf16.mxu0 0
  %958 = vmatpush2.bf16.msra.mxu0 0
  %959 = vmatprep.subr.bf16.mxu0 0
  %960 = vmatpush2.bf16.msra.mxu0 0
  %961 = vmatprep.subr.bf16.mxu0 0
  %962 = vmatpush2.bf16.msra.mxu0 0
  %963 = vmatprep.subr.bf16.mxu0 0
  %964 = vmatpush2.bf16.msra.mxu0 0
  %965 = vmatprep.subr.bf16.mxu0 0
  %966 = vmatpush2.bf16.msra.mxu0 0
  %967 = vmatprep.subr.bf16.mxu0 0
  %968 = vmatpush2.bf16.msra.mxu0 0
  %969 = vmatprep.mubr.bf16.mxu0 0
  %970 = vmatmul.mubr.bf16.gmra.mxu0 %v881
  %v971 = vpop.f32.mrf.mxu0
  %v972 = vadd.f32 0.0, %v971
  %v973 = vpop.f32.mrf.mxu0
  %v974 = vpop.f32.mrf.mxu0
  %v975 = vadd.f32 0.0, %v974
  %v976 = vpop.f32.mrf.mxu0
  %977 = vmatprep.mubr.bf16.mxu0 0
  %978 = vmatmul.mubr.bf16.gmra.mxu0 %v882
  %v979 = vpop.f32.mrf.mxu0
  %v980 = vadd.f32 0.0, %v979
  %v981 = vpop.f32.mrf.mxu0
  %v982 = vpop.f32.mrf.mxu0
  %v983 = vadd.f32 0.0, %v982
  %v984 = vpop.f32.mrf.mxu0
  %985 = vmatprep.mubr.bf16.mxu0 0
  %986 = vmatmul.mubr.bf16.gmra.mxu0 %v883
  %v987 = vpop.f32.mrf.mxu0
  %v988 = vadd.f32 0.0, %v987
  %v989 = vpop.f32.mrf.mxu0
  %v990 = vpop.f32.mrf.mxu0
  %v991 = vadd.f32 0.0, %v990
  %v992 = vpop.f32.mrf.mxu0
  %993 = vmatprep.mubr.bf16.mxu0 0
  %994 = vmatmul.mubr.bf16.gmra.mxu0 %v884
  %v995 = vpop.f32.mrf.mxu0
  %v996 = vadd.f32 0.0, %v995
  %v997 = vpop.f32.mrf.mxu0
  %v998 = vpop.f32.mrf.mxu0
  %v999 = vadd.f32 0.0, %v998
  %v1000 = vpop.f32.mrf.mxu0
  %1001 = vmatprep.mubr.bf16.mxu0 0
  %1002 = vmatmul.mubr.bf16.gmra.mxu0 %v885
  %v1003 = vpop.f32.mrf.mxu0
  %v1004 = vadd.f32 0.0, %v1003
  %v1005 = vpop.f32.mrf.mxu0
  %v1006 = vpop.f32.mrf.mxu0
  %v1007 = vadd.f32 0.0, %v1006
  %v1008 = vpop.f32.mrf.mxu0
  %1009 = vmatprep.mubr.bf16.mxu0 0
  %1010 = vmatmul.mubr.bf16.gmra.mxu0 %v886
  %v1011 = vpop.f32.mrf.mxu0
  %v1012 = vadd.f32 0.0, %v1011
  %v1013 = vpop.f32.mrf.mxu0
  %v1014 = vpop.f32.mrf.mxu0
  %v1015 = vadd.f32 0.0, %v1014
  %v1016 = vpop.f32.mrf.mxu0
  %1017 = vmatprep.mubr.bf16.mxu0 0
  %1018 = vmatmul.mubr.bf16.gmra.mxu0 %v887
  %v1019 = vpop.f32.mrf.mxu0
  %v1020 = vadd.f32 0.0, %v1019
  %v1021 = vpop.f32.mrf.mxu0
  %v1022 = vpop.f32.mrf.mxu0
  %v1023 = vadd.f32 0.0, %v1022
  %v1024 = vpop.f32.mrf.mxu0
  %1025 = vmatprep.mubr.bf16.mxu0 0
  %1026 = vmatmul.mubr.bf16.gmra.mxu0 %v888
  %v1027 = vpop.f32.mrf.mxu0
  %v1028 = vadd.f32 0.0, %v1027
  %v1029 = vpop.f32.mrf.mxu0
  %v1030 = vpop.f32.mrf.mxu0
  %v1031 = vadd.f32 0.0, %v1030
  %v1032 = vpop.f32.mrf.mxu0
  %1033 = vdwg.mxu0
  %v1034 = vadd.f32 %v865, %v972
  %v1035 = vadd.f32 %v866, %v975
  %v1036 = vadd.f32 %v867, %v980
  %v1037 = vadd.f32 %v868, %v983
  %v1038 = vadd.f32 %v869, %v988
  %v1039 = vadd.f32 %v870, %v991
  %v1040 = vadd.f32 %v871, %v996
  %v1041 = vadd.f32 %v872, %v999
  %v1042 = vadd.f32 %v873, %v1004
  %v1043 = vadd.f32 %v874, %v1007
  %v1044 = vadd.f32 %v875, %v1012
  %v1045 = vadd.f32 %v876, %v1015
  %v1046 = vadd.f32 %v877, %v1020
  %v1047 = vadd.f32 %v878, %v1023
  %v1048 = vadd.f32 %v879, %v1028
  %v1049 = vadd.f32 %v880, %v1031
  %vm1050 = vcmask 64512
  %1051 = vst.msk [vmem:[#allocation4] sm:$0xff] %vm1050, %v1034
  %1052 = vst.msk [vmem:[#allocation4 + $0x8] sm:$0xff] %vm1050, %v1035
  %1053 = vst.msk [vmem:[#allocation4 + $0x10] sm:$0xff] %vm1050, %v1036
  %1054 = vst.msk [vmem:[#allocation4 + $0x18] sm:$0xff] %vm1050, %v1037
  %1055 = vst.msk [vmem:[#allocation4 + $0x20] sm:$0xff] %vm1050, %v1038
  %1056 = vst.msk [vmem:[#allocation4 + $0x28] sm:$0xff] %vm1050, %v1039
  %1057 = vst.msk [vmem:[#allocation4 + $0x30] sm:$0xff] %vm1050, %v1040
  %1058 = vst.msk [vmem:[#allocation4 + $0x38] sm:$0xff] %vm1050, %v1041
  %1059 = vst.msk [vmem:[#allocation4 + $0x40] sm:$0xff] %vm1050, %v1042
  %1060 = vst.msk [vmem:[#allocation4 + $0x48] sm:$0xff] %vm1050, %v1043
  %1061 = vst.msk [vmem:[#allocation4 + $0x50] sm:$0xff] %vm1050, %v1044
  %1062 = vst.msk [vmem:[#allocation4 + $0x58] sm:$0xff] %vm1050, %v1045
  %1063 = vst.msk [vmem:[#allocation4 + $0x60] sm:$0xff] %vm1050, %v1046
  %1064 = vst.msk [vmem:[#allocation4 + $0x68] sm:$0xff] %vm1050, %v1047
  %1065 = vst.msk [vmem:[#allocation4 + $0x70] sm:$0xff] %vm1050, %v1048
  %1066 = vst.msk [vmem:[#allocation4 + $0x78] sm:$0xff] %vm1050, %v1049
  %1067 = vst.msk [vmem:[#allocation2] sm:$0xff] %vm752, %v480
  %1068 = vst.msk [vmem:[#allocation2 + $0x8] sm:$0xff] %vm752, %v481
  %1069 = vst.msk [vmem:[#allocation2 + $0x10] sm:$0xff] %vm752, %v482
  %1070 = vst.msk [vmem:[#allocation2 + $0x18] sm:$0xff] %vm752, %v483
  %1071 = vst.msk [vmem:[#allocation2 + $0x20] sm:$0xff] %vm752, %v484
  %1072 = vst.msk [vmem:[#allocation2 + $0x28] sm:$0xff] %vm752, %v485
  %1073 = vst.msk [vmem:[#allocation2 + $0x30] sm:$0xff] %vm752, %v486
  %1074 = vst.msk [vmem:[#allocation2 + $0x38] sm:$0xff] %vm752, %v487
  %1075 = vst.msk [vmem:[#allocation2 + $0x40] sm:$0xff] %vm752, %v488
  %1076 = vst.msk [vmem:[#allocation2 + $0x48] sm:$0xff] %vm752, %v489
  %1077 = vst.msk [vmem:[#allocation2 + $0x50] sm:$0xff] %vm752, %v490
  %1078 = vst.msk [vmem:[#allocation2 + $0x58] sm:$0xff] %vm752, %v491
  %1079 = vst.msk [vmem:[#allocation2 + $0x60] sm:$0xff] %vm752, %v492
  %1080 = vst.msk [vmem:[#allocation2 + $0x68] sm:$0xff] %vm752, %v493
  %1081 = vst.msk [vmem:[#allocation2 + $0x70] sm:$0xff] %vm752, %v494
  %1082 = vst.msk [vmem:[#allocation2 + $0x78] sm:$0xff] %vm752, %v495
  %v1083 = vld [vmem:[%s1 + $0x1] sm:$0x1]
  %1084 = vset.pattern.permute.xlu0 1
  %1085 = vperm.xlu0 %1084, %v219
  %v1086 = vpop.permute.xlu0 %1085
  %1088 = vset.pattern.permute.xlu0 1
  %1089 = vperm.xlu0 %1088, %v220
  %v1090 = vpop.permute.xlu0 %1089
  %1092 = vset.pattern.permute.xlu0 1
  %1093 = vperm.xlu0 %1092, %v221
  %v1094 = vpop.permute.xlu0 %1093
  %1096 = vset.pattern.permute.xlu0 1
  %1097 = vperm.xlu0 %1096, %v222
  %v1098 = vpop.permute.xlu0 %1097
  %1100 = vset.pattern.permute.xlu0 1
  %1101 = vperm.xlu0 %1100, %v223
  %v1102 = vpop.permute.xlu0 %1101
  %1104 = vset.pattern.permute.xlu0 1
  %1105 = vperm.xlu0 %1104, %v224
  %v1106 = vpop.permute.xlu0 %1105
  %1108 = vset.pattern.permute.xlu0 1
  %1109 = vperm.xlu0 %1108, %v225
  %v1110 = vpop.permute.xlu0 %1109
  %1112 = vset.pattern.permute.xlu0 1
  %1113 = vperm.xlu0 %1112, %v226
  %v1114 = vpop.permute.xlu0 %1113
  %1116 = vset.pattern.permute.xlu0 1
  %1117 = vperm.xlu0 %1116, %v227
  %v1118 = vpop.permute.xlu0 %1117
  %1120 = vset.pattern.permute.xlu0 1
  %1121 = vperm.xlu0 %1120, %v228
  %v1122 = vpop.permute.xlu0 %1121
  %1124 = vset.pattern.permute.xlu0 1
  %1125 = vperm.xlu0 %1124, %v229
  %v1126 = vpop.permute.xlu0 %1125
  %1128 = vset.pattern.permute.xlu0 1
  %1129 = vperm.xlu0 %1128, %v230
  %v1130 = vpop.permute.xlu0 %1129
  %1132 = vset.pattern.permute.xlu0 1
  %1133 = vperm.xlu0 %1132, %v231
  %v1134 = vpop.permute.xlu0 %1133
  %1136 = vset.pattern.permute.xlu0 1
  %1137 = vperm.xlu0 %1136, %v232
  %v1138 = vpop.permute.xlu0 %1137
  %1140 = vset.pattern.permute.xlu0 1
  %1141 = vperm.xlu0 %1140, %v233
  %v1142 = vpop.permute.xlu0 %1141
  %1144 = vset.pattern.permute.xlu0 1
  %1145 = vperm.xlu0 %1144, %v234
  %v1146 = vpop.permute.xlu0 %1145
  %v1148 = vlaneseq
  %v1149 = vshrl.u32 %v1148, 7
  %v1150 = vsub.s32 0, %v1149
  %v1151 = vrot.slane %v1083, %v1150
  %v1152 = vadd.f32 %v1086, %v1151
  %v1153 = vadd.f32 %v1090, %v1151
  %v1154 = vadd.f32 %v1094, %v1151
  %v1155 = vadd.f32 %v1098, %v1151
  %v1156 = vadd.f32 %v1102, %v1151
  %v1157 = vadd.f32 %v1106, %v1151
  %v1158 = vadd.f32 %v1110, %v1151
  %v1159 = vadd.f32 %v1114, %v1151
  %v1160 = vadd.f32 %v1118, %v1151
  %v1161 = vadd.f32 %v1122, %v1151
  %v1162 = vadd.f32 %v1126, %v1151
  %v1163 = vadd.f32 %v1130, %v1151
  %v1164 = vadd.f32 %v1134, %v1151
  %v1165 = vadd.f32 %v1138, %v1151
  %v1166 = vadd.f32 %v1142, %v1151
  %v1167 = vadd.f32 %v1146, %v1151
  %s1168 = scalar_lea.vmem %s3, 64
  %v1169 = vld [vmem:[%s1168] sm:$0xf]
  %v1170 = vld [vmem:[%s1168 + $0x4] sm:$0xf]
  %v1171 = vld [vmem:[%s1168 + $0x8] sm:$0xf]
  %v1172 = vld [vmem:[%s1168 + $0xc] sm:$0xf]
  %v1173 = vld [vmem:[%s1168 + $0x10] sm:$0xf]
  %v1174 = vld [vmem:[%s1168 + $0x14] sm:$0xf]
  %v1175 = vld [vmem:[%s1168 + $0x18] sm:$0xf]
  %v1176 = vld [vmem:[%s1168 + $0x1c] sm:$0xf]
  %v1177 = vld [vmem:[%s1168 + $0x20] sm:$0xf]
  %v1178 = vld [vmem:[%s1168 + $0x24] sm:$0xf]
  %v1179 = vld [vmem:[%s1168 + $0x28] sm:$0xf]
  %v1180 = vld [vmem:[%s1168 + $0x2c] sm:$0xf]
  %v1181 = vld [vmem:[%s1168 + $0x30] sm:$0xf]
  %v1182 = vld [vmem:[%s1168 + $0x34] sm:$0xf]
  %v1183 = vld [vmem:[%s1168 + $0x38] sm:$0xf]
  %v1184 = vld [vmem:[%s1168 + $0x3c] sm:$0xf]
  %v1185 = vunpack.c.l.bf16 %v1169
  %v1186 = vunpack.c.l.bf16 %v1170
  %v1187 = vunpack.c.l.bf16 %v1171
  %v1188 = vunpack.c.l.bf16 %v1172
  %v1189 = vunpack.c.l.bf16 %v1173
  %v1190 = vunpack.c.l.bf16 %v1174
  %v1191 = vunpack.c.l.bf16 %v1175
  %v1192 = vunpack.c.l.bf16 %v1176
  %v1193 = vunpack.c.l.bf16 %v1177
  %v1194 = vunpack.c.l.bf16 %v1178
  %v1195 = vunpack.c.l.bf16 %v1179
  %v1196 = vunpack.c.l.bf16 %v1180
  %v1197 = vunpack.c.l.bf16 %v1181
  %v1198 = vunpack.c.l.bf16 %v1182
  %v1199 = vunpack.c.l.bf16 %v1183
  %v1200 = vunpack.c.l.bf16 %v1184
  %v1201 = vadd.f32 %v1152, %v1185
  %v1202 = vadd.f32 %v1153, %v1186
  %v1203 = vadd.f32 %v1154, %v1187
  %v1204 = vadd.f32 %v1155, %v1188
  %v1205 = vadd.f32 %v1156, %v1189
  %v1206 = vadd.f32 %v1157, %v1190
  %v1207 = vadd.f32 %v1158, %v1191
  %v1208 = vadd.f32 %v1159, %v1192
  %v1209 = vadd.f32 %v1160, %v1193
  %v1210 = vadd.f32 %v1161, %v1194
  %v1211 = vadd.f32 %v1162, %v1195
  %v1212 = vadd.f32 %v1163, %v1196
  %v1213 = vadd.f32 %v1164, %v1197
  %v1214 = vadd.f32 %v1165, %v1198
  %v1215 = vadd.f32 %v1166, %v1199
  %v1216 = vadd.f32 %v1167, %v1200
  %v1217 = vmul.f32 %v1201, 0.2
  %v1218 = vmul.f32 %v1202, 0.2
  %v1219 = vmul.f32 %v1203, 0.2
  %v1220 = vmul.f32 %v1204, 0.2
  %v1221 = vmul.f32 %v1205, 0.2
  %v1222 = vmul.f32 %v1206, 0.2
  %v1223 = vmul.f32 %v1207, 0.2
  %v1224 = vmul.f32 %v1208, 0.2
  %v1225 = vmul.f32 %v1209, 0.2
  %v1226 = vmul.f32 %v1210, 0.2
  %v1227 = vmul.f32 %v1211, 0.2
  %v1228 = vmul.f32 %v1212, 0.2
  %v1229 = vmul.f32 %v1213, 0.2
  %v1230 = vmul.f32 %v1214, 0.2
  %v1231 = vmul.f32 %v1215, 0.2
  %v1232 = vmul.f32 %v1216, 0.2
  %v1233 = vmax.f32 %v1201, %v1217
  %v1234 = vmax.f32 %v1202, %v1218
  %v1235 = vmax.f32 %v1203, %v1219
  %v1236 = vmax.f32 %v1204, %v1220
  %v1237 = vmax.f32 %v1205, %v1221
  %v1238 = vmax.f32 %v1206, %v1222
  %v1239 = vmax.f32 %v1207, %v1223
  %v1240 = vmax.f32 %v1208, %v1224
  %v1241 = vmax.f32 %v1209, %v1225
  %v1242 = vmax.f32 %v1210, %v1226
  %v1243 = vmax.f32 %v1211, %v1227
  %v1244 = vmax.f32 %v1212, %v1228
  %v1245 = vmax.f32 %v1213, %v1229
  %v1246 = vmax.f32 %v1214, %v1230
  %v1247 = vmax.f32 %v1215, %v1231
  %v1248 = vmax.f32 %v1216, %v1232
  %s1249 = scalar_lea.vmem [#allocation2], 128
  %v1250 = vld [vmem:[%s1249] sm:$0xff]
  %v1251 = vld [vmem:[%s1249 + $0x8] sm:$0xff]
  %v1252 = vld [vmem:[%s1249 + $0x10] sm:$0xff]
  %v1253 = vld [vmem:[%s1249 + $0x18] sm:$0xff]
  %v1254 = vld [vmem:[%s1249 + $0x20] sm:$0xff]
  %v1255 = vld [vmem:[%s1249 + $0x28] sm:$0xff]
  %v1256 = vld [vmem:[%s1249 + $0x30] sm:$0xff]
  %v1257 = vld [vmem:[%s1249 + $0x38] sm:$0xff]
  %v1258 = vld [vmem:[%s1249 + $0x40] sm:$0xff]
  %v1259 = vld [vmem:[%s1249 + $0x48] sm:$0xff]
  %v1260 = vld [vmem:[%s1249 + $0x50] sm:$0xff]
  %v1261 = vld [vmem:[%s1249 + $0x58] sm:$0xff]
  %v1262 = vld [vmem:[%s1249 + $0x60] sm:$0xff]
  %v1263 = vld [vmem:[%s1249 + $0x68] sm:$0xff]
  %v1264 = vld [vmem:[%s1249 + $0x70] sm:$0xff]
  %v1265 = vld [vmem:[%s1249 + $0x78] sm:$0xff]
  %1266 = vmax.xlane.f32.xlu0 %v1233
  %v1267 = vpop.xlane.xlu0 %1266
  %1268 = vmax.xlane.f32.xlu0 %v1234
  %v1269 = vpop.xlane.xlu0 %1268
  %1270 = vmax.xlane.f32.xlu0 %v1235
  %v1271 = vpop.xlane.xlu0 %1270
  %1272 = vmax.xlane.f32.xlu0 %v1236
  %v1273 = vpop.xlane.xlu0 %1272
  %1274 = vmax.xlane.f32.xlu0 %v1237
  %v1275 = vpop.xlane.xlu0 %1274
  %1276 = vmax.xlane.f32.xlu0 %v1238
  %v1277 = vpop.xlane.xlu0 %1276
  %1278 = vmax.xlane.f32.xlu0 %v1239
  %v1279 = vpop.xlane.xlu0 %1278
  %1280 = vmax.xlane.f32.xlu0 %v1240
  %v1281 = vpop.xlane.xlu0 %1280
  %1282 = vmax.xlane.f32.xlu0 %v1241
  %v1283 = vpop.xlane.xlu0 %1282
  %1284 = vmax.xlane.f32.xlu0 %v1242
  %v1285 = vpop.xlane.xlu0 %1284
  %1286 = vmax.xlane.f32.xlu0 %v1243
  %v1287 = vpop.xlane.xlu0 %1286
  %1288 = vmax.xlane.f32.xlu0 %v1244
  %v1289 = vpop.xlane.xlu0 %1288
  %1290 = vmax.xlane.f32.xlu0 %v1245
  %v1291 = vpop.xlane.xlu0 %1290
  %1292 = vmax.xlane.f32.xlu0 %v1246
  %v1293 = vpop.xlane.xlu0 %1292
  %1294 = vmax.xlane.f32.xlu0 %v1247
  %v1295 = vpop.xlane.xlu0 %1294
  %1296 = vmax.xlane.f32.xlu0 %v1248
  %v1297 = vpop.xlane.xlu0 %1296
  %v1298 = vmax.f32 %v1250, %v1267
  %v1299 = vmax.f32 %v1251, %v1269
  %v1300 = vmax.f32 %v1252, %v1271
  %v1301 = vmax.f32 %v1253, %v1273
  %v1302 = vmax.f32 %v1254, %v1275
  %v1303 = vmax.f32 %v1255, %v1277
  %v1304 = vmax.f32 %v1256, %v1279
  %v1305 = vmax.f32 %v1257, %v1281
  %v1306 = vmax.f32 %v1258, %v1283
  %v1307 = vmax.f32 %v1259, %v1285
  %v1308 = vmax.f32 %v1260, %v1287
  %v1309 = vmax.f32 %v1261, %v1289
  %v1310 = vmax.f32 %v1262, %v1291
  %v1311 = vmax.f32 %v1263, %v1293
  %v1312 = vmax.f32 %v1264, %v1295
  %v1313 = vmax.f32 %v1265, %v1297
  %v1314 = vsub.f32 %v1250, %v1298
  %v1315 = vsub.f32 %v1251, %v1299
  %v1316 = vsub.f32 %v1252, %v1300
  %v1317 = vsub.f32 %v1253, %v1301
  %v1318 = vsub.f32 %v1254, %v1302
  %v1319 = vsub.f32 %v1255, %v1303
  %v1320 = vsub.f32 %v1256, %v1304
  %v1321 = vsub.f32 %v1257, %v1305
  %v1322 = vsub.f32 %v1258, %v1306
  %v1323 = vsub.f32 %v1259, %v1307
  %v1324 = vsub.f32 %v1260, %v1308
  %v1325 = vsub.f32 %v1261, %v1309
  %v1326 = vsub.f32 %v1262, %v1310
  %v1327 = vsub.f32 %v1263, %v1311
  %v1328 = vsub.f32 %v1264, %v1312
  %v1329 = vsub.f32 %v1265, %v1313
  %v1330 = vmul.f32 %v1314, 1.442695
  %v1331 = vpow.pop %v1330
  %v1332 = vmul.f32 %v1315, 1.442695
  %v1333 = vpow.pop %v1332
  %v1334 = vmul.f32 %v1316, 1.442695
  %v1335 = vpow.pop %v1334
  %v1336 = vmul.f32 %v1317, 1.442695
  %v1337 = vpow.pop %v1336
  %v1338 = vmul.f32 %v1318, 1.442695
  %v1339 = vpow.pop %v1338
  %v1340 = vmul.f32 %v1319, 1.442695
  %v1341 = vpow.pop %v1340
  %v1342 = vmul.f32 %v1320, 1.442695
  %v1343 = vpow.pop %v1342
  %v1344 = vmul.f32 %v1321, 1.442695
  %v1345 = vpow.pop %v1344
  %v1346 = vmul.f32 %v1322, 1.442695
  %v1347 = vpow.pop %v1346
  %v1348 = vmul.f32 %v1323, 1.442695
  %v1349 = vpow.pop %v1348
  %v1350 = vmul.f32 %v1324, 1.442695
  %v1351 = vpow.pop %v1350
  %v1352 = vmul.f32 %v1325, 1.442695
  %v1353 = vpow.pop %v1352
  %v1354 = vmul.f32 %v1326, 1.442695
  %v1355 = vpow.pop %v1354
  %v1356 = vmul.f32 %v1327, 1.442695
  %v1357 = vpow.pop %v1356
  %v1358 = vmul.f32 %v1328, 1.442695
  %v1359 = vpow.pop %v1358
  %v1360 = vmul.f32 %v1329, 1.442695
  %v1361 = vpow.pop %v1360
  %1363 = vset.pattern.permute.xlu0 0
  %1364 = vperm.xlu0 %1363, %v1298
  %v1365 = vpop.permute.xlu0 %1364
  %1368 = vset.pattern.permute.xlu0 0
  %1369 = vperm.xlu0 %1368, %v1299
  %v1370 = vpop.permute.xlu0 %1369
  %1373 = vset.pattern.permute.xlu0 0
  %1374 = vperm.xlu0 %1373, %v1300
  %v1375 = vpop.permute.xlu0 %1374
  %1378 = vset.pattern.permute.xlu0 0
  %1379 = vperm.xlu0 %1378, %v1301
  %v1380 = vpop.permute.xlu0 %1379
  %1383 = vset.pattern.permute.xlu0 0
  %1384 = vperm.xlu0 %1383, %v1302
  %v1385 = vpop.permute.xlu0 %1384
  %1388 = vset.pattern.permute.xlu0 0
  %1389 = vperm.xlu0 %1388, %v1303
  %v1390 = vpop.permute.xlu0 %1389
  %1393 = vset.pattern.permute.xlu0 0
  %1394 = vperm.xlu0 %1393, %v1304
  %v1395 = vpop.permute.xlu0 %1394
  %1398 = vset.pattern.permute.xlu0 0
  %1399 = vperm.xlu0 %1398, %v1305
  %v1400 = vpop.permute.xlu0 %1399
  %1403 = vset.pattern.permute.xlu0 0
  %1404 = vperm.xlu0 %1403, %v1306
  %v1405 = vpop.permute.xlu0 %1404
  %1408 = vset.pattern.permute.xlu0 0
  %1409 = vperm.xlu0 %1408, %v1307
  %v1410 = vpop.permute.xlu0 %1409
  %1413 = vset.pattern.permute.xlu0 0
  %1414 = vperm.xlu0 %1413, %v1308
  %v1415 = vpop.permute.xlu0 %1414
  %1418 = vset.pattern.permute.xlu0 0
  %1419 = vperm.xlu0 %1418, %v1309
  %v1420 = vpop.permute.xlu0 %1419
  %1423 = vset.pattern.permute.xlu0 0
  %1424 = vperm.xlu0 %1423, %v1310
  %v1425 = vpop.permute.xlu0 %1424
  %1428 = vset.pattern.permute.xlu0 0
  %1429 = vperm.xlu0 %1428, %v1311
  %v1430 = vpop.permute.xlu0 %1429
  %1433 = vset.pattern.permute.xlu0 0
  %1434 = vperm.xlu0 %1433, %v1312
  %v1435 = vpop.permute.xlu0 %1434
  %1438 = vset.pattern.permute.xlu0 0
  %1439 = vperm.xlu0 %1438, %v1313
  %v1440 = vpop.permute.xlu0 %1439
  %v1442 = vsub.f32 %v1233, %v1365
  %v1443 = vsub.f32 %v1234, %v1370
  %v1444 = vsub.f32 %v1235, %v1375
  %v1445 = vsub.f32 %v1236, %v1380
  %v1446 = vsub.f32 %v1237, %v1385
  %v1447 = vsub.f32 %v1238, %v1390
  %v1448 = vsub.f32 %v1239, %v1395
  %v1449 = vsub.f32 %v1240, %v1400
  %v1450 = vsub.f32 %v1241, %v1405
  %v1451 = vsub.f32 %v1242, %v1410
  %v1452 = vsub.f32 %v1243, %v1415
  %v1453 = vsub.f32 %v1244, %v1420
  %v1454 = vsub.f32 %v1245, %v1425
  %v1455 = vsub.f32 %v1246, %v1430
  %v1456 = vsub.f32 %v1247, %v1435
  %v1457 = vsub.f32 %v1248, %v1440
  %v1458 = vmul.f32 %v1442, 1.442695
  %v1459 = vpow.pop %v1458
  %v1460 = vmul.f32 %v1443, 1.442695
  %v1461 = vpow.pop %v1460
  %v1462 = vmul.f32 %v1444, 1.442695
  %v1463 = vpow.pop %v1462
  %v1464 = vmul.f32 %v1445, 1.442695
  %v1465 = vpow.pop %v1464
  %v1466 = vmul.f32 %v1446, 1.442695
  %v1467 = vpow.pop %v1466
  %v1468 = vmul.f32 %v1447, 1.442695
  %v1469 = vpow.pop %v1468
  %v1470 = vmul.f32 %v1448, 1.442695
  %v1471 = vpow.pop %v1470
  %v1472 = vmul.f32 %v1449, 1.442695
  %v1473 = vpow.pop %v1472
  %v1474 = vmul.f32 %v1450, 1.442695
  %v1475 = vpow.pop %v1474
  %v1476 = vmul.f32 %v1451, 1.442695
  %v1477 = vpow.pop %v1476
  %v1478 = vmul.f32 %v1452, 1.442695
  %v1479 = vpow.pop %v1478
  %v1480 = vmul.f32 %v1453, 1.442695
  %v1481 = vpow.pop %v1480
  %v1482 = vmul.f32 %v1454, 1.442695
  %v1483 = vpow.pop %v1482
  %v1484 = vmul.f32 %v1455, 1.442695
  %v1485 = vpow.pop %v1484
  %v1486 = vmul.f32 %v1456, 1.442695
  %v1487 = vpow.pop %v1486
  %v1488 = vmul.f32 %v1457, 1.442695
  %v1489 = vpow.pop %v1488
  %s1490 = scalar_lea.vmem [#allocation3], 128
  %v1491 = vld [vmem:[%s1490] sm:$0xff]
  %v1492 = vld [vmem:[%s1490 + $0x8] sm:$0xff]
  %v1493 = vld [vmem:[%s1490 + $0x10] sm:$0xff]
  %v1494 = vld [vmem:[%s1490 + $0x18] sm:$0xff]
  %v1495 = vld [vmem:[%s1490 + $0x20] sm:$0xff]
  %v1496 = vld [vmem:[%s1490 + $0x28] sm:$0xff]
  %v1497 = vld [vmem:[%s1490 + $0x30] sm:$0xff]
  %v1498 = vld [vmem:[%s1490 + $0x38] sm:$0xff]
  %v1499 = vld [vmem:[%s1490 + $0x40] sm:$0xff]
  %v1500 = vld [vmem:[%s1490 + $0x48] sm:$0xff]
  %v1501 = vld [vmem:[%s1490 + $0x50] sm:$0xff]
  %v1502 = vld [vmem:[%s1490 + $0x58] sm:$0xff]
  %v1503 = vld [vmem:[%s1490 + $0x60] sm:$0xff]
  %v1504 = vld [vmem:[%s1490 + $0x68] sm:$0xff]
  %v1505 = vld [vmem:[%s1490 + $0x70] sm:$0xff]
  %v1506 = vld [vmem:[%s1490 + $0x78] sm:$0xff]
  %v1507 = vmul.f32 %v1331, %v1491
  %v1508 = vmul.f32 %v1333, %v1492
  %v1509 = vmul.f32 %v1335, %v1493
  %v1510 = vmul.f32 %v1337, %v1494
  %v1511 = vmul.f32 %v1339, %v1495
  %v1512 = vmul.f32 %v1341, %v1496
  %v1513 = vmul.f32 %v1343, %v1497
  %v1514 = vmul.f32 %v1345, %v1498
  %v1515 = vmul.f32 %v1347, %v1499
  %v1516 = vmul.f32 %v1349, %v1500
  %v1517 = vmul.f32 %v1351, %v1501
  %v1518 = vmul.f32 %v1353, %v1502
  %v1519 = vmul.f32 %v1355, %v1503
  %v1520 = vmul.f32 %v1357, %v1504
  %v1521 = vmul.f32 %v1359, %v1505
  %v1522 = vmul.f32 %v1361, %v1506
  %1523 = vadd.xlane.f32.xlu0 %v1459
  %v1524 = vpop.xlane.xlu0 %1523
  %1525 = vadd.xlane.f32.xlu0 %v1461
  %v1526 = vpop.xlane.xlu0 %1525
  %1527 = vadd.xlane.f32.xlu0 %v1463
  %v1528 = vpop.xlane.xlu0 %1527
  %1529 = vadd.xlane.f32.xlu0 %v1465
  %v1530 = vpop.xlane.xlu0 %1529
  %1531 = vadd.xlane.f32.xlu0 %v1467
  %v1532 = vpop.xlane.xlu0 %1531
  %1533 = vadd.xlane.f32.xlu0 %v1469
  %v1534 = vpop.xlane.xlu0 %1533
  %1535 = vadd.xlane.f32.xlu0 %v1471
  %v1536 = vpop.xlane.xlu0 %1535
  %1537 = vadd.xlane.f32.xlu0 %v1473
  %v1538 = vpop.xlane.xlu0 %1537
  %1539 = vadd.xlane.f32.xlu0 %v1475
  %v1540 = vpop.xlane.xlu0 %1539
  %1541 = vadd.xlane.f32.xlu0 %v1477
  %v1542 = vpop.xlane.xlu0 %1541
  %1543 = vadd.xlane.f32.xlu0 %v1479
  %v1544 = vpop.xlane.xlu0 %1543
  %1545 = vadd.xlane.f32.xlu0 %v1481
  %v1546 = vpop.xlane.xlu0 %1545
  %1547 = vadd.xlane.f32.xlu0 %v1483
  %v1548 = vpop.xlane.xlu0 %1547
  %1549 = vadd.xlane.f32.xlu0 %v1485
  %v1550 = vpop.xlane.xlu0 %1549
  %1551 = vadd.xlane.f32.xlu0 %v1487
  %v1552 = vpop.xlane.xlu0 %1551
  %1553 = vadd.xlane.f32.xlu0 %v1489
  %v1554 = vpop.xlane.xlu0 %1553
  %v1555 = vadd.f32 %v1507, %v1524
  %v1556 = vadd.f32 %v1508, %v1526
  %v1557 = vadd.f32 %v1509, %v1528
  %v1558 = vadd.f32 %v1510, %v1530
  %v1559 = vadd.f32 %v1511, %v1532
  %v1560 = vadd.f32 %v1512, %v1534
  %v1561 = vadd.f32 %v1513, %v1536
  %v1562 = vadd.f32 %v1514, %v1538
  %v1563 = vadd.f32 %v1515, %v1540
  %v1564 = vadd.f32 %v1516, %v1542
  %v1565 = vadd.f32 %v1517, %v1544
  %v1566 = vadd.f32 %v1518, %v1546
  %v1567 = vadd.f32 %v1519, %v1548
  %v1568 = vadd.f32 %v1520, %v1550
  %v1569 = vadd.f32 %v1521, %v1552
  %v1570 = vadd.f32 %v1522, %v1554
  %1571 = vst.msk [vmem:[%s1490] sm:$0xff] %vm752, %v1555
  %1572 = vst.msk [vmem:[%s1490 + $0x8] sm:$0xff] %vm752, %v1556
  %1573 = vst.msk [vmem:[%s1490 + $0x10] sm:$0xff] %vm752, %v1557
  %1574 = vst.msk [vmem:[%s1490 + $0x18] sm:$0xff] %vm752, %v1558
  %1575 = vst.msk [vmem:[%s1490 + $0x20] sm:$0xff] %vm752, %v1559
  %1576 = vst.msk [vmem:[%s1490 + $0x28] sm:$0xff] %vm752, %v1560
  %1577 = vst.msk [vmem:[%s1490 + $0x30] sm:$0xff] %vm752, %v1561
  %1578 = vst.msk [vmem:[%s1490 + $0x38] sm:$0xff] %vm752, %v1562
  %1579 = vst.msk [vmem:[%s1490 + $0x40] sm:$0xff] %vm752, %v1563
  %1580 = vst.msk [vmem:[%s1490 + $0x48] sm:$0xff] %vm752, %v1564
  %1581 = vst.msk [vmem:[%s1490 + $0x50] sm:$0xff] %vm752, %v1565
  %1582 = vst.msk [vmem:[%s1490 + $0x58] sm:$0xff] %vm752, %v1566
  %1583 = vst.msk [vmem:[%s1490 + $0x60] sm:$0xff] %vm752, %v1567
  %1584 = vst.msk [vmem:[%s1490 + $0x68] sm:$0xff] %vm752, %v1568
  %1585 = vst.msk [vmem:[%s1490 + $0x70] sm:$0xff] %vm752, %v1569
  %1586 = vst.msk [vmem:[%s1490 + $0x78] sm:$0xff] %vm752, %v1570
  %s1587 = scalar_lea.vmem [#allocation4], 128
  %v1588 = vld [vmem:[%s1587] sm:$0xff]
  %v1589 = vld [vmem:[%s1587 + $0x8] sm:$0xff]
  %v1590 = vld [vmem:[%s1587 + $0x10] sm:$0xff]
  %v1591 = vld [vmem:[%s1587 + $0x18] sm:$0xff]
  %v1592 = vld [vmem:[%s1587 + $0x20] sm:$0xff]
  %v1593 = vld [vmem:[%s1587 + $0x28] sm:$0xff]
  %v1594 = vld [vmem:[%s1587 + $0x30] sm:$0xff]
  %v1595 = vld [vmem:[%s1587 + $0x38] sm:$0xff]
  %v1596 = vld [vmem:[%s1587 + $0x40] sm:$0xff]
  %v1597 = vld [vmem:[%s1587 + $0x48] sm:$0xff]
  %v1598 = vld [vmem:[%s1587 + $0x50] sm:$0xff]
  %v1599 = vld [vmem:[%s1587 + $0x58] sm:$0xff]
  %v1600 = vld [vmem:[%s1587 + $0x60] sm:$0xff]
  %v1601 = vld [vmem:[%s1587 + $0x68] sm:$0xff]
  %v1602 = vld [vmem:[%s1587 + $0x70] sm:$0xff]
  %v1603 = vld [vmem:[%s1587 + $0x78] sm:$0xff]
  %1605 = vset.pattern.permute.xlu0 0
  %1606 = vperm.xlu0 %1605, %v1331
  %v1607 = vpop.permute.xlu0 %1606
  %1610 = vset.pattern.permute.xlu0 0
  %1611 = vperm.xlu0 %1610, %v1333
  %v1612 = vpop.permute.xlu0 %1611
  %1615 = vset.pattern.permute.xlu0 0
  %1616 = vperm.xlu0 %1615, %v1335
  %v1617 = vpop.permute.xlu0 %1616
  %1620 = vset.pattern.permute.xlu0 0
  %1621 = vperm.xlu0 %1620, %v1337
  %v1622 = vpop.permute.xlu0 %1621
  %1625 = vset.pattern.permute.xlu0 0
  %1626 = vperm.xlu0 %1625, %v1339
  %v1627 = vpop.permute.xlu0 %1626
  %1630 = vset.pattern.permute.xlu0 0
  %1631 = vperm.xlu0 %1630, %v1341
  %v1632 = vpop.permute.xlu0 %1631
  %1635 = vset.pattern.permute.xlu0 0
  %1636 = vperm.xlu0 %1635, %v1343
  %v1637 = vpop.permute.xlu0 %1636
  %1640 = vset.pattern.permute.xlu0 0
  %1641 = vperm.xlu0 %1640, %v1345
  %v1642 = vpop.permute.xlu0 %1641
  %1645 = vset.pattern.permute.xlu0 0
  %1646 = vperm.xlu0 %1645, %v1347
  %v1647 = vpop.permute.xlu0 %1646
  %1650 = vset.pattern.permute.xlu0 0
  %1651 = vperm.xlu0 %1650, %v1349
  %v1652 = vpop.permute.xlu0 %1651
  %1655 = vset.pattern.permute.xlu0 0
  %1656 = vperm.xlu0 %1655, %v1351
  %v1657 = vpop.permute.xlu0 %1656
  %1660 = vset.pattern.permute.xlu0 0
  %1661 = vperm.xlu0 %1660, %v1353
  %v1662 = vpop.permute.xlu0 %1661
  %1665 = vset.pattern.permute.xlu0 0
  %1666 = vperm.xlu0 %1665, %v1355
  %v1667 = vpop.permute.xlu0 %1666
  %1670 = vset.pattern.permute.xlu0 0
  %1671 = vperm.xlu0 %1670, %v1357
  %v1672 = vpop.permute.xlu0 %1671
  %1675 = vset.pattern.permute.xlu0 0
  %1676 = vperm.xlu0 %1675, %v1359
  %v1677 = vpop.permute.xlu0 %1676
  %1680 = vset.pattern.permute.xlu0 0
  %1681 = vperm.xlu0 %1680, %v1361
  %v1682 = vpop.permute.xlu0 %1681
  %v1684 = vmul.f32 %v1607, %v1588
  %v1685 = vmul.f32 %v1612, %v1589
  %v1686 = vmul.f32 %v1617, %v1590
  %v1687 = vmul.f32 %v1622, %v1591
  %v1688 = vmul.f32 %v1627, %v1592
  %v1689 = vmul.f32 %v1632, %v1593
  %v1690 = vmul.f32 %v1637, %v1594
  %v1691 = vmul.f32 %v1642, %v1595
  %v1692 = vmul.f32 %v1647, %v1596
  %v1693 = vmul.f32 %v1652, %v1597
  %v1694 = vmul.f32 %v1657, %v1598
  %v1695 = vmul.f32 %v1662, %v1599
  %v1696 = vmul.f32 %v1667, %v1600
  %v1697 = vmul.f32 %v1672, %v1601
  %v1698 = vmul.f32 %v1677, %v1602
  %v1699 = vmul.f32 %v1682, %v1603
  %v1700 = vpack.c.bf16 %v1461, %v1459
  %v1701 = vpack.c.bf16 %v1465, %v1463
  %v1702 = vpack.c.bf16 %v1469, %v1467
  %v1703 = vpack.c.bf16 %v1473, %v1471
  %v1704 = vpack.c.bf16 %v1477, %v1475
  %v1705 = vpack.c.bf16 %v1481, %v1479
  %v1706 = vpack.c.bf16 %v1485, %v1483
  %v1707 = vpack.c.bf16 %v1489, %v1487
  %1708 = vrot.lane.b32.xlu0 %v921, 120
  %v1709 = vpop.permute.xlu0 %1708
  %1710 = vrot.lane.b32.xlu0 %v922, 120
  %v1711 = vpop.permute.xlu0 %1710
  %1712 = vrot.lane.b32.xlu0 %v923, 120
  %v1713 = vpop.permute.xlu0 %1712
  %1714 = vrot.lane.b32.xlu0 %v924, 120
  %v1715 = vpop.permute.xlu0 %1714
  %1716 = vrot.lane.b32.xlu0 %v925, 120
  %v1717 = vpop.permute.xlu0 %1716
  %1718 = vrot.lane.b32.xlu0 %v926, 120
  %v1719 = vpop.permute.xlu0 %1718
  %1720 = vrot.lane.b32.xlu0 %v927, 120
  %v1721 = vpop.permute.xlu0 %1720
  %1722 = vrot.lane.b32.xlu0 %v928, 120
  %v1723 = vpop.permute.xlu0 %1722
  %1732 = vmatprep.subr.bf16.mxu0 0
  %1733 = vmatpush1.bf16.msra.mxu0 %v1723
  %1734 = vmatprep.subr.bf16.mxu0 0
  %1735 = vmatpush1.bf16.msra.mxu0 %v1721
  %1736 = vmatprep.subr.bf16.mxu0 0
  %1737 = vmatpush1.bf16.msra.mxu0 %v1719
  %1738 = vmatprep.subr.bf16.mxu0 0
  %1739 = vmatpush1.bf16.msra.mxu0 %v1717
  %1740 = vmatprep.subr.bf16.mxu0 0
  %1741 = vmatpush1.bf16.msra.mxu0 %v1715
  %1742 = vmatprep.subr.bf16.mxu0 0
  %1743 = vmatpush1.bf16.msra.mxu0 %v1713
  %1744 = vmatprep.subr.bf16.mxu0 0
  %1745 = vmatpush1.bf16.msra.mxu0 %v1711
  %1746 = vmatprep.subr.bf16.mxu0 0
  %1747 = vmatpush1.bf16.msra.mxu0 %v1709
  %1748 = vmatprep.subr.bf16.mxu0 0
  %1749 = vmatpush2.bf16.msra.mxu0 0
  %1750 = vmatprep.subr.bf16.mxu0 0
  %1751 = vmatpush2.bf16.msra.mxu0 0
  %1752 = vmatprep.subr.bf16.mxu0 0
  %1753 = vmatpush2.bf16.msra.mxu0 0
  %1754 = vmatprep.subr.bf16.mxu0 0
  %1755 = vmatpush2.bf16.msra.mxu0 0
  %1756 = vmatprep.subr.bf16.mxu0 0
  %1757 = vmatpush2.bf16.msra.mxu0 0
  %1758 = vmatprep.subr.bf16.mxu0 0
  %1759 = vmatpush2.bf16.msra.mxu0 0
  %1760 = vmatprep.subr.bf16.mxu0 0
  %1761 = vmatpush2.bf16.msra.mxu0 0
  %1762 = vmatprep.subr.bf16.mxu0 0
  %1763 = vmatpush2.bf16.msra.mxu0 0
  %1764 = vmatprep.mubr.bf16.mxu0 0
  %1765 = vmatmul.mubr.bf16.gmra.mxu0 %v1700
  %v1766 = vpop.f32.mrf.mxu0
  %v1767 = vadd.f32 0.0, %v1766
  %v1768 = vpop.f32.mrf.mxu0
  %v1769 = vpop.f32.mrf.mxu0
  %v1770 = vadd.f32 0.0, %v1769
  %v1771 = vpop.f32.mrf.mxu0
  %1772 = vmatprep.mubr.bf16.mxu0 0
  %1773 = vmatmul.mubr.bf16.gmra.mxu0 %v1701
  %v1774 = vpop.f32.mrf.mxu0
  %v1775 = vadd.f32 0.0, %v1774
  %v1776 = vpop.f32.mrf.mxu0
  %v1777 = vpop.f32.mrf.mxu0
  %v1778 = vadd.f32 0.0, %v1777
  %v1779 = vpop.f32.mrf.mxu0
  %1780 = vmatprep.mubr.bf16.mxu0 0
  %1781 = vmatmul.mubr.bf16.gmra.mxu0 %v1702
  %v1782 = vpop.f32.mrf.mxu0
  %v1783 = vadd.f32 0.0, %v1782
  %v1784 = vpop.f32.mrf.mxu0
  %v1785 = vpop.f32.mrf.mxu0
  %v1786 = vadd.f32 0.0, %v1785
  %v1787 = vpop.f32.mrf.mxu0
  %1788 = vmatprep.mubr.bf16.mxu0 0
  %1789 = vmatmul.mubr.bf16.gmra.mxu0 %v1703
  %v1790 = vpop.f32.mrf.mxu0
  %v1791 = vadd.f32 0.0, %v1790
  %v1792 = vpop.f32.mrf.mxu0
  %v1793 = vpop.f32.mrf.mxu0
  %v1794 = vadd.f32 0.0, %v1793
  %v1795 = vpop.f32.mrf.mxu0
  %1796 = vmatprep.mubr.bf16.mxu0 0
  %1797 = vmatmul.mubr.bf16.gmra.mxu0 %v1704
  %v1798 = vpop.f32.mrf.mxu0
  %v1799 = vadd.f32 0.0, %v1798
  %v1800 = vpop.f32.mrf.mxu0
  %v1801 = vpop.f32.mrf.mxu0
  %v1802 = vadd.f32 0.0, %v1801
  %v1803 = vpop.f32.mrf.mxu0
  %1804 = vmatprep.mubr.bf16.mxu0 0
  %1805 = vmatmul.mubr.bf16.gmra.mxu0 %v1705
  %v1806 = vpop.f32.mrf.mxu0
  %v1807 = vadd.f32 0.0, %v1806
  %v1808 = vpop.f32.mrf.mxu0
  %v1809 = vpop.f32.mrf.mxu0
  %v1810 = vadd.f32 0.0, %v1809
  %v1811 = vpop.f32.mrf.mxu0
  %1812 = vmatprep.mubr.bf16.mxu0 0
  %1813 = vmatmul.mubr.bf16.gmra.mxu0 %v1706
  %v1814 = vpop.f32.mrf.mxu0
  %v1815 = vadd.f32 0.0, %v1814
  %v1816 = vpop.f32.mrf.mxu0
  %v1817 = vpop.f32.mrf.mxu0
  %v1818 = vadd.f32 0.0, %v1817
  %v1819 = vpop.f32.mrf.mxu0
  %1820 = vmatprep.mubr.bf16.mxu0 0
  %1821 = vmatmul.mubr.bf16.gmra.mxu0 %v1707
  %v1822 = vpop.f32.mrf.mxu0
  %v1823 = vadd.f32 0.0, %v1822
  %v1824 = vpop.f32.mrf.mxu0
  %v1825 = vpop.f32.mrf.mxu0
  %v1826 = vadd.f32 0.0, %v1825
  %v1827 = vpop.f32.mrf.mxu0
  %1828 = vdwg.mxu0
  %v1829 = vadd.f32 %v1684, %v1767
  %v1830 = vadd.f32 %v1685, %v1770
  %v1831 = vadd.f32 %v1686, %v1775
  %v1832 = vadd.f32 %v1687, %v1778
  %v1833 = vadd.f32 %v1688, %v1783
  %v1834 = vadd.f32 %v1689, %v1786
  %v1835 = vadd.f32 %v1690, %v1791
  %v1836 = vadd.f32 %v1691, %v1794
  %v1837 = vadd.f32 %v1692, %v1799
  %v1838 = vadd.f32 %v1693, %v1802
  %v1839 = vadd.f32 %v1694, %v1807
  %v1840 = vadd.f32 %v1695, %v1810
  %v1841 = vadd.f32 %v1696, %v1815
  %v1842 = vadd.f32 %v1697, %v1818
  %v1843 = vadd.f32 %v1698, %v1823
  %v1844 = vadd.f32 %v1699, %v1826
  %1845 = vst.msk [vmem:[%s1587] sm:$0xff] %vm1050, %v1829
  %1846 = vst.msk [vmem:[%s1587 + $0x8] sm:$0xff] %vm1050, %v1830
  %1847 = vst.msk [vmem:[%s1587 + $0x10] sm:$0xff] %vm1050, %v1831
  %1848 = vst.msk [vmem:[%s1587 + $0x18] sm:$0xff] %vm1050, %v1832
  %1849 = vst.msk [vmem:[%s1587 + $0x20] sm:$0xff] %vm1050, %v1833
  %1850 = vst.msk [vmem:[%s1587 + $0x28] sm:$0xff] %vm1050, %v1834
  %1851 = vst.msk [vmem:[%s1587 + $0x30] sm:$0xff] %vm1050, %v1835
  %1852 = vst.msk [vmem:[%s1587 + $0x38] sm:$0xff] %vm1050, %v1836
  %1853 = vst.msk [vmem:[%s1587 + $0x40] sm:$0xff] %vm1050, %v1837
  %1854 = vst.msk [vmem:[%s1587 + $0x48] sm:$0xff] %vm1050, %v1838
  %1855 = vst.msk [vmem:[%s1587 + $0x50] sm:$0xff] %vm1050, %v1839
  %1856 = vst.msk [vmem:[%s1587 + $0x58] sm:$0xff] %vm1050, %v1840
  %1857 = vst.msk [vmem:[%s1587 + $0x60] sm:$0xff] %vm1050, %v1841
  %1858 = vst.msk [vmem:[%s1587 + $0x68] sm:$0xff] %vm1050, %v1842
  %1859 = vst.msk [vmem:[%s1587 + $0x70] sm:$0xff] %vm1050, %v1843
  %1860 = vst.msk [vmem:[%s1587 + $0x78] sm:$0xff] %vm1050, %v1844
  %1861 = vst.msk [vmem:[%s1249] sm:$0xff] %vm752, %v1298
  %1862 = vst.msk [vmem:[%s1249 + $0x8] sm:$0xff] %vm752, %v1299
  %1863 = vst.msk [vmem:[%s1249 + $0x10] sm:$0xff] %vm752, %v1300
  %1864 = vst.msk [vmem:[%s1249 + $0x18] sm:$0xff] %vm752, %v1301
  %1865 = vst.msk [vmem:[%s1249 + $0x20] sm:$0xff] %vm752, %v1302
  %1866 = vst.msk [vmem:[%s1249 + $0x28] sm:$0xff] %vm752, %v1303
  %1867 = vst.msk [vmem:[%s1249 + $0x30] sm:$0xff] %vm752, %v1304
  %1868 = vst.msk [vmem:[%s1249 + $0x38] sm:$0xff] %vm752, %v1305
  %1869 = vst.msk [vmem:[%s1249 + $0x40] sm:$0xff] %vm752, %v1306
  %1870 = vst.msk [vmem:[%s1249 + $0x48] sm:$0xff] %vm752, %v1307
  %1871 = vst.msk [vmem:[%s1249 + $0x50] sm:$0xff] %vm752, %v1308
  %1872 = vst.msk [vmem:[%s1249 + $0x58] sm:$0xff] %vm752, %v1309
  %1873 = vst.msk [vmem:[%s1249 + $0x60] sm:$0xff] %vm752, %v1310
  %1874 = vst.msk [vmem:[%s1249 + $0x68] sm:$0xff] %vm752, %v1311
  %1875 = vst.msk [vmem:[%s1249 + $0x70] sm:$0xff] %vm752, %v1312
  %1876 = vst.msk [vmem:[%s1249 + $0x78] sm:$0xff] %vm752, %v1313
  %v1877 = vld [vmem:[%s1 + $0x2] sm:$0x1]
  %1878 = vset.pattern.permute.xlu0 2
  %1879 = vperm.xlu0 %1878, %v219
  %v1880 = vpop.permute.xlu0 %1879
  %1882 = vset.pattern.permute.xlu0 2
  %1883 = vperm.xlu0 %1882, %v220
  %v1884 = vpop.permute.xlu0 %1883
  %1886 = vset.pattern.permute.xlu0 2
  %1887 = vperm.xlu0 %1886, %v221
  %v1888 = vpop.permute.xlu0 %1887
  %1890 = vset.pattern.permute.xlu0 2
  %1891 = vperm.xlu0 %1890, %v222
  %v1892 = vpop.permute.xlu0 %1891
  %1894 = vset.pattern.permute.xlu0 2
  %1895 = vperm.xlu0 %1894, %v223
  %v1896 = vpop.permute.xlu0 %1895
  %1898 = vset.pattern.permute.xlu0 2
  %1899 = vperm.xlu0 %1898, %v224
  %v1900 = vpop.permute.xlu0 %1899
  %1902 = vset.pattern.permute.xlu0 2
  %1903 = vperm.xlu0 %1902, %v225
  %v1904 = vpop.permute.xlu0 %1903
  %1906 = vset.pattern.permute.xlu0 2
  %1907 = vperm.xlu0 %1906, %v226
  %v1908 = vpop.permute.xlu0 %1907
  %1910 = vset.pattern.permute.xlu0 2
  %1911 = vperm.xlu0 %1910, %v227
  %v1912 = vpop.permute.xlu0 %1911
  %1914 = vset.pattern.permute.xlu0 2
  %1915 = vperm.xlu0 %1914, %v228
  %v1916 = vpop.permute.xlu0 %1915
  %1918 = vset.pattern.permute.xlu0 2
  %1919 = vperm.xlu0 %1918, %v229
  %v1920 = vpop.permute.xlu0 %1919
  %1922 = vset.pattern.permute.xlu0 2
  %1923 = vperm.xlu0 %1922, %v230
  %v1924 = vpop.permute.xlu0 %1923
  %1926 = vset.pattern.permute.xlu0 2
  %1927 = vperm.xlu0 %1926, %v231
  %v1928 = vpop.permute.xlu0 %1927
  %1930 = vset.pattern.permute.xlu0 2
  %1931 = vperm.xlu0 %1930, %v232
  %v1932 = vpop.permute.xlu0 %1931
  %1934 = vset.pattern.permute.xlu0 2
  %1935 = vperm.xlu0 %1934, %v233
  %v1936 = vpop.permute.xlu0 %1935
  %1938 = vset.pattern.permute.xlu0 2
  %1939 = vperm.xlu0 %1938, %v234
  %v1940 = vpop.permute.xlu0 %1939
  %v1942 = vlaneseq
  %v1943 = vshrl.u32 %v1942, 7
  %v1944 = vsub.s32 0, %v1943
  %v1945 = vrot.slane %v1877, %v1944
  %v1946 = vadd.f32 %v1880, %v1945
  %v1947 = vadd.f32 %v1884, %v1945
  %v1948 = vadd.f32 %v1888, %v1945
  %v1949 = vadd.f32 %v1892, %v1945
  %v1950 = vadd.f32 %v1896, %v1945
  %v1951 = vadd.f32 %v1900, %v1945
  %v1952 = vadd.f32 %v1904, %v1945
  %v1953 = vadd.f32 %v1908, %v1945
  %v1954 = vadd.f32 %v1912, %v1945
  %v1955 = vadd.f32 %v1916, %v1945
  %v1956 = vadd.f32 %v1920, %v1945
  %v1957 = vadd.f32 %v1924, %v1945
  %v1958 = vadd.f32 %v1928, %v1945
  %v1959 = vadd.f32 %v1932, %v1945
  %v1960 = vadd.f32 %v1936, %v1945
  %v1961 = vadd.f32 %v1940, %v1945
  %s1962 = scalar_lea.vmem %s3, 128
  %v1963 = vld [vmem:[%s1962] sm:$0xf]
  %v1964 = vld [vmem:[%s1962 + $0x4] sm:$0xf]
  %v1965 = vld [vmem:[%s1962 + $0x8] sm:$0xf]
  %v1966 = vld [vmem:[%s1962 + $0xc] sm:$0xf]
  %v1967 = vld [vmem:[%s1962 + $0x10] sm:$0xf]
  %v1968 = vld [vmem:[%s1962 + $0x14] sm:$0xf]
  %v1969 = vld [vmem:[%s1962 + $0x18] sm:$0xf]
  %v1970 = vld [vmem:[%s1962 + $0x1c] sm:$0xf]
  %v1971 = vld [vmem:[%s1962 + $0x20] sm:$0xf]
  %v1972 = vld [vmem:[%s1962 + $0x24] sm:$0xf]
  %v1973 = vld [vmem:[%s1962 + $0x28] sm:$0xf]
  %v1974 = vld [vmem:[%s1962 + $0x2c] sm:$0xf]
  %v1975 = vld [vmem:[%s1962 + $0x30] sm:$0xf]
  %v1976 = vld [vmem:[%s1962 + $0x34] sm:$0xf]
  %v1977 = vld [vmem:[%s1962 + $0x38] sm:$0xf]
  %v1978 = vld [vmem:[%s1962 + $0x3c] sm:$0xf]
  %v1979 = vunpack.c.l.bf16 %v1963
  %v1980 = vunpack.c.l.bf16 %v1964
  %v1981 = vunpack.c.l.bf16 %v1965
  %v1982 = vunpack.c.l.bf16 %v1966
  %v1983 = vunpack.c.l.bf16 %v1967
  %v1984 = vunpack.c.l.bf16 %v1968
  %v1985 = vunpack.c.l.bf16 %v1969
  %v1986 = vunpack.c.l.bf16 %v1970
  %v1987 = vunpack.c.l.bf16 %v1971
  %v1988 = vunpack.c.l.bf16 %v1972
  %v1989 = vunpack.c.l.bf16 %v1973
  %v1990 = vunpack.c.l.bf16 %v1974
  %v1991 = vunpack.c.l.bf16 %v1975
  %v1992 = vunpack.c.l.bf16 %v1976
  %v1993 = vunpack.c.l.bf16 %v1977
  %v1994 = vunpack.c.l.bf16 %v1978
  %v1995 = vadd.f32 %v1946, %v1979
  %v1996 = vadd.f32 %v1947, %v1980
  %v1997 = vadd.f32 %v1948, %v1981
  %v1998 = vadd.f32 %v1949, %v1982
  %v1999 = vadd.f32 %v1950, %v1983
  %v2000 = vadd.f32 %v1951, %v1984
  %v2001 = vadd.f32 %v1952, %v1985
  %v2002 = vadd.f32 %v1953, %v1986
  %v2003 = vadd.f32 %v1954, %v1987
  %v2004 = vadd.f32 %v1955, %v1988
  %v2005 = vadd.f32 %v1956, %v1989
  %v2006 = vadd.f32 %v1957, %v1990
  %v2007 = vadd.f32 %v1958, %v1991
  %v2008 = vadd.f32 %v1959, %v1992
  %v2009 = vadd.f32 %v1960, %v1993
  %v2010 = vadd.f32 %v1961, %v1994
  %v2011 = vmul.f32 %v1995, 0.2
  %v2012 = vmul.f32 %v1996, 0.2
  %v2013 = vmul.f32 %v1997, 0.2
  %v2014 = vmul.f32 %v1998, 0.2
  %v2015 = vmul.f32 %v1999, 0.2
  %v2016 = vmul.f32 %v2000, 0.2
  %v2017 = vmul.f32 %v2001, 0.2
  %v2018 = vmul.f32 %v2002, 0.2
  %v2019 = vmul.f32 %v2003, 0.2
  %v2020 = vmul.f32 %v2004, 0.2
  %v2021 = vmul.f32 %v2005, 0.2
  %v2022 = vmul.f32 %v2006, 0.2
  %v2023 = vmul.f32 %v2007, 0.2
  %v2024 = vmul.f32 %v2008, 0.2
  %v2025 = vmul.f32 %v2009, 0.2
  %v2026 = vmul.f32 %v2010, 0.2
  %v2027 = vmax.f32 %v1995, %v2011
  %v2028 = vmax.f32 %v1996, %v2012
  %v2029 = vmax.f32 %v1997, %v2013
  %v2030 = vmax.f32 %v1998, %v2014
  %v2031 = vmax.f32 %v1999, %v2015
  %v2032 = vmax.f32 %v2000, %v2016
  %v2033 = vmax.f32 %v2001, %v2017
  %v2034 = vmax.f32 %v2002, %v2018
  %v2035 = vmax.f32 %v2003, %v2019
  %v2036 = vmax.f32 %v2004, %v2020
  %v2037 = vmax.f32 %v2005, %v2021
  %v2038 = vmax.f32 %v2006, %v2022
  %v2039 = vmax.f32 %v2007, %v2023
  %v2040 = vmax.f32 %v2008, %v2024
  %v2041 = vmax.f32 %v2009, %v2025
  %v2042 = vmax.f32 %v2010, %v2026
  %s2043 = scalar_lea.vmem [#allocation2], 256
  %v2044 = vld [vmem:[%s2043] sm:$0xff]
  %v2045 = vld [vmem:[%s2043 + $0x8] sm:$0xff]
  %v2046 = vld [vmem:[%s2043 + $0x10] sm:$0xff]
  %v2047 = vld [vmem:[%s2043 + $0x18] sm:$0xff]
  %v2048 = vld [vmem:[%s2043 + $0x20] sm:$0xff]
  %v2049 = vld [vmem:[%s2043 + $0x28] sm:$0xff]
  %v2050 = vld [vmem:[%s2043 + $0x30] sm:$0xff]
  %v2051 = vld [vmem:[%s2043 + $0x38] sm:$0xff]
  %v2052 = vld [vmem:[%s2043 + $0x40] sm:$0xff]
  %v2053 = vld [vmem:[%s2043 + $0x48] sm:$0xff]
  %v2054 = vld [vmem:[%s2043 + $0x50] sm:$0xff]
  %v2055 = vld [vmem:[%s2043 + $0x58] sm:$0xff]
  %v2056 = vld [vmem:[%s2043 + $0x60] sm:$0xff]
  %v2057 = vld [vmem:[%s2043 + $0x68] sm:$0xff]
  %v2058 = vld [vmem:[%s2043 + $0x70] sm:$0xff]
  %v2059 = vld [vmem:[%s2043 + $0x78] sm:$0xff]
  %2060 = vmax.xlane.f32.xlu0 %v2027
  %v2061 = vpop.xlane.xlu0 %2060
  %2062 = vmax.xlane.f32.xlu0 %v2028
  %v2063 = vpop.xlane.xlu0 %2062
  %2064 = vmax.xlane.f32.xlu0 %v2029
  %v2065 = vpop.xlane.xlu0 %2064
  %2066 = vmax.xlane.f32.xlu0 %v2030
  %v2067 = vpop.xlane.xlu0 %2066
  %2068 = vmax.xlane.f32.xlu0 %v2031
  %v2069 = vpop.xlane.xlu0 %2068
  %2070 = vmax.xlane.f32.xlu0 %v2032
  %v2071 = vpop.xlane.xlu0 %2070
  %2072 = vmax.xlane.f32.xlu0 %v2033
  %v2073 = vpop.xlane.xlu0 %2072
  %2074 = vmax.xlane.f32.xlu0 %v2034
  %v2075 = vpop.xlane.xlu0 %2074
  %2076 = vmax.xlane.f32.xlu0 %v2035
  %v2077 = vpop.xlane.xlu0 %2076
  %2078 = vmax.xlane.f32.xlu0 %v2036
  %v2079 = vpop.xlane.xlu0 %2078
  %2080 = vmax.xlane.f32.xlu0 %v2037
  %v2081 = vpop.xlane.xlu0 %2080
  %2082 = vmax.xlane.f32.xlu0 %v2038
  %v2083 = vpop.xlane.xlu0 %2082
  %2084 = vmax.xlane.f32.xlu0 %v2039
  %v2085 = vpop.xlane.xlu0 %2084
  %2086 = vmax.xlane.f32.xlu0 %v2040
  %v2087 = vpop.xlane.xlu0 %2086
  %2088 = vmax.xlane.f32.xlu0 %v2041
  %v2089 = vpop.xlane.xlu0 %2088
  %2090 = vmax.xlane.f32.xlu0 %v2042
  %v2091 = vpop.xlane.xlu0 %2090
  %v2092 = vmax.f32 %v2044, %v2061
  %v2093 = vmax.f32 %v2045, %v2063
  %v2094 = vmax.f32 %v2046, %v2065
  %v2095 = vmax.f32 %v2047, %v2067
  %v2096 = vmax.f32 %v2048, %v2069
  %v2097 = vmax.f32 %v2049, %v2071
  %v2098 = vmax.f32 %v2050, %v2073
  %v2099 = vmax.f32 %v2051, %v2075
  %v2100 = vmax.f32 %v2052, %v2077
  %v2101 = vmax.f32 %v2053, %v2079
  %v2102 = vmax.f32 %v2054, %v2081
  %v2103 = vmax.f32 %v2055, %v2083
  %v2104 = vmax.f32 %v2056, %v2085
  %v2105 = vmax.f32 %v2057, %v2087
  %v2106 = vmax.f32 %v2058, %v2089
  %v2107 = vmax.f32 %v2059, %v2091
  %v2108 = vsub.f32 %v2044, %v2092
  %v2109 = vsub.f32 %v2045, %v2093
  %v2110 = vsub.f32 %v2046, %v2094
  %v2111 = vsub.f32 %v2047, %v2095
  %v2112 = vsub.f32 %v2048, %v2096
  %v2113 = vsub.f32 %v2049, %v2097
  %v2114 = vsub.f32 %v2050, %v2098
  %v2115 = vsub.f32 %v2051, %v2099
  %v2116 = vsub.f32 %v2052, %v2100
  %v2117 = vsub.f32 %v2053, %v2101
  %v2118 = vsub.f32 %v2054, %v2102
  %v2119 = vsub.f32 %v2055, %v2103
  %v2120 = vsub.f32 %v2056, %v2104
  %v2121 = vsub.f32 %v2057, %v2105
  %v2122 = vsub.f32 %v2058, %v2106
  %v2123 = vsub.f32 %v2059, %v2107
  %v2124 = vmul.f32 %v2108, 1.442695
  %v2125 = vpow.pop %v2124
  %v2126 = vmul.f32 %v2109, 1.442695
  %v2127 = vpow.pop %v2126
  %v2128 = vmul.f32 %v2110, 1.442695
  %v2129 = vpow.pop %v2128
  %v2130 = vmul.f32 %v2111, 1.442695
  %v2131 = vpow.pop %v2130
  %v2132 = vmul.f32 %v2112, 1.442695
  %v2133 = vpow.pop %v2132
  %v2134 = vmul.f32 %v2113, 1.442695
  %v2135 = vpow.pop %v2134
  %v2136 = vmul.f32 %v2114, 1.442695
  %v2137 = vpow.pop %v2136
  %v2138 = vmul.f32 %v2115, 1.442695
  %v2139 = vpow.pop %v2138
  %v2140 = vmul.f32 %v2116, 1.442695
  %v2141 = vpow.pop %v2140
  %v2142 = vmul.f32 %v2117, 1.442695
  %v2143 = vpow.pop %v2142
  %v2144 = vmul.f32 %v2118, 1.442695
  %v2145 = vpow.pop %v2144
  %v2146 = vmul.f32 %v2119, 1.442695
  %v2147 = vpow.pop %v2146
  %v2148 = vmul.f32 %v2120, 1.442695
  %v2149 = vpow.pop %v2148
  %v2150 = vmul.f32 %v2121, 1.442695
  %v2151 = vpow.pop %v2150
  %v2152 = vmul.f32 %v2122, 1.442695
  %v2153 = vpow.pop %v2152
  %v2154 = vmul.f32 %v2123, 1.442695
  %v2155 = vpow.pop %v2154
  %2157 = vset.pattern.permute.xlu0 0
  %2158 = vperm.xlu0 %2157, %v2092
  %v2159 = vpop.permute.xlu0 %2158
  %2162 = vset.pattern.permute.xlu0 0
  %2163 = vperm.xlu0 %2162, %v2093
  %v2164 = vpop.permute.xlu0 %2163
  %2167 = vset.pattern.permute.xlu0 0
  %2168 = vperm.xlu0 %2167, %v2094
  %v2169 = vpop.permute.xlu0 %2168
  %2172 = vset.pattern.permute.xlu0 0
  %2173 = vperm.xlu0 %2172, %v2095
  %v2174 = vpop.permute.xlu0 %2173
  %2177 = vset.pattern.permute.xlu0 0
  %2178 = vperm.xlu0 %2177, %v2096
  %v2179 = vpop.permute.xlu0 %2178
  %2182 = vset.pattern.permute.xlu0 0
  %2183 = vperm.xlu0 %2182, %v2097
  %v2184 = vpop.permute.xlu0 %2183
  %2187 = vset.pattern.permute.xlu0 0
  %2188 = vperm.xlu0 %2187, %v2098
  %v2189 = vpop.permute.xlu0 %2188
  %2192 = vset.pattern.permute.xlu0 0
  %2193 = vperm.xlu0 %2192, %v2099
  %v2194 = vpop.permute.xlu0 %2193
  %2197 = vset.pattern.permute.xlu0 0
  %2198 = vperm.xlu0 %2197, %v2100
  %v2199 = vpop.permute.xlu0 %2198
  %2202 = vset.pattern.permute.xlu0 0
  %2203 = vperm.xlu0 %2202, %v2101
  %v2204 = vpop.permute.xlu0 %2203
  %2207 = vset.pattern.permute.xlu0 0
  %2208 = vperm.xlu0 %2207, %v2102
  %v2209 = vpop.permute.xlu0 %2208
  %2212 = vset.pattern.permute.xlu0 0
  %2213 = vperm.xlu0 %2212, %v2103
  %v2214 = vpop.permute.xlu0 %2213
  %2217 = vset.pattern.permute.xlu0 0
  %2218 = vperm.xlu0 %2217, %v2104
  %v2219 = vpop.permute.xlu0 %2218
  %2222 = vset.pattern.permute.xlu0 0
  %2223 = vperm.xlu0 %2222, %v2105
  %v2224 = vpop.permute.xlu0 %2223
  %2227 = vset.pattern.permute.xlu0 0
  %2228 = vperm.xlu0 %2227, %v2106
  %v2229 = vpop.permute.xlu0 %2228
  %2232 = vset.pattern.permute.xlu0 0
  %2233 = vperm.xlu0 %2232, %v2107
  %v2234 = vpop.permute.xlu0 %2233
  %v2236 = vsub.f32 %v2027, %v2159
  %v2237 = vsub.f32 %v2028, %v2164
  %v2238 = vsub.f32 %v2029, %v2169
  %v2239 = vsub.f32 %v2030, %v2174
  %v2240 = vsub.f32 %v2031, %v2179
  %v2241 = vsub.f32 %v2032, %v2184
  %v2242 = vsub.f32 %v2033, %v2189
  %v2243 = vsub.f32 %v2034, %v2194
  %v2244 = vsub.f32 %v2035, %v2199
  %v2245 = vsub.f32 %v2036, %v2204
  %v2246 = vsub.f32 %v2037, %v2209
  %v2247 = vsub.f32 %v2038, %v2214
  %v2248 = vsub.f32 %v2039, %v2219
  %v2249 = vsub.f32 %v2040, %v2224
  %v2250 = vsub.f32 %v2041, %v2229
  %v2251 = vsub.f32 %v2042, %v2234
  %v2252 = vmul.f32 %v2236, 1.442695
  %v2253 = vpow.pop %v2252
  %v2254 = vmul.f32 %v2237, 1.442695
  %v2255 = vpow.pop %v2254
  %v2256 = vmul.f32 %v2238, 1.442695
  %v2257 = vpow.pop %v2256
  %v2258 = vmul.f32 %v2239, 1.442695
  %v2259 = vpow.pop %v2258
  %v2260 = vmul.f32 %v2240, 1.442695
  %v2261 = vpow.pop %v2260
  %v2262 = vmul.f32 %v2241, 1.442695
  %v2263 = vpow.pop %v2262
  %v2264 = vmul.f32 %v2242, 1.442695
  %v2265 = vpow.pop %v2264
  %v2266 = vmul.f32 %v2243, 1.442695
  %v2267 = vpow.pop %v2266
  %v2268 = vmul.f32 %v2244, 1.442695
  %v2269 = vpow.pop %v2268
  %v2270 = vmul.f32 %v2245, 1.442695
  %v2271 = vpow.pop %v2270
  %v2272 = vmul.f32 %v2246, 1.442695
  %v2273 = vpow.pop %v2272
  %v2274 = vmul.f32 %v2247, 1.442695
  %v2275 = vpow.pop %v2274
  %v2276 = vmul.f32 %v2248, 1.442695
  %v2277 = vpow.pop %v2276
  %v2278 = vmul.f32 %v2249, 1.442695
  %v2279 = vpow.pop %v2278
  %v2280 = vmul.f32 %v2250, 1.442695
  %v2281 = vpow.pop %v2280
  %v2282 = vmul.f32 %v2251, 1.442695
  %v2283 = vpow.pop %v2282
  %s2284 = scalar_lea.vmem [#allocation3], 256
  %v2285 = vld [vmem:[%s2284] sm:$0xff]
  %v2286 = vld [vmem:[%s2284 + $0x8] sm:$0xff]
  %v2287 = vld [vmem:[%s2284 + $0x10] sm:$0xff]
  %v2288 = vld [vmem:[%s2284 + $0x18] sm:$0xff]
  %v2289 = vld [vmem:[%s2284 + $0x20] sm:$0xff]
  %v2290 = vld [vmem:[%s2284 + $0x28] sm:$0xff]
  %v2291 = vld [vmem:[%s2284 + $0x30] sm:$0xff]
  %v2292 = vld [vmem:[%s2284 + $0x38] sm:$0xff]
  %v2293 = vld [vmem:[%s2284 + $0x40] sm:$0xff]
  %v2294 = vld [vmem:[%s2284 + $0x48] sm:$0xff]
  %v2295 = vld [vmem:[%s2284 + $0x50] sm:$0xff]
  %v2296 = vld [vmem:[%s2284 + $0x58] sm:$0xff]
  %v2297 = vld [vmem:[%s2284 + $0x60] sm:$0xff]
  %v2298 = vld [vmem:[%s2284 + $0x68] sm:$0xff]
  %v2299 = vld [vmem:[%s2284 + $0x70] sm:$0xff]
  %v2300 = vld [vmem:[%s2284 + $0x78] sm:$0xff]
  %v2301 = vmul.f32 %v2125, %v2285
  %v2302 = vmul.f32 %v2127, %v2286
  %v2303 = vmul.f32 %v2129, %v2287
  %v2304 = vmul.f32 %v2131, %v2288
  %v2305 = vmul.f32 %v2133, %v2289
  %v2306 = vmul.f32 %v2135, %v2290
  %v2307 = vmul.f32 %v2137, %v2291
  %v2308 = vmul.f32 %v2139, %v2292
  %v2309 = vmul.f32 %v2141, %v2293
  %v2310 = vmul.f32 %v2143, %v2294
  %v2311 = vmul.f32 %v2145, %v2295
  %v2312 = vmul.f32 %v2147, %v2296
  %v2313 = vmul.f32 %v2149, %v2297
  %v2314 = vmul.f32 %v2151, %v2298
  %v2315 = vmul.f32 %v2153, %v2299
  %v2316 = vmul.f32 %v2155, %v2300
  %2317 = vadd.xlane.f32.xlu0 %v2253
  %v2318 = vpop.xlane.xlu0 %2317
  %2319 = vadd.xlane.f32.xlu0 %v2255
  %v2320 = vpop.xlane.xlu0 %2319
  %2321 = vadd.xlane.f32.xlu0 %v2257
  %v2322 = vpop.xlane.xlu0 %2321
  %2323 = vadd.xlane.f32.xlu0 %v2259
  %v2324 = vpop.xlane.xlu0 %2323
  %2325 = vadd.xlane.f32.xlu0 %v2261
  %v2326 = vpop.xlane.xlu0 %2325
  %2327 = vadd.xlane.f32.xlu0 %v2263
  %v2328 = vpop.xlane.xlu0 %2327
  %2329 = vadd.xlane.f32.xlu0 %v2265
  %v2330 = vpop.xlane.xlu0 %2329
  %2331 = vadd.xlane.f32.xlu0 %v2267
  %v2332 = vpop.xlane.xlu0 %2331
  %2333 = vadd.xlane.f32.xlu0 %v2269
  %v2334 = vpop.xlane.xlu0 %2333
  %2335 = vadd.xlane.f32.xlu0 %v2271
  %v2336 = vpop.xlane.xlu0 %2335
  %2337 = vadd.xlane.f32.xlu0 %v2273
  %v2338 = vpop.xlane.xlu0 %2337
  %2339 = vadd.xlane.f32.xlu0 %v2275
  %v2340 = vpop.xlane.xlu0 %2339
  %2341 = vadd.xlane.f32.xlu0 %v2277
  %v2342 = vpop.xlane.xlu0 %2341
  %2343 = vadd.xlane.f32.xlu0 %v2279
  %v2344 = vpop.xlane.xlu0 %2343
  %2345 = vadd.xlane.f32.xlu0 %v2281
  %v2346 = vpop.xlane.xlu0 %2345
  %2347 = vadd.xlane.f32.xlu0 %v2283
  %v2348 = vpop.xlane.xlu0 %2347
  %v2349 = vadd.f32 %v2301, %v2318
  %v2350 = vadd.f32 %v2302, %v2320
  %v2351 = vadd.f32 %v2303, %v2322
  %v2352 = vadd.f32 %v2304, %v2324
  %v2353 = vadd.f32 %v2305, %v2326
  %v2354 = vadd.f32 %v2306, %v2328
  %v2355 = vadd.f32 %v2307, %v2330
  %v2356 = vadd.f32 %v2308, %v2332
  %v2357 = vadd.f32 %v2309, %v2334
  %v2358 = vadd.f32 %v2310, %v2336
  %v2359 = vadd.f32 %v2311, %v2338
  %v2360 = vadd.f32 %v2312, %v2340
  %v2361 = vadd.f32 %v2313, %v2342
  %v2362 = vadd.f32 %v2314, %v2344
  %v2363 = vadd.f32 %v2315, %v2346
  %v2364 = vadd.f32 %v2316, %v2348
  %2365 = vst.msk [vmem:[%s2284] sm:$0xff] %vm752, %v2349
  %2366 = vst.msk [vmem:[%s2284 + $0x8] sm:$0xff] %vm752, %v2350
  %2367 = vst.msk [vmem:[%s2284 + $0x10] sm:$0xff] %vm752, %v2351
  %2368 = vst.msk [vmem:[%s2284 + $0x18] sm:$0xff] %vm752, %v2352
  %2369 = vst.msk [vmem:[%s2284 + $0x20] sm:$0xff] %vm752, %v2353
  %2370 = vst.msk [vmem:[%s2284 + $0x28] sm:$0xff] %vm752, %v2354
  %2371 = vst.msk [vmem:[%s2284 + $0x30] sm:$0xff] %vm752, %v2355
  %2372 = vst.msk [vmem:[%s2284 + $0x38] sm:$0xff] %vm752, %v2356
  %2373 = vst.msk [vmem:[%s2284 + $0x40] sm:$0xff] %vm752, %v2357
  %2374 = vst.msk [vmem:[%s2284 + $0x48] sm:$0xff] %vm752, %v2358
  %2375 = vst.msk [vmem:[%s2284 + $0x50] sm:$0xff] %vm752, %v2359
  %2376 = vst.msk [vmem:[%s2284 + $0x58] sm:$0xff] %vm752, %v2360
  %2377 = vst.msk [vmem:[%s2284 + $0x60] sm:$0xff] %vm752, %v2361
  %2378 = vst.msk [vmem:[%s2284 + $0x68] sm:$0xff] %vm752, %v2362
  %2379 = vst.msk [vmem:[%s2284 + $0x70] sm:$0xff] %vm752, %v2363
  %2380 = vst.msk [vmem:[%s2284 + $0x78] sm:$0xff] %vm752, %v2364
  %s2381 = scalar_lea.vmem [#allocation4], 256
  %v2382 = vld [vmem:[%s2381] sm:$0xff]
  %v2383 = vld [vmem:[%s2381 + $0x8] sm:$0xff]
  %v2384 = vld [vmem:[%s2381 + $0x10] sm:$0xff]
  %v2385 = vld [vmem:[%s2381 + $0x18] sm:$0xff]
  %v2386 = vld [vmem:[%s2381 + $0x20] sm:$0xff]
  %v2387 = vld [vmem:[%s2381 + $0x28] sm:$0xff]
  %v2388 = vld [vmem:[%s2381 + $0x30] sm:$0xff]
  %v2389 = vld [vmem:[%s2381 + $0x38] sm:$0xff]
  %v2390 = vld [vmem:[%s2381 + $0x40] sm:$0xff]
  %v2391 = vld [vmem:[%s2381 + $0x48] sm:$0xff]
  %v2392 = vld [vmem:[%s2381 + $0x50] sm:$0xff]
  %v2393 = vld [vmem:[%s2381 + $0x58] sm:$0xff]
  %v2394 = vld [vmem:[%s2381 + $0x60] sm:$0xff]
  %v2395 = vld [vmem:[%s2381 + $0x68] sm:$0xff]
  %v2396 = vld [vmem:[%s2381 + $0x70] sm:$0xff]
  %v2397 = vld [vmem:[%s2381 + $0x78] sm:$0xff]
  %2399 = vset.pattern.permute.xlu0 0
  %2400 = vperm.xlu0 %2399, %v2125
  %v2401 = vpop.permute.xlu0 %2400
  %2404 = vset.pattern.permute.xlu0 0
  %2405 = vperm.xlu0 %2404, %v2127
  %v2406 = vpop.permute.xlu0 %2405
  %2409 = vset.pattern.permute.xlu0 0
  %2410 = vperm.xlu0 %2409, %v2129
  %v2411 = vpop.permute.xlu0 %2410
  %2414 = vset.pattern.permute.xlu0 0
  %2415 = vperm.xlu0 %2414, %v2131
  %v2416 = vpop.permute.xlu0 %2415
  %2419 = vset.pattern.permute.xlu0 0
  %2420 = vperm.xlu0 %2419, %v2133
  %v2421 = vpop.permute.xlu0 %2420
  %2424 = vset.pattern.permute.xlu0 0
  %2425 = vperm.xlu0 %2424, %v2135
  %v2426 = vpop.permute.xlu0 %2425
  %2429 = vset.pattern.permute.xlu0 0
  %2430 = vperm.xlu0 %2429, %v2137
  %v2431 = vpop.permute.xlu0 %2430
  %2434 = vset.pattern.permute.xlu0 0
  %2435 = vperm.xlu0 %2434, %v2139
  %v2436 = vpop.permute.xlu0 %2435
  %2439 = vset.pattern.permute.xlu0 0
  %2440 = vperm.xlu0 %2439, %v2141
  %v2441 = vpop.permute.xlu0 %2440
  %2444 = vset.pattern.permute.xlu0 0
  %2445 = vperm.xlu0 %2444, %v2143
  %v2446 = vpop.permute.xlu0 %2445
  %2449 = vset.pattern.permute.xlu0 0
  %2450 = vperm.xlu0 %2449, %v2145
  %v2451 = vpop.permute.xlu0 %2450
  %2454 = vset.pattern.permute.xlu0 0
  %2455 = vperm.xlu0 %2454, %v2147
  %v2456 = vpop.permute.xlu0 %2455
  %2459 = vset.pattern.permute.xlu0 0
  %2460 = vperm.xlu0 %2459, %v2149
  %v2461 = vpop.permute.xlu0 %2460
  %2464 = vset.pattern.permute.xlu0 0
  %2465 = vperm.xlu0 %2464, %v2151
  %v2466 = vpop.permute.xlu0 %2465
  %2469 = vset.pattern.permute.xlu0 0
  %2470 = vperm.xlu0 %2469, %v2153
  %v2471 = vpop.permute.xlu0 %2470
  %2474 = vset.pattern.permute.xlu0 0
  %2475 = vperm.xlu0 %2474, %v2155
  %v2476 = vpop.permute.xlu0 %2475
  %v2478 = vmul.f32 %v2401, %v2382
  %v2479 = vmul.f32 %v2406, %v2383
  %v2480 = vmul.f32 %v2411, %v2384
  %v2481 = vmul.f32 %v2416, %v2385
  %v2482 = vmul.f32 %v2421, %v2386
  %v2483 = vmul.f32 %v2426, %v2387
  %v2484 = vmul.f32 %v2431, %v2388
  %v2485 = vmul.f32 %v2436, %v2389
  %v2486 = vmul.f32 %v2441, %v2390
  %v2487 = vmul.f32 %v2446, %v2391
  %v2488 = vmul.f32 %v2451, %v2392
  %v2489 = vmul.f32 %v2456, %v2393
  %v2490 = vmul.f32 %v2461, %v2394
  %v2491 = vmul.f32 %v2466, %v2395
  %v2492 = vmul.f32 %v2471, %v2396
  %v2493 = vmul.f32 %v2476, %v2397
  %v2494 = vpack.c.bf16 %v2255, %v2253
  %v2495 = vpack.c.bf16 %v2259, %v2257
  %v2496 = vpack.c.bf16 %v2263, %v2261
  %v2497 = vpack.c.bf16 %v2267, %v2265
  %v2498 = vpack.c.bf16 %v2271, %v2269
  %v2499 = vpack.c.bf16 %v2275, %v2273
  %v2500 = vpack.c.bf16 %v2279, %v2277
  %v2501 = vpack.c.bf16 %v2283, %v2281
  %2502 = vrot.lane.b32.xlu0 %v921, 112
  %v2503 = vpop.permute.xlu0 %2502
  %2504 = vrot.lane.b32.xlu0 %v922, 112
  %v2505 = vpop.permute.xlu0 %2504
  %2506 = vrot.lane.b32.xlu0 %v923, 112
  %v2507 = vpop.permute.xlu0 %2506
  %2508 = vrot.lane.b32.xlu0 %v924, 112
  %v2509 = vpop.permute.xlu0 %2508
  %2510 = vrot.lane.b32.xlu0 %v925, 112
  %v2511 = vpop.permute.xlu0 %2510
  %2512 = vrot.lane.b32.xlu0 %v926, 112
  %v2513 = vpop.permute.xlu0 %2512
  %2514 = vrot.lane.b32.xlu0 %v927, 112
  %v2515 = vpop.permute.xlu0 %2514
  %2516 = vrot.lane.b32.xlu0 %v928, 112
  %v2517 = vpop.permute.xlu0 %2516
  %2526 = vmatprep.subr.bf16.mxu0 0
  %2527 = vmatpush1.bf16.msra.mxu0 %v2517
  %2528 = vmatprep.subr.bf16.mxu0 0
  %2529 = vmatpush1.bf16.msra.mxu0 %v2515
  %2530 = vmatprep.subr.bf16.mxu0 0
  %2531 = vmatpush1.bf16.msra.mxu0 %v2513
  %2532 = vmatprep.subr.bf16.mxu0 0
  %2533 = vmatpush1.bf16.msra.mxu0 %v2511
  %2534 = vmatprep.subr.bf16.mxu0 0
  %2535 = vmatpush1.bf16.msra.mxu0 %v2509
  %2536 = vmatprep.subr.bf16.mxu0 0
  %2537 = vmatpush1.bf16.msra.mxu0 %v2507
  %2538 = vmatprep.subr.bf16.mxu0 0
  %2539 = vmatpush1.bf16.msra.mxu0 %v2505
  %2540 = vmatprep.subr.bf16.mxu0 0
  %2541 = vmatpush1.bf16.msra.mxu0 %v2503
  %2542 = vmatprep.subr.bf16.mxu0 0
  %2543 = vmatpush2.bf16.msra.mxu0 0
  %2544 = vmatprep.subr.bf16.mxu0 0
  %2545 = vmatpush2.bf16.msra.mxu0 0
  %2546 = vmatprep.subr.bf16.mxu0 0
  %2547 = vmatpush2.bf16.msra.mxu0 0
  %2548 = vmatprep.subr.bf16.mxu0 0
  %2549 = vmatpush2.bf16.msra.mxu0 0
  %2550 = vmatprep.subr.bf16.mxu0 0
  %2551 = vmatpush2.bf16.msra.mxu0 0
  %2552 = vmatprep.subr.bf16.mxu0 0
  %2553 = vmatpush2.bf16.msra.mxu0 0
  %2554 = vmatprep.subr.bf16.mxu0 0
  %2555 = vmatpush2.bf16.msra.mxu0 0
  %2556 = vmatprep.subr.bf16.mxu0 0
  %2557 = vmatpush2.bf16.msra.mxu0 0
  %2558 = vmatprep.mubr.bf16.mxu0 0
  %2559 = vmatmul.mubr.bf16.gmra.mxu0 %v2494
  %v2560 = vpop.f32.mrf.mxu0
  %v2561 = vadd.f32 0.0, %v2560
  %v2562 = vpop.f32.mrf.mxu0
  %v2563 = vpop.f32.mrf.mxu0
  %v2564 = vadd.f32 0.0, %v2563
  %v2565 = vpop.f32.mrf.mxu0
  %2566 = vmatprep.mubr.bf16.mxu0 0
  %2567 = vmatmul.mubr.bf16.gmra.mxu0 %v2495
  %v2568 = vpop.f32.mrf.mxu0
  %v2569 = vadd.f32 0.0, %v2568
  %v2570 = vpop.f32.mrf.mxu0
  %v2571 = vpop.f32.mrf.mxu0
  %v2572 = vadd.f32 0.0, %v2571
  %v2573 = vpop.f32.mrf.mxu0
  %2574 = vmatprep.mubr.bf16.mxu0 0
  %2575 = vmatmul.mubr.bf16.gmra.mxu0 %v2496
  %v2576 = vpop.f32.mrf.mxu0
  %v2577 = vadd.f32 0.0, %v2576
  %v2578 = vpop.f32.mrf.mxu0
  %v2579 = vpop.f32.mrf.mxu0
  %v2580 = vadd.f32 0.0, %v2579
  %v2581 = vpop.f32.mrf.mxu0
  %2582 = vmatprep.mubr.bf16.mxu0 0
  %2583 = vmatmul.mubr.bf16.gmra.mxu0 %v2497
  %v2584 = vpop.f32.mrf.mxu0
  %v2585 = vadd.f32 0.0, %v2584
  %v2586 = vpop.f32.mrf.mxu0
  %v2587 = vpop.f32.mrf.mxu0
  %v2588 = vadd.f32 0.0, %v2587
  %v2589 = vpop.f32.mrf.mxu0
  %2590 = vmatprep.mubr.bf16.mxu0 0
  %2591 = vmatmul.mubr.bf16.gmra.mxu0 %v2498
  %v2592 = vpop.f32.mrf.mxu0
  %v2593 = vadd.f32 0.0, %v2592
  %v2594 = vpop.f32.mrf.mxu0
  %v2595 = vpop.f32.mrf.mxu0
  %v2596 = vadd.f32 0.0, %v2595
  %v2597 = vpop.f32.mrf.mxu0
  %2598 = vmatprep.mubr.bf16.mxu0 0
  %2599 = vmatmul.mubr.bf16.gmra.mxu0 %v2499
  %v2600 = vpop.f32.mrf.mxu0
  %v2601 = vadd.f32 0.0, %v2600
  %v2602 = vpop.f32.mrf.mxu0
  %v2603 = vpop.f32.mrf.mxu0
  %v2604 = vadd.f32 0.0, %v2603
  %v2605 = vpop.f32.mrf.mxu0
  %2606 = vmatprep.mubr.bf16.mxu0 0
  %2607 = vmatmul.mubr.bf16.gmra.mxu0 %v2500
  %v2608 = vpop.f32.mrf.mxu0
  %v2609 = vadd.f32 0.0, %v2608
  %v2610 = vpop.f32.mrf.mxu0
  %v2611 = vpop.f32.mrf.mxu0
  %v2612 = vadd.f32 0.0, %v2611
  %v2613 = vpop.f32.mrf.mxu0
  %2614 = vmatprep.mubr.bf16.mxu0 0
  %2615 = vmatmul.mubr.bf16.gmra.mxu0 %v2501
  %v2616 = vpop.f32.mrf.mxu0
  %v2617 = vadd.f32 0.0, %v2616
  %v2618 = vpop.f32.mrf.mxu0
  %v2619 = vpop.f32.mrf.mxu0
  %v2620 = vadd.f32 0.0, %v2619
  %v2621 = vpop.f32.mrf.mxu0
  %2622 = vdwg.mxu0
  %v2623 = vadd.f32 %v2478, %v2561
  %v2624 = vadd.f32 %v2479, %v2564
  %v2625 = vadd.f32 %v2480, %v2569
  %v2626 = vadd.f32 %v2481, %v2572
  %v2627 = vadd.f32 %v2482, %v2577
  %v2628 = vadd.f32 %v2483, %v2580
  %v2629 = vadd.f32 %v2484, %v2585
  %v2630 = vadd.f32 %v2485, %v2588
  %v2631 = vadd.f32 %v2486, %v2593
  %v2632 = vadd.f32 %v2487, %v2596
  %v2633 = vadd.f32 %v2488, %v2601
  %v2634 = vadd.f32 %v2489, %v2604
  %v2635 = vadd.f32 %v2490, %v2609
  %v2636 = vadd.f32 %v2491, %v2612
  %v2637 = vadd.f32 %v2492, %v2617
  %v2638 = vadd.f32 %v2493, %v2620
  %2639 = vst.msk [vmem:[%s2381] sm:$0xff] %vm1050, %v2623
  %2640 = vst.msk [vmem:[%s2381 + $0x8] sm:$0xff] %vm1050, %v2624
  %2641 = vst.msk [vmem:[%s2381 + $0x10] sm:$0xff] %vm1050, %v2625
  %2642 = vst.msk [vmem:[%s2381 + $0x18] sm:$0xff] %vm1050, %v2626
  %2643 = vst.msk [vmem:[%s2381 + $0x20] sm:$0xff] %vm1050, %v2627
  %2644 = vst.msk [vmem:[%s2381 + $0x28] sm:$0xff] %vm1050, %v2628
  %2645 = vst.msk [vmem:[%s2381 + $0x30] sm:$0xff] %vm1050, %v2629
  %2646 = vst.msk [vmem:[%s2381 + $0x38] sm:$0xff] %vm1050, %v2630
  %2647 = vst.msk [vmem:[%s2381 + $0x40] sm:$0xff] %vm1050, %v2631
  %2648 = vst.msk [vmem:[%s2381 + $0x48] sm:$0xff] %vm1050, %v2632
  %2649 = vst.msk [vmem:[%s2381 + $0x50] sm:$0xff] %vm1050, %v2633
  %2650 = vst.msk [vmem:[%s2381 + $0x58] sm:$0xff] %vm1050, %v2634
  %2651 = vst.msk [vmem:[%s2381 + $0x60] sm:$0xff] %vm1050, %v2635
  %2652 = vst.msk [vmem:[%s2381 + $0x68] sm:$0xff] %vm1050, %v2636
  %2653 = vst.msk [vmem:[%s2381 + $0x70] sm:$0xff] %vm1050, %v2637
  %2654 = vst.msk [vmem:[%s2381 + $0x78] sm:$0xff] %vm1050, %v2638
  %2655 = vst.msk [vmem:[%s2043] sm:$0xff] %vm752, %v2092
  %2656 = vst.msk [vmem:[%s2043 + $0x8] sm:$0xff] %vm752, %v2093
  %2657 = vst.msk [vmem:[%s2043 + $0x10] sm:$0xff] %vm752, %v2094
  %2658 = vst.msk [vmem:[%s2043 + $0x18] sm:$0xff] %vm752, %v2095
  %2659 = vst.msk [vmem:[%s2043 + $0x20] sm:$0xff] %vm752, %v2096
  %2660 = vst.msk [vmem:[%s2043 + $0x28] sm:$0xff] %vm752, %v2097
  %2661 = vst.msk [vmem:[%s2043 + $0x30] sm:$0xff] %vm752, %v2098
  %2662 = vst.msk [vmem:[%s2043 + $0x38] sm:$0xff] %vm752, %v2099
  %2663 = vst.msk [vmem:[%s2043 + $0x40] sm:$0xff] %vm752, %v2100
  %2664 = vst.msk [vmem:[%s2043 + $0x48] sm:$0xff] %vm752, %v2101
  %2665 = vst.msk [vmem:[%s2043 + $0x50] sm:$0xff] %vm752, %v2102
  %2666 = vst.msk [vmem:[%s2043 + $0x58] sm:$0xff] %vm752, %v2103
  %2667 = vst.msk [vmem:[%s2043 + $0x60] sm:$0xff] %vm752, %v2104
  %2668 = vst.msk [vmem:[%s2043 + $0x68] sm:$0xff] %vm752, %v2105
  %2669 = vst.msk [vmem:[%s2043 + $0x70] sm:$0xff] %vm752, %v2106
  %2670 = vst.msk [vmem:[%s2043 + $0x78] sm:$0xff] %vm752, %v2107
  %v2671 = vld [vmem:[%s1 + $0x3] sm:$0x1]
  %2672 = vset.pattern.permute.xlu0 3
  %2673 = vperm.xlu0 %2672, %v219
  %v2674 = vpop.permute.xlu0 %2673
  %2676 = vset.pattern.permute.xlu0 3
  %2677 = vperm.xlu0 %2676, %v220
  %v2678 = vpop.permute.xlu0 %2677
  %2680 = vset.pattern.permute.xlu0 3
  %2681 = vperm.xlu0 %2680, %v221
  %v2682 = vpop.permute.xlu0 %2681
  %2684 = vset.pattern.permute.xlu0 3
  %2685 = vperm.xlu0 %2684, %v222
  %v2686 = vpop.permute.xlu0 %2685
  %2688 = vset.pattern.permute.xlu0 3
  %2689 = vperm.xlu0 %2688, %v223
  %v2690 = vpop.permute.xlu0 %2689
  %2692 = vset.pattern.permute.xlu0 3
  %2693 = vperm.xlu0 %2692, %v224
  %v2694 = vpop.permute.xlu0 %2693
  %2696 = vset.pattern.permute.xlu0 3
  %2697 = vperm.xlu0 %2696, %v225
  %v2698 = vpop.permute.xlu0 %2697
  %2700 = vset.pattern.permute.xlu0 3
  %2701 = vperm.xlu0 %2700, %v226
  %v2702 = vpop.permute.xlu0 %2701
  %2704 = vset.pattern.permute.xlu0 3
  %2705 = vperm.xlu0 %2704, %v227
  %v2706 = vpop.permute.xlu0 %2705
  %2708 = vset.pattern.permute.xlu0 3
  %2709 = vperm.xlu0 %2708, %v228
  %v2710 = vpop.permute.xlu0 %2709
  %2712 = vset.pattern.permute.xlu0 3
  %2713 = vperm.xlu0 %2712, %v229
  %v2714 = vpop.permute.xlu0 %2713
  %2716 = vset.pattern.permute.xlu0 3
  %2717 = vperm.xlu0 %2716, %v230
  %v2718 = vpop.permute.xlu0 %2717
  %2720 = vset.pattern.permute.xlu0 3
  %2721 = vperm.xlu0 %2720, %v231
  %v2722 = vpop.permute.xlu0 %2721
  %2724 = vset.pattern.permute.xlu0 3
  %2725 = vperm.xlu0 %2724, %v232
  %v2726 = vpop.permute.xlu0 %2725
  %2728 = vset.pattern.permute.xlu0 3
  %2729 = vperm.xlu0 %2728, %v233
  %v2730 = vpop.permute.xlu0 %2729
  %2732 = vset.pattern.permute.xlu0 3
  %2733 = vperm.xlu0 %2732, %v234
  %v2734 = vpop.permute.xlu0 %2733
  %v2736 = vlaneseq
  %v2737 = vshrl.u32 %v2736, 7
  %v2738 = vsub.s32 0, %v2737
  %v2739 = vrot.slane %v2671, %v2738
  %v2740 = vadd.f32 %v2674, %v2739
  %v2741 = vadd.f32 %v2678, %v2739
  %v2742 = vadd.f32 %v2682, %v2739
  %v2743 = vadd.f32 %v2686, %v2739
  %v2744 = vadd.f32 %v2690, %v2739
  %v2745 = vadd.f32 %v2694, %v2739
  %v2746 = vadd.f32 %v2698, %v2739
  %v2747 = vadd.f32 %v2702, %v2739
  %v2748 = vadd.f32 %v2706, %v2739
  %v2749 = vadd.f32 %v2710, %v2739
  %v2750 = vadd.f32 %v2714, %v2739
  %v2751 = vadd.f32 %v2718, %v2739
  %v2752 = vadd.f32 %v2722, %v2739
  %v2753 = vadd.f32 %v2726, %v2739
  %v2754 = vadd.f32 %v2730, %v2739
  %v2755 = vadd.f32 %v2734, %v2739
  %s2756 = scalar_lea.vmem %s3, 192
  %v2757 = vld [vmem:[%s2756] sm:$0xf]
  %v2758 = vld [vmem:[%s2756 + $0x4] sm:$0xf]
  %v2759 = vld [vmem:[%s2756 + $0x8] sm:$0xf]
  %v2760 = vld [vmem:[%s2756 + $0xc] sm:$0xf]
  %v2761 = vld [vmem:[%s2756 + $0x10] sm:$0xf]
  %v2762 = vld [vmem:[%s2756 + $0x14] sm:$0xf]
  %v2763 = vld [vmem:[%s2756 + $0x18] sm:$0xf]
  %v2764 = vld [vmem:[%s2756 + $0x1c] sm:$0xf]
  %v2765 = vld [vmem:[%s2756 + $0x20] sm:$0xf]
  %v2766 = vld [vmem:[%s2756 + $0x24] sm:$0xf]
  %v2767 = vld [vmem:[%s2756 + $0x28] sm:$0xf]
  %v2768 = vld [vmem:[%s2756 + $0x2c] sm:$0xf]
  %v2769 = vld [vmem:[%s2756 + $0x30] sm:$0xf]
  %v2770 = vld [vmem:[%s2756 + $0x34] sm:$0xf]
  %v2771 = vld [vmem:[%s2756 + $0x38] sm:$0xf]
  %v2772 = vld [vmem:[%s2756 + $0x3c] sm:$0xf]
  %v2773 = vunpack.c.l.bf16 %v2757
  %v2774 = vunpack.c.l.bf16 %v2758
  %v2775 = vunpack.c.l.bf16 %v2759
  %v2776 = vunpack.c.l.bf16 %v2760
  %v2777 = vunpack.c.l.bf16 %v2761
  %v2778 = vunpack.c.l.bf16 %v2762
  %v2779 = vunpack.c.l.bf16 %v2763
  %v2780 = vunpack.c.l.bf16 %v2764
  %v2781 = vunpack.c.l.bf16 %v2765
  %v2782 = vunpack.c.l.bf16 %v2766
  %v2783 = vunpack.c.l.bf16 %v2767
  %v2784 = vunpack.c.l.bf16 %v2768
  %v2785 = vunpack.c.l.bf16 %v2769
  %v2786 = vunpack.c.l.bf16 %v2770
  %v2787 = vunpack.c.l.bf16 %v2771
  %v2788 = vunpack.c.l.bf16 %v2772
  %v2789 = vadd.f32 %v2740, %v2773
  %v2790 = vadd.f32 %v2741, %v2774
  %v2791 = vadd.f32 %v2742, %v2775
  %v2792 = vadd.f32 %v2743, %v2776
  %v2793 = vadd.f32 %v2744, %v2777
  %v2794 = vadd.f32 %v2745, %v2778
  %v2795 = vadd.f32 %v2746, %v2779
  %v2796 = vadd.f32 %v2747, %v2780
  %v2797 = vadd.f32 %v2748, %v2781
  %v2798 = vadd.f32 %v2749, %v2782
  %v2799 = vadd.f32 %v2750, %v2783
  %v2800 = vadd.f32 %v2751, %v2784
  %v2801 = vadd.f32 %v2752, %v2785
  %v2802 = vadd.f32 %v2753, %v2786
  %v2803 = vadd.f32 %v2754, %v2787
  %v2804 = vadd.f32 %v2755, %v2788
  %v2805 = vmul.f32 %v2789, 0.2
  %v2806 = vmul.f32 %v2790, 0.2
  %v2807 = vmul.f32 %v2791, 0.2
  %v2808 = vmul.f32 %v2792, 0.2
  %v2809 = vmul.f32 %v2793, 0.2
  %v2810 = vmul.f32 %v2794, 0.2
  %v2811 = vmul.f32 %v2795, 0.2
  %v2812 = vmul.f32 %v2796, 0.2
  %v2813 = vmul.f32 %v2797, 0.2
  %v2814 = vmul.f32 %v2798, 0.2
  %v2815 = vmul.f32 %v2799, 0.2
  %v2816 = vmul.f32 %v2800, 0.2
  %v2817 = vmul.f32 %v2801, 0.2
  %v2818 = vmul.f32 %v2802, 0.2
  %v2819 = vmul.f32 %v2803, 0.2
  %v2820 = vmul.f32 %v2804, 0.2
  %v2821 = vmax.f32 %v2789, %v2805
  %v2822 = vmax.f32 %v2790, %v2806
  %v2823 = vmax.f32 %v2791, %v2807
  %v2824 = vmax.f32 %v2792, %v2808
  %v2825 = vmax.f32 %v2793, %v2809
  %v2826 = vmax.f32 %v2794, %v2810
  %v2827 = vmax.f32 %v2795, %v2811
  %v2828 = vmax.f32 %v2796, %v2812
  %v2829 = vmax.f32 %v2797, %v2813
  %v2830 = vmax.f32 %v2798, %v2814
  %v2831 = vmax.f32 %v2799, %v2815
  %v2832 = vmax.f32 %v2800, %v2816
  %v2833 = vmax.f32 %v2801, %v2817
  %v2834 = vmax.f32 %v2802, %v2818
  %v2835 = vmax.f32 %v2803, %v2819
  %v2836 = vmax.f32 %v2804, %v2820
  %s2837 = scalar_lea.vmem [#allocation2], 384
  %v2838 = vld [vmem:[%s2837] sm:$0xff]
  %v2839 = vld [vmem:[%s2837 + $0x8] sm:$0xff]
  %v2840 = vld [vmem:[%s2837 + $0x10] sm:$0xff]
  %v2841 = vld [vmem:[%s2837 + $0x18] sm:$0xff]
  %v2842 = vld [vmem:[%s2837 + $0x20] sm:$0xff]
  %v2843 = vld [vmem:[%s2837 + $0x28] sm:$0xff]
  %v2844 = vld [vmem:[%s2837 + $0x30] sm:$0xff]
  %v2845 = vld [vmem:[%s2837 + $0x38] sm:$0xff]
  %v2846 = vld [vmem:[%s2837 + $0x40] sm:$0xff]
  %v2847 = vld [vmem:[%s2837 + $0x48] sm:$0xff]
  %v2848 = vld [vmem:[%s2837 + $0x50] sm:$0xff]
  %v2849 = vld [vmem:[%s2837 + $0x58] sm:$0xff]
  %v2850 = vld [vmem:[%s2837 + $0x60] sm:$0xff]
  %v2851 = vld [vmem:[%s2837 + $0x68] sm:$0xff]
  %v2852 = vld [vmem:[%s2837 + $0x70] sm:$0xff]
  %v2853 = vld [vmem:[%s2837 + $0x78] sm:$0xff]
  %2854 = vmax.xlane.f32.xlu0 %v2821
  %v2855 = vpop.xlane.xlu0 %2854
  %2856 = vmax.xlane.f32.xlu0 %v2822
  %v2857 = vpop.xlane.xlu0 %2856
  %2858 = vmax.xlane.f32.xlu0 %v2823
  %v2859 = vpop.xlane.xlu0 %2858
  %2860 = vmax.xlane.f32.xlu0 %v2824
  %v2861 = vpop.xlane.xlu0 %2860
  %2862 = vmax.xlane.f32.xlu0 %v2825
  %v2863 = vpop.xlane.xlu0 %2862
  %2864 = vmax.xlane.f32.xlu0 %v2826
  %v2865 = vpop.xlane.xlu0 %2864
  %2866 = vmax.xlane.f32.xlu0 %v2827
  %v2867 = vpop.xlane.xlu0 %2866
  %2868 = vmax.xlane.f32.xlu0 %v2828
  %v2869 = vpop.xlane.xlu0 %2868
  %2870 = vmax.xlane.f32.xlu0 %v2829
  %v2871 = vpop.xlane.xlu0 %2870
  %2872 = vmax.xlane.f32.xlu0 %v2830
  %v2873 = vpop.xlane.xlu0 %2872
  %2874 = vmax.xlane.f32.xlu0 %v2831
  %v2875 = vpop.xlane.xlu0 %2874
  %2876 = vmax.xlane.f32.xlu0 %v2832
  %v2877 = vpop.xlane.xlu0 %2876
  %2878 = vmax.xlane.f32.xlu0 %v2833
  %v2879 = vpop.xlane.xlu0 %2878
  %2880 = vmax.xlane.f32.xlu0 %v2834
  %v2881 = vpop.xlane.xlu0 %2880
  %2882 = vmax.xlane.f32.xlu0 %v2835
  %v2883 = vpop.xlane.xlu0 %2882
  %2884 = vmax.xlane.f32.xlu0 %v2836
  %v2885 = vpop.xlane.xlu0 %2884
  %v2886 = vmax.f32 %v2838, %v2855
  %v2887 = vmax.f32 %v2839, %v2857
  %v2888 = vmax.f32 %v2840, %v2859
  %v2889 = vmax.f32 %v2841, %v2861
  %v2890 = vmax.f32 %v2842, %v2863
  %v2891 = vmax.f32 %v2843, %v2865
  %v2892 = vmax.f32 %v2844, %v2867
  %v2893 = vmax.f32 %v2845, %v2869
  %v2894 = vmax.f32 %v2846, %v2871
  %v2895 = vmax.f32 %v2847, %v2873
  %v2896 = vmax.f32 %v2848, %v2875
  %v2897 = vmax.f32 %v2849, %v2877
  %v2898 = vmax.f32 %v2850, %v2879
  %v2899 = vmax.f32 %v2851, %v2881
  %v2900 = vmax.f32 %v2852, %v2883
  %v2901 = vmax.f32 %v2853, %v2885
  %v2902 = vsub.f32 %v2838, %v2886
  %v2903 = vsub.f32 %v2839, %v2887
  %v2904 = vsub.f32 %v2840, %v2888
  %v2905 = vsub.f32 %v2841, %v2889
  %v2906 = vsub.f32 %v2842, %v2890
  %v2907 = vsub.f32 %v2843, %v2891
  %v2908 = vsub.f32 %v2844, %v2892
  %v2909 = vsub.f32 %v2845, %v2893
  %v2910 = vsub.f32 %v2846, %v2894
  %v2911 = vsub.f32 %v2847, %v2895
  %v2912 = vsub.f32 %v2848, %v2896
  %v2913 = vsub.f32 %v2849, %v2897
  %v2914 = vsub.f32 %v2850, %v2898
  %v2915 = vsub.f32 %v2851, %v2899
  %v2916 = vsub.f32 %v2852, %v2900
  %v2917 = vsub.f32 %v2853, %v2901
  %v2918 = vmul.f32 %v2902, 1.442695
  %v2919 = vpow.pop %v2918
  %v2920 = vmul.f32 %v2903, 1.442695
  %v2921 = vpow.pop %v2920
  %v2922 = vmul.f32 %v2904, 1.442695
  %v2923 = vpow.pop %v2922
  %v2924 = vmul.f32 %v2905, 1.442695
  %v2925 = vpow.pop %v2924
  %v2926 = vmul.f32 %v2906, 1.442695
  %v2927 = vpow.pop %v2926
  %v2928 = vmul.f32 %v2907, 1.442695
  %v2929 = vpow.pop %v2928
  %v2930 = vmul.f32 %v2908, 1.442695
  %v2931 = vpow.pop %v2930
  %v2932 = vmul.f32 %v2909, 1.442695
  %v2933 = vpow.pop %v2932
  %v2934 = vmul.f32 %v2910, 1.442695
  %v2935 = vpow.pop %v2934
  %v2936 = vmul.f32 %v2911, 1.442695
  %v2937 = vpow.pop %v2936
  %v2938 = vmul.f32 %v2912, 1.442695
  %v2939 = vpow.pop %v2938
  %v2940 = vmul.f32 %v2913, 1.442695
  %v2941 = vpow.pop %v2940
  %v2942 = vmul.f32 %v2914, 1.442695
  %v2943 = vpow.pop %v2942
  %v2944 = vmul.f32 %v2915, 1.442695
  %v2945 = vpow.pop %v2944
  %v2946 = vmul.f32 %v2916, 1.442695
  %v2947 = vpow.pop %v2946
  %v2948 = vmul.f32 %v2917, 1.442695
  %v2949 = vpow.pop %v2948
  %2951 = vset.pattern.permute.xlu0 0
  %2952 = vperm.xlu0 %2951, %v2886
  %v2953 = vpop.permute.xlu0 %2952
  %2956 = vset.pattern.permute.xlu0 0
  %2957 = vperm.xlu0 %2956, %v2887
  %v2958 = vpop.permute.xlu0 %2957
  %2961 = vset.pattern.permute.xlu0 0
  %2962 = vperm.xlu0 %2961, %v2888
  %v2963 = vpop.permute.xlu0 %2962
  %2966 = vset.pattern.permute.xlu0 0
  %2967 = vperm.xlu0 %2966, %v2889
  %v2968 = vpop.permute.xlu0 %2967
  %2971 = vset.pattern.permute.xlu0 0
  %2972 = vperm.xlu0 %2971, %v2890
  %v2973 = vpop.permute.xlu0 %2972
  %2976 = vset.pattern.permute.xlu0 0
  %2977 = vperm.xlu0 %2976, %v2891
  %v2978 = vpop.permute.xlu0 %2977
  %2981 = vset.pattern.permute.xlu0 0
  %2982 = vperm.xlu0 %2981, %v2892
  %v2983 = vpop.permute.xlu0 %2982
  %2986 = vset.pattern.permute.xlu0 0
  %2987 = vperm.xlu0 %2986, %v2893
  %v2988 = vpop.permute.xlu0 %2987
  %2991 = vset.pattern.permute.xlu0 0
  %2992 = vperm.xlu0 %2991, %v2894
  %v2993 = vpop.permute.xlu0 %2992
  %2996 = vset.pattern.permute.xlu0 0
  %2997 = vperm.xlu0 %2996, %v2895
  %v2998 = vpop.permute.xlu0 %2997
  %3001 = vset.pattern.permute.xlu0 0
  %3002 = vperm.xlu0 %3001, %v2896
  %v3003 = vpop.permute.xlu0 %3002
  %3006 = vset.pattern.permute.xlu0 0
  %3007 = vperm.xlu0 %3006, %v2897
  %v3008 = vpop.permute.xlu0 %3007
  %3011 = vset.pattern.permute.xlu0 0
  %3012 = vperm.xlu0 %3011, %v2898
  %v3013 = vpop.permute.xlu0 %3012
  %3016 = vset.pattern.permute.xlu0 0
  %3017 = vperm.xlu0 %3016, %v2899
  %v3018 = vpop.permute.xlu0 %3017
  %3021 = vset.pattern.permute.xlu0 0
  %3022 = vperm.xlu0 %3021, %v2900
  %v3023 = vpop.permute.xlu0 %3022
  %3026 = vset.pattern.permute.xlu0 0
  %3027 = vperm.xlu0 %3026, %v2901
  %v3028 = vpop.permute.xlu0 %3027
  %v3030 = vsub.f32 %v2821, %v2953
  %v3031 = vsub.f32 %v2822, %v2958
  %v3032 = vsub.f32 %v2823, %v2963
  %v3033 = vsub.f32 %v2824, %v2968
  %v3034 = vsub.f32 %v2825, %v2973
  %v3035 = vsub.f32 %v2826, %v2978
  %v3036 = vsub.f32 %v2827, %v2983
  %v3037 = vsub.f32 %v2828, %v2988
  %v3038 = vsub.f32 %v2829, %v2993
  %v3039 = vsub.f32 %v2830, %v2998
  %v3040 = vsub.f32 %v2831, %v3003
  %v3041 = vsub.f32 %v2832, %v3008
  %v3042 = vsub.f32 %v2833, %v3013
  %v3043 = vsub.f32 %v2834, %v3018
  %v3044 = vsub.f32 %v2835, %v3023
  %v3045 = vsub.f32 %v2836, %v3028
  %v3046 = vmul.f32 %v3030, 1.442695
  %v3047 = vpow.pop %v3046
  %v3048 = vmul.f32 %v3031, 1.442695
  %v3049 = vpow.pop %v3048
  %v3050 = vmul.f32 %v3032, 1.442695
  %v3051 = vpow.pop %v3050
  %v3052 = vmul.f32 %v3033, 1.442695
  %v3053 = vpow.pop %v3052
  %v3054 = vmul.f32 %v3034, 1.442695
  %v3055 = vpow.pop %v3054
  %v3056 = vmul.f32 %v3035, 1.442695
  %v3057 = vpow.pop %v3056
  %v3058 = vmul.f32 %v3036, 1.442695
  %v3059 = vpow.pop %v3058
  %v3060 = vmul.f32 %v3037, 1.442695
  %v3061 = vpow.pop %v3060
  %v3062 = vmul.f32 %v3038, 1.442695
  %v3063 = vpow.pop %v3062
  %v3064 = vmul.f32 %v3039, 1.442695
  %v3065 = vpow.pop %v3064
  %v3066 = vmul.f32 %v3040, 1.442695
  %v3067 = vpow.pop %v3066
  %v3068 = vmul.f32 %v3041, 1.442695
  %v3069 = vpow.pop %v3068
  %v3070 = vmul.f32 %v3042, 1.442695
  %v3071 = vpow.pop %v3070
  %v3072 = vmul.f32 %v3043, 1.442695
  %v3073 = vpow.pop %v3072
  %v3074 = vmul.f32 %v3044, 1.442695
  %v3075 = vpow.pop %v3074
  %v3076 = vmul.f32 %v3045, 1.442695
  %v3077 = vpow.pop %v3076
  %s3078 = scalar_lea.vmem [#allocation3], 384
  %v3079 = vld [vmem:[%s3078] sm:$0xff]
  %v3080 = vld [vmem:[%s3078 + $0x8] sm:$0xff]
  %v3081 = vld [vmem:[%s3078 + $0x10] sm:$0xff]
  %v3082 = vld [vmem:[%s3078 + $0x18] sm:$0xff]
  %v3083 = vld [vmem:[%s3078 + $0x20] sm:$0xff]
  %v3084 = vld [vmem:[%s3078 + $0x28] sm:$0xff]
  %v3085 = vld [vmem:[%s3078 + $0x30] sm:$0xff]
  %v3086 = vld [vmem:[%s3078 + $0x38] sm:$0xff]
  %v3087 = vld [vmem:[%s3078 + $0x40] sm:$0xff]
  %v3088 = vld [vmem:[%s3078 + $0x48] sm:$0xff]
  %v3089 = vld [vmem:[%s3078 + $0x50] sm:$0xff]
  %v3090 = vld [vmem:[%s3078 + $0x58] sm:$0xff]
  %v3091 = vld [vmem:[%s3078 + $0x60] sm:$0xff]
  %v3092 = vld [vmem:[%s3078 + $0x68] sm:$0xff]
  %v3093 = vld [vmem:[%s3078 + $0x70] sm:$0xff]
  %v3094 = vld [vmem:[%s3078 + $0x78] sm:$0xff]
  %v3095 = vmul.f32 %v2919, %v3079
  %v3096 = vmul.f32 %v2921, %v3080
  %v3097 = vmul.f32 %v2923, %v3081
  %v3098 = vmul.f32 %v2925, %v3082
  %v3099 = vmul.f32 %v2927, %v3083
  %v3100 = vmul.f32 %v2929, %v3084
  %v3101 = vmul.f32 %v2931, %v3085
  %v3102 = vmul.f32 %v2933, %v3086
  %v3103 = vmul.f32 %v2935, %v3087
  %v3104 = vmul.f32 %v2937, %v3088
  %v3105 = vmul.f32 %v2939, %v3089
  %v3106 = vmul.f32 %v2941, %v3090
  %v3107 = vmul.f32 %v2943, %v3091
  %v3108 = vmul.f32 %v2945, %v3092
  %v3109 = vmul.f32 %v2947, %v3093
  %v3110 = vmul.f32 %v2949, %v3094
  %3111 = vadd.xlane.f32.xlu0 %v3047
  %v3112 = vpop.xlane.xlu0 %3111
  %3113 = vadd.xlane.f32.xlu0 %v3049
  %v3114 = vpop.xlane.xlu0 %3113
  %3115 = vadd.xlane.f32.xlu0 %v3051
  %v3116 = vpop.xlane.xlu0 %3115
  %3117 = vadd.xlane.f32.xlu0 %v3053
  %v3118 = vpop.xlane.xlu0 %3117
  %3119 = vadd.xlane.f32.xlu0 %v3055
  %v3120 = vpop.xlane.xlu0 %3119
  %3121 = vadd.xlane.f32.xlu0 %v3057
  %v3122 = vpop.xlane.xlu0 %3121
  %3123 = vadd.xlane.f32.xlu0 %v3059
  %v3124 = vpop.xlane.xlu0 %3123
  %3125 = vadd.xlane.f32.xlu0 %v3061
  %v3126 = vpop.xlane.xlu0 %3125
  %3127 = vadd.xlane.f32.xlu0 %v3063
  %v3128 = vpop.xlane.xlu0 %3127
  %3129 = vadd.xlane.f32.xlu0 %v3065
  %v3130 = vpop.xlane.xlu0 %3129
  %3131 = vadd.xlane.f32.xlu0 %v3067
  %v3132 = vpop.xlane.xlu0 %3131
  %3133 = vadd.xlane.f32.xlu0 %v3069
  %v3134 = vpop.xlane.xlu0 %3133
  %3135 = vadd.xlane.f32.xlu0 %v3071
  %v3136 = vpop.xlane.xlu0 %3135
  %3137 = vadd.xlane.f32.xlu0 %v3073
  %v3138 = vpop.xlane.xlu0 %3137
  %3139 = vadd.xlane.f32.xlu0 %v3075
  %v3140 = vpop.xlane.xlu0 %3139
  %3141 = vadd.xlane.f32.xlu0 %v3077
  %v3142 = vpop.xlane.xlu0 %3141
  %v3143 = vadd.f32 %v3095, %v3112
  %v3144 = vadd.f32 %v3096, %v3114
  %v3145 = vadd.f32 %v3097, %v3116
  %v3146 = vadd.f32 %v3098, %v3118
  %v3147 = vadd.f32 %v3099, %v3120
  %v3148 = vadd.f32 %v3100, %v3122
  %v3149 = vadd.f32 %v3101, %v3124
  %v3150 = vadd.f32 %v3102, %v3126
  %v3151 = vadd.f32 %v3103, %v3128
  %v3152 = vadd.f32 %v3104, %v3130
  %v3153 = vadd.f32 %v3105, %v3132
  %v3154 = vadd.f32 %v3106, %v3134
  %v3155 = vadd.f32 %v3107, %v3136
  %v3156 = vadd.f32 %v3108, %v3138
  %v3157 = vadd.f32 %v3109, %v3140
  %v3158 = vadd.f32 %v3110, %v3142
  %3159 = vst.msk [vmem:[%s3078] sm:$0xff] %vm752, %v3143
  %3160 = vst.msk [vmem:[%s3078 + $0x8] sm:$0xff] %vm752, %v3144
  %3161 = vst.msk [vmem:[%s3078 + $0x10] sm:$0xff] %vm752, %v3145
  %3162 = vst.msk [vmem:[%s3078 + $0x18] sm:$0xff] %vm752, %v3146
  %3163 = vst.msk [vmem:[%s3078 + $0x20] sm:$0xff] %vm752, %v3147
  %3164 = vst.msk [vmem:[%s3078 + $0x28] sm:$0xff] %vm752, %v3148
  %3165 = vst.msk [vmem:[%s3078 + $0x30] sm:$0xff] %vm752, %v3149
  %3166 = vst.msk [vmem:[%s3078 + $0x38] sm:$0xff] %vm752, %v3150
  %3167 = vst.msk [vmem:[%s3078 + $0x40] sm:$0xff] %vm752, %v3151
  %3168 = vst.msk [vmem:[%s3078 + $0x48] sm:$0xff] %vm752, %v3152
  %3169 = vst.msk [vmem:[%s3078 + $0x50] sm:$0xff] %vm752, %v3153
  %3170 = vst.msk [vmem:[%s3078 + $0x58] sm:$0xff] %vm752, %v3154
  %3171 = vst.msk [vmem:[%s3078 + $0x60] sm:$0xff] %vm752, %v3155
  %3172 = vst.msk [vmem:[%s3078 + $0x68] sm:$0xff] %vm752, %v3156
  %3173 = vst.msk [vmem:[%s3078 + $0x70] sm:$0xff] %vm752, %v3157
  %3174 = vst.msk [vmem:[%s3078 + $0x78] sm:$0xff] %vm752, %v3158
  %s3175 = scalar_lea.vmem [#allocation4], 384
  %v3176 = vld [vmem:[%s3175] sm:$0xff]
  %v3177 = vld [vmem:[%s3175 + $0x8] sm:$0xff]
  %v3178 = vld [vmem:[%s3175 + $0x10] sm:$0xff]
  %v3179 = vld [vmem:[%s3175 + $0x18] sm:$0xff]
  %v3180 = vld [vmem:[%s3175 + $0x20] sm:$0xff]
  %v3181 = vld [vmem:[%s3175 + $0x28] sm:$0xff]
  %v3182 = vld [vmem:[%s3175 + $0x30] sm:$0xff]
  %v3183 = vld [vmem:[%s3175 + $0x38] sm:$0xff]
  %v3184 = vld [vmem:[%s3175 + $0x40] sm:$0xff]
  %v3185 = vld [vmem:[%s3175 + $0x48] sm:$0xff]
  %v3186 = vld [vmem:[%s3175 + $0x50] sm:$0xff]
  %v3187 = vld [vmem:[%s3175 + $0x58] sm:$0xff]
  %v3188 = vld [vmem:[%s3175 + $0x60] sm:$0xff]
  %v3189 = vld [vmem:[%s3175 + $0x68] sm:$0xff]
  %v3190 = vld [vmem:[%s3175 + $0x70] sm:$0xff]
  %v3191 = vld [vmem:[%s3175 + $0x78] sm:$0xff]
  %3193 = vset.pattern.permute.xlu0 0
  %3194 = vperm.xlu0 %3193, %v2919
  %v3195 = vpop.permute.xlu0 %3194
  %3198 = vset.pattern.permute.xlu0 0
  %3199 = vperm.xlu0 %3198, %v2921
  %v3200 = vpop.permute.xlu0 %3199
  %3203 = vset.pattern.permute.xlu0 0
  %3204 = vperm.xlu0 %3203, %v2923
  %v3205 = vpop.permute.xlu0 %3204
  %3208 = vset.pattern.permute.xlu0 0
  %3209 = vperm.xlu0 %3208, %v2925
  %v3210 = vpop.permute.xlu0 %3209
  %3213 = vset.pattern.permute.xlu0 0
  %3214 = vperm.xlu0 %3213, %v2927
  %v3215 = vpop.permute.xlu0 %3214
  %3218 = vset.pattern.permute.xlu0 0
  %3219 = vperm.xlu0 %3218, %v2929
  %v3220 = vpop.permute.xlu0 %3219
  %3223 = vset.pattern.permute.xlu0 0
  %3224 = vperm.xlu0 %3223, %v2931
  %v3225 = vpop.permute.xlu0 %3224
  %3228 = vset.pattern.permute.xlu0 0
  %3229 = vperm.xlu0 %3228, %v2933
  %v3230 = vpop.permute.xlu0 %3229
  %3233 = vset.pattern.permute.xlu0 0
  %3234 = vperm.xlu0 %3233, %v2935
  %v3235 = vpop.permute.xlu0 %3234
  %3238 = vset.pattern.permute.xlu0 0
  %3239 = vperm.xlu0 %3238, %v2937
  %v3240 = vpop.permute.xlu0 %3239
  %3243 = vset.pattern.permute.xlu0 0
  %3244 = vperm.xlu0 %3243, %v2939
  %v3245 = vpop.permute.xlu0 %3244
  %3248 = vset.pattern.permute.xlu0 0
  %3249 = vperm.xlu0 %3248, %v2941
  %v3250 = vpop.permute.xlu0 %3249
  %3253 = vset.pattern.permute.xlu0 0
  %3254 = vperm.xlu0 %3253, %v2943
  %v3255 = vpop.permute.xlu0 %3254
  %3258 = vset.pattern.permute.xlu0 0
  %3259 = vperm.xlu0 %3258, %v2945
  %v3260 = vpop.permute.xlu0 %3259
  %3263 = vset.pattern.permute.xlu0 0
  %3264 = vperm.xlu0 %3263, %v2947
  %v3265 = vpop.permute.xlu0 %3264
  %3268 = vset.pattern.permute.xlu0 0
  %3269 = vperm.xlu0 %3268, %v2949
  %v3270 = vpop.permute.xlu0 %3269
  %v3272 = vmul.f32 %v3195, %v3176
  %v3273 = vmul.f32 %v3200, %v3177
  %v3274 = vmul.f32 %v3205, %v3178
  %v3275 = vmul.f32 %v3210, %v3179
  %v3276 = vmul.f32 %v3215, %v3180
  %v3277 = vmul.f32 %v3220, %v3181
  %v3278 = vmul.f32 %v3225, %v3182
  %v3279 = vmul.f32 %v3230, %v3183
  %v3280 = vmul.f32 %v3235, %v3184
  %v3281 = vmul.f32 %v3240, %v3185
  %v3282 = vmul.f32 %v3245, %v3186
  %v3283 = vmul.f32 %v3250, %v3187
  %v3284 = vmul.f32 %v3255, %v3188
  %v3285 = vmul.f32 %v3260, %v3189
  %v3286 = vmul.f32 %v3265, %v3190
  %v3287 = vmul.f32 %v3270, %v3191
  %v3288 = vpack.c.bf16 %v3049, %v3047
  %v3289 = vpack.c.bf16 %v3053, %v3051
  %v3290 = vpack.c.bf16 %v3057, %v3055
  %v3291 = vpack.c.bf16 %v3061, %v3059
  %v3292 = vpack.c.bf16 %v3065, %v3063
  %v3293 = vpack.c.bf16 %v3069, %v3067
  %v3294 = vpack.c.bf16 %v3073, %v3071
  %v3295 = vpack.c.bf16 %v3077, %v3075
  %3296 = vrot.lane.b32.xlu0 %v921, 104
  %v3297 = vpop.permute.xlu0 %3296
  %3298 = vrot.lane.b32.xlu0 %v922, 104
  %v3299 = vpop.permute.xlu0 %3298
  %3300 = vrot.lane.b32.xlu0 %v923, 104
  %v3301 = vpop.permute.xlu0 %3300
  %3302 = vrot.lane.b32.xlu0 %v924, 104
  %v3303 = vpop.permute.xlu0 %3302
  %3304 = vrot.lane.b32.xlu0 %v925, 104
  %v3305 = vpop.permute.xlu0 %3304
  %3306 = vrot.lane.b32.xlu0 %v926, 104
  %v3307 = vpop.permute.xlu0 %3306
  %3308 = vrot.lane.b32.xlu0 %v927, 104
  %v3309 = vpop.permute.xlu0 %3308
  %3310 = vrot.lane.b32.xlu0 %v928, 104
  %v3311 = vpop.permute.xlu0 %3310
  %3320 = vmatprep.subr.bf16.mxu0 0
  %3321 = vmatpush1.bf16.msra.mxu0 %v3311
  %3322 = vmatprep.subr.bf16.mxu0 0
  %3323 = vmatpush1.bf16.msra.mxu0 %v3309
  %3324 = vmatprep.subr.bf16.mxu0 0
  %3325 = vmatpush1.bf16.msra.mxu0 %v3307
  %3326 = vmatprep.subr.bf16.mxu0 0
  %3327 = vmatpush1.bf16.msra.mxu0 %v3305
  %3328 = vmatprep.subr.bf16.mxu0 0
  %3329 = vmatpush1.bf16.msra.mxu0 %v3303
  %3330 = vmatprep.subr.bf16.mxu0 0
  %3331 = vmatpush1.bf16.msra.mxu0 %v3301
  %3332 = vmatprep.subr.bf16.mxu0 0
  %3333 = vmatpush1.bf16.msra.mxu0 %v3299
  %3334 = vmatprep.subr.bf16.mxu0 0
  %3335 = vmatpush1.bf16.msra.mxu0 %v3297
  %3336 = vmatprep.subr.bf16.mxu0 0
  %3337 = vmatpush2.bf16.msra.mxu0 0
  %3338 = vmatprep.subr.bf16.mxu0 0
  %3339 = vmatpush2.bf16.msra.mxu0 0
  %3340 = vmatprep.subr.bf16.mxu0 0
  %3341 = vmatpush2.bf16.msra.mxu0 0
  %3342 = vmatprep.subr.bf16.mxu0 0
  %3343 = vmatpush2.bf16.msra.mxu0 0
  %3344 = vmatprep.subr.bf16.mxu0 0
  %3345 = vmatpush2.bf16.msra.mxu0 0
  %3346 = vmatprep.subr.bf16.mxu0 0
  %3347 = vmatpush2.bf16.msra.mxu0 0
  %3348 = vmatprep.subr.bf16.mxu0 0
  %3349 = vmatpush2.bf16.msra.mxu0 0
  %3350 = vmatprep.subr.bf16.mxu0 0
  %3351 = vmatpush2.bf16.msra.mxu0 0
  %3352 = vmatprep.mubr.bf16.mxu0 0
  %3353 = vmatmul.mubr.bf16.gmra.mxu0 %v3288
  %v3354 = vpop.f32.mrf.mxu0
  %v3355 = vadd.f32 0.0, %v3354
  %v3356 = vpop.f32.mrf.mxu0
  %v3357 = vpop.f32.mrf.mxu0
  %v3358 = vadd.f32 0.0, %v3357
  %v3359 = vpop.f32.mrf.mxu0
  %3360 = vmatprep.mubr.bf16.mxu0 0
  %3361 = vmatmul.mubr.bf16.gmra.mxu0 %v3289
  %v3362 = vpop.f32.mrf.mxu0
  %v3363 = vadd.f32 0.0, %v3362
  %v3364 = vpop.f32.mrf.mxu0
  %v3365 = vpop.f32.mrf.mxu0
  %v3366 = vadd.f32 0.0, %v3365
  %v3367 = vpop.f32.mrf.mxu0
  %3368 = vmatprep.mubr.bf16.mxu0 0
  %3369 = vmatmul.mubr.bf16.gmra.mxu0 %v3290
  %v3370 = vpop.f32.mrf.mxu0
  %v3371 = vadd.f32 0.0, %v3370
  %v3372 = vpop.f32.mrf.mxu0
  %v3373 = vpop.f32.mrf.mxu0
  %v3374 = vadd.f32 0.0, %v3373
  %v3375 = vpop.f32.mrf.mxu0
  %3376 = vmatprep.mubr.bf16.mxu0 0
  %3377 = vmatmul.mubr.bf16.gmra.mxu0 %v3291
  %v3378 = vpop.f32.mrf.mxu0
  %v3379 = vadd.f32 0.0, %v3378
  %v3380 = vpop.f32.mrf.mxu0
  %v3381 = vpop.f32.mrf.mxu0
  %v3382 = vadd.f32 0.0, %v3381
  %v3383 = vpop.f32.mrf.mxu0
  %3384 = vmatprep.mubr.bf16.mxu0 0
  %3385 = vmatmul.mubr.bf16.gmra.mxu0 %v3292
  %v3386 = vpop.f32.mrf.mxu0
  %v3387 = vadd.f32 0.0, %v3386
  %v3388 = vpop.f32.mrf.mxu0
  %v3389 = vpop.f32.mrf.mxu0
  %v3390 = vadd.f32 0.0, %v3389
  %v3391 = vpop.f32.mrf.mxu0
  %3392 = vmatprep.mubr.bf16.mxu0 0
  %3393 = vmatmul.mubr.bf16.gmra.mxu0 %v3293
  %v3394 = vpop.f32.mrf.mxu0
  %v3395 = vadd.f32 0.0, %v3394
  %v3396 = vpop.f32.mrf.mxu0
  %v3397 = vpop.f32.mrf.mxu0
  %v3398 = vadd.f32 0.0, %v3397
  %v3399 = vpop.f32.mrf.mxu0
  %3400 = vmatprep.mubr.bf16.mxu0 0
  %3401 = vmatmul.mubr.bf16.gmra.mxu0 %v3294
  %v3402 = vpop.f32.mrf.mxu0
  %v3403 = vadd.f32 0.0, %v3402
  %v3404 = vpop.f32.mrf.mxu0
  %v3405 = vpop.f32.mrf.mxu0
  %v3406 = vadd.f32 0.0, %v3405
  %v3407 = vpop.f32.mrf.mxu0
  %3408 = vmatprep.mubr.bf16.mxu0 0
  %3409 = vmatmul.mubr.bf16.gmra.mxu0 %v3295
  %v3410 = vpop.f32.mrf.mxu0
  %v3411 = vadd.f32 0.0, %v3410
  %v3412 = vpop.f32.mrf.mxu0
  %v3413 = vpop.f32.mrf.mxu0
  %v3414 = vadd.f32 0.0, %v3413
  %v3415 = vpop.f32.mrf.mxu0
  %3416 = vdwg.mxu0
  %v3417 = vadd.f32 %v3272, %v3355
  %v3418 = vadd.f32 %v3273, %v3358
  %v3419 = vadd.f32 %v3274, %v3363
  %v3420 = vadd.f32 %v3275, %v3366
  %v3421 = vadd.f32 %v3276, %v3371
  %v3422 = vadd.f32 %v3277, %v3374
  %v3423 = vadd.f32 %v3278, %v3379
  %v3424 = vadd.f32 %v3279, %v3382
  %v3425 = vadd.f32 %v3280, %v3387
  %v3426 = vadd.f32 %v3281, %v3390
  %v3427 = vadd.f32 %v3282, %v3395
  %v3428 = vadd.f32 %v3283, %v3398
  %v3429 = vadd.f32 %v3284, %v3403
  %v3430 = vadd.f32 %v3285, %v3406
  %v3431 = vadd.f32 %v3286, %v3411
  %v3432 = vadd.f32 %v3287, %v3414
  %3433 = vst.msk [vmem:[%s3175] sm:$0xff] %vm1050, %v3417
  %3434 = vst.msk [vmem:[%s3175 + $0x8] sm:$0xff] %vm1050, %v3418
  %3435 = vst.msk [vmem:[%s3175 + $0x10] sm:$0xff] %vm1050, %v3419
  %3436 = vst.msk [vmem:[%s3175 + $0x18] sm:$0xff] %vm1050, %v3420
  %3437 = vst.msk [vmem:[%s3175 + $0x20] sm:$0xff] %vm1050, %v3421
  %3438 = vst.msk [vmem:[%s3175 + $0x28] sm:$0xff] %vm1050, %v3422
  %3439 = vst.msk [vmem:[%s3175 + $0x30] sm:$0xff] %vm1050, %v3423
  %3440 = vst.msk [vmem:[%s3175 + $0x38] sm:$0xff] %vm1050, %v3424
  %3441 = vst.msk [vmem:[%s3175 + $0x40] sm:$0xff] %vm1050, %v3425
  %3442 = vst.msk [vmem:[%s3175 + $0x48] sm:$0xff] %vm1050, %v3426
  %3443 = vst.msk [vmem:[%s3175 + $0x50] sm:$0xff] %vm1050, %v3427
  %3444 = vst.msk [vmem:[%s3175 + $0x58] sm:$0xff] %vm1050, %v3428
  %3445 = vst.msk [vmem:[%s3175 + $0x60] sm:$0xff] %vm1050, %v3429
  %3446 = vst.msk [vmem:[%s3175 + $0x68] sm:$0xff] %vm1050, %v3430
  %3447 = vst.msk [vmem:[%s3175 + $0x70] sm:$0xff] %vm1050, %v3431
  %3448 = vst.msk [vmem:[%s3175 + $0x78] sm:$0xff] %vm1050, %v3432
  %3449 = vst.msk [vmem:[%s2837] sm:$0xff] %vm752, %v2886
  %3450 = vst.msk [vmem:[%s2837 + $0x8] sm:$0xff] %vm752, %v2887
  %3451 = vst.msk [vmem:[%s2837 + $0x10] sm:$0xff] %vm752, %v2888
  %3452 = vst.msk [vmem:[%s2837 + $0x18] sm:$0xff] %vm752, %v2889
  %3453 = vst.msk [vmem:[%s2837 + $0x20] sm:$0xff] %vm752, %v2890
  %3454 = vst.msk [vmem:[%s2837 + $0x28] sm:$0xff] %vm752, %v2891
  %3455 = vst.msk [vmem:[%s2837 + $0x30] sm:$0xff] %vm752, %v2892
  %3456 = vst.msk [vmem:[%s2837 + $0x38] sm:$0xff] %vm752, %v2893
  %3457 = vst.msk [vmem:[%s2837 + $0x40] sm:$0xff] %vm752, %v2894
  %3458 = vst.msk [vmem:[%s2837 + $0x48] sm:$0xff] %vm752, %v2895
  %3459 = vst.msk [vmem:[%s2837 + $0x50] sm:$0xff] %vm752, %v2896
  %3460 = vst.msk [vmem:[%s2837 + $0x58] sm:$0xff] %vm752, %v2897
  %3461 = vst.msk [vmem:[%s2837 + $0x60] sm:$0xff] %vm752, %v2898
  %3462 = vst.msk [vmem:[%s2837 + $0x68] sm:$0xff] %vm752, %v2899
  %3463 = vst.msk [vmem:[%s2837 + $0x70] sm:$0xff] %vm752, %v2900
  %3464 = vst.msk [vmem:[%s2837 + $0x78] sm:$0xff] %vm752, %v2901
  // Predicated region
  $region26: #{gat_encoder_forward.2} parent=0 // pred_check
    %p3465 = pneg %p21
  $region27: #{gat_encoder_forward.2} parent=0 // pred_check_branch
    %3467 = sbr.rel (%p3465) target = $region29
  $region28: #{gat_encoder_forward.2} parent=0 // pred_region
    %v3468 = vld [vmem:[#allocation3] sm:$0xff]
    %v3469 = vld [vmem:[#allocation3 + $0x8] sm:$0xff]
    %v3470 = vld [vmem:[#allocation3 + $0x10] sm:$0xff]
    %v3471 = vld [vmem:[#allocation3 + $0x18] sm:$0xff]
    %v3472 = vld [vmem:[#allocation3 + $0x20] sm:$0xff]
    %v3473 = vld [vmem:[#allocation3 + $0x28] sm:$0xff]
    %v3474 = vld [vmem:[#allocation3 + $0x30] sm:$0xff]
    %v3475 = vld [vmem:[#allocation3 + $0x38] sm:$0xff]
    %v3476 = vld [vmem:[#allocation3 + $0x40] sm:$0xff]
    %v3477 = vld [vmem:[#allocation3 + $0x48] sm:$0xff]
    %v3478 = vld [vmem:[#allocation3 + $0x50] sm:$0xff]
    %v3479 = vld [vmem:[#allocation3 + $0x58] sm:$0xff]
    %v3480 = vld [vmem:[#allocation3 + $0x60] sm:$0xff]
    %v3481 = vld [vmem:[#allocation3 + $0x68] sm:$0xff]
    %v3482 = vld [vmem:[#allocation3 + $0x70] sm:$0xff]
    %v3483 = vld [vmem:[#allocation3 + $0x78] sm:$0xff]
    %v3484 = vmax.f32 %v3468, 1e-20
    %v3485 = vmax.f32 %v3469, 1e-20
    %v3486 = vmax.f32 %v3470, 1e-20
    %v3487 = vmax.f32 %v3471, 1e-20
    %v3488 = vmax.f32 %v3472, 1e-20
    %v3489 = vmax.f32 %v3473, 1e-20
    %v3490 = vmax.f32 %v3474, 1e-20
    %v3491 = vmax.f32 %v3475, 1e-20
    %v3492 = vmax.f32 %v3476, 1e-20
    %v3493 = vmax.f32 %v3477, 1e-20
    %v3494 = vmax.f32 %v3478, 1e-20
    %v3495 = vmax.f32 %v3479, 1e-20
    %v3496 = vmax.f32 %v3480, 1e-20
    %v3497 = vmax.f32 %v3481, 1e-20
    %v3498 = vmax.f32 %v3482, 1e-20
    %v3499 = vmax.f32 %v3483, 1e-20
    %v3500 = vrcp.pop %v3484
    %v3501 = vrcp.pop %v3485
    %v3502 = vrcp.pop %v3486
    %v3503 = vrcp.pop %v3487
    %v3504 = vrcp.pop %v3488
    %v3505 = vrcp.pop %v3489
    %v3506 = vrcp.pop %v3490
    %v3507 = vrcp.pop %v3491
    %v3508 = vrcp.pop %v3492
    %v3509 = vrcp.pop %v3493
    %v3510 = vrcp.pop %v3494
    %v3511 = vrcp.pop %v3495
    %v3512 = vrcp.pop %v3496
    %v3513 = vrcp.pop %v3497
    %v3514 = vrcp.pop %v3498
    %v3515 = vrcp.pop %v3499
    %v3516 = vld [vmem:[#allocation4] sm:$0xff]
    %v3517 = vld [vmem:[#allocation4 + $0x8] sm:$0xff]
    %v3518 = vld [vmem:[#allocation4 + $0x10] sm:$0xff]
    %v3519 = vld [vmem:[#allocation4 + $0x18] sm:$0xff]
    %v3520 = vld [vmem:[#allocation4 + $0x20] sm:$0xff]
    %v3521 = vld [vmem:[#allocation4 + $0x28] sm:$0xff]
    %v3522 = vld [vmem:[#allocation4 + $0x30] sm:$0xff]
    %v3523 = vld [vmem:[#allocation4 + $0x38] sm:$0xff]
    %v3524 = vld [vmem:[#allocation4 + $0x40] sm:$0xff]
    %v3525 = vld [vmem:[#allocation4 + $0x48] sm:$0xff]
    %v3526 = vld [vmem:[#allocation4 + $0x50] sm:$0xff]
    %v3527 = vld [vmem:[#allocation4 + $0x58] sm:$0xff]
    %v3528 = vld [vmem:[#allocation4 + $0x60] sm:$0xff]
    %v3529 = vld [vmem:[#allocation4 + $0x68] sm:$0xff]
    %v3530 = vld [vmem:[#allocation4 + $0x70] sm:$0xff]
    %v3531 = vld [vmem:[#allocation4 + $0x78] sm:$0xff]
    %3533 = vset.pattern.permute.xlu0 0
    %3534 = vperm.xlu0 %3533, %v3500
    %v3535 = vpop.permute.xlu0 %3534
    %3538 = vset.pattern.permute.xlu0 0
    %3539 = vperm.xlu0 %3538, %v3501
    %v3540 = vpop.permute.xlu0 %3539
    %3543 = vset.pattern.permute.xlu0 0
    %3544 = vperm.xlu0 %3543, %v3502
    %v3545 = vpop.permute.xlu0 %3544
    %3548 = vset.pattern.permute.xlu0 0
    %3549 = vperm.xlu0 %3548, %v3503
    %v3550 = vpop.permute.xlu0 %3549
    %3553 = vset.pattern.permute.xlu0 0
    %3554 = vperm.xlu0 %3553, %v3504
    %v3555 = vpop.permute.xlu0 %3554
    %3558 = vset.pattern.permute.xlu0 0
    %3559 = vperm.xlu0 %3558, %v3505
    %v3560 = vpop.permute.xlu0 %3559
    %3563 = vset.pattern.permute.xlu0 0
    %3564 = vperm.xlu0 %3563, %v3506
    %v3565 = vpop.permute.xlu0 %3564
    %3568 = vset.pattern.permute.xlu0 0
    %3569 = vperm.xlu0 %3568, %v3507
    %v3570 = vpop.permute.xlu0 %3569
    %3573 = vset.pattern.permute.xlu0 0
    %3574 = vperm.xlu0 %3573, %v3508
    %v3575 = vpop.permute.xlu0 %3574
    %3578 = vset.pattern.permute.xlu0 0
    %3579 = vperm.xlu0 %3578, %v3509
    %v3580 = vpop.permute.xlu0 %3579
    %3583 = vset.pattern.permute.xlu0 0
    %3584 = vperm.xlu0 %3583, %v3510
    %v3585 = vpop.permute.xlu0 %3584
    %3588 = vset.pattern.permute.xlu0 0
    %3589 = vperm.xlu0 %3588, %v3511
    %v3590 = vpop.permute.xlu0 %3589
    %3593 = vset.pattern.permute.xlu0 0
    %3594 = vperm.xlu0 %3593, %v3512
    %v3595 = vpop.permute.xlu0 %3594
    %3598 = vset.pattern.permute.xlu0 0
    %3599 = vperm.xlu0 %3598, %v3513
    %v3600 = vpop.permute.xlu0 %3599
    %3603 = vset.pattern.permute.xlu0 0
    %3604 = vperm.xlu0 %3603, %v3514
    %v3605 = vpop.permute.xlu0 %3604
    %3608 = vset.pattern.permute.xlu0 0
    %3609 = vperm.xlu0 %3608, %v3515
    %v3610 = vpop.permute.xlu0 %3609
    %v3612 = vmul.f32 %v3516, %v3535
    %v3613 = vmul.f32 %v3517, %v3540
    %v3614 = vmul.f32 %v3518, %v3545
    %v3615 = vmul.f32 %v3519, %v3550
    %v3616 = vmul.f32 %v3520, %v3555
    %v3617 = vmul.f32 %v3521, %v3560
    %v3618 = vmul.f32 %v3522, %v3565
    %v3619 = vmul.f32 %v3523, %v3570
    %v3620 = vmul.f32 %v3524, %v3575
    %v3621 = vmul.f32 %v3525, %v3580
    %v3622 = vmul.f32 %v3526, %v3585
    %v3623 = vmul.f32 %v3527, %v3590
    %v3624 = vmul.f32 %v3528, %v3595
    %v3625 = vmul.f32 %v3529, %v3600
    %v3626 = vmul.f32 %v3530, %v3605
    %v3627 = vmul.f32 %v3531, %v3610
    %v3628 = vld [vmem:[%s1490] sm:$0xff]
    %v3629 = vld [vmem:[%s1490 + $0x8] sm:$0xff]
    %v3630 = vld [vmem:[%s1490 + $0x10] sm:$0xff]
    %v3631 = vld [vmem:[%s1490 + $0x18] sm:$0xff]
    %v3632 = vld [vmem:[%s1490 + $0x20] sm:$0xff]
    %v3633 = vld [vmem:[%s1490 + $0x28] sm:$0xff]
    %v3634 = vld [vmem:[%s1490 + $0x30] sm:$0xff]
    %v3635 = vld [vmem:[%s1490 + $0x38] sm:$0xff]
    %v3636 = vld [vmem:[%s1490 + $0x40] sm:$0xff]
    %v3637 = vld [vmem:[%s1490 + $0x48] sm:$0xff]
    %v3638 = vld [vmem:[%s1490 + $0x50] sm:$0xff]
    %v3639 = vld [vmem:[%s1490 + $0x58] sm:$0xff]
    %v3640 = vld [vmem:[%s1490 + $0x60] sm:$0xff]
    %v3641 = vld [vmem:[%s1490 + $0x68] sm:$0xff]
    %v3642 = vld [vmem:[%s1490 + $0x70] sm:$0xff]
    %v3643 = vld [vmem:[%s1490 + $0x78] sm:$0xff]
    %v3644 = vmax.f32 %v3628, 1e-20
    %v3645 = vmax.f32 %v3629, 1e-20
    %v3646 = vmax.f32 %v3630, 1e-20
    %v3647 = vmax.f32 %v3631, 1e-20
    %v3648 = vmax.f32 %v3632, 1e-20
    %v3649 = vmax.f32 %v3633, 1e-20
    %v3650 = vmax.f32 %v3634, 1e-20
    %v3651 = vmax.f32 %v3635, 1e-20
    %v3652 = vmax.f32 %v3636, 1e-20
    %v3653 = vmax.f32 %v3637, 1e-20
    %v3654 = vmax.f32 %v3638, 1e-20
    %v3655 = vmax.f32 %v3639, 1e-20
    %v3656 = vmax.f32 %v3640, 1e-20
    %v3657 = vmax.f32 %v3641, 1e-20
    %v3658 = vmax.f32 %v3642, 1e-20
    %v3659 = vmax.f32 %v3643, 1e-20
    %v3660 = vrcp.pop %v3644
    %v3661 = vrcp.pop %v3645
    %v3662 = vrcp.pop %v3646
    %v3663 = vrcp.pop %v3647
    %v3664 = vrcp.pop %v3648
    %v3665 = vrcp.pop %v3649
    %v3666 = vrcp.pop %v3650
    %v3667 = vrcp.pop %v3651
    %v3668 = vrcp.pop %v3652
    %v3669 = vrcp.pop %v3653
    %v3670 = vrcp.pop %v3654
    %v3671 = vrcp.pop %v3655
    %v3672 = vrcp.pop %v3656
    %v3673 = vrcp.pop %v3657
    %v3674 = vrcp.pop %v3658
    %v3675 = vrcp.pop %v3659
    %v3676 = vld [vmem:[%s1587] sm:$0xff]
    %v3677 = vld [vmem:[%s1587 + $0x8] sm:$0xff]
    %v3678 = vld [vmem:[%s1587 + $0x10] sm:$0xff]
    %v3679 = vld [vmem:[%s1587 + $0x18] sm:$0xff]
    %v3680 = vld [vmem:[%s1587 + $0x20] sm:$0xff]
    %v3681 = vld [vmem:[%s1587 + $0x28] sm:$0xff]
    %v3682 = vld [vmem:[%s1587 + $0x30] sm:$0xff]
    %v3683 = vld [vmem:[%s1587 + $0x38] sm:$0xff]
    %v3684 = vld [vmem:[%s1587 + $0x40] sm:$0xff]
    %v3685 = vld [vmem:[%s1587 + $0x48] sm:$0xff]
    %v3686 = vld [vmem:[%s1587 + $0x50] sm:$0xff]
    %v3687 = vld [vmem:[%s1587 + $0x58] sm:$0xff]
    %v3688 = vld [vmem:[%s1587 + $0x60] sm:$0xff]
    %v3689 = vld [vmem:[%s1587 + $0x68] sm:$0xff]
    %v3690 = vld [vmem:[%s1587 + $0x70] sm:$0xff]
    %v3691 = vld [vmem:[%s1587 + $0x78] sm:$0xff]
    %3693 = vset.pattern.permute.xlu0 0
    %3694 = vperm.xlu0 %3693, %v3660
    %v3695 = vpop.permute.xlu0 %3694
    %3698 = vset.pattern.permute.xlu0 0
    %3699 = vperm.xlu0 %3698, %v3661
    %v3700 = vpop.permute.xlu0 %3699
    %3703 = vset.pattern.permute.xlu0 0
    %3704 = vperm.xlu0 %3703, %v3662
    %v3705 = vpop.permute.xlu0 %3704
    %3708 = vset.pattern.permute.xlu0 0
    %3709 = vperm.xlu0 %3708, %v3663
    %v3710 = vpop.permute.xlu0 %3709
    %3713 = vset.pattern.permute.xlu0 0
    %3714 = vperm.xlu0 %3713, %v3664
    %v3715 = vpop.permute.xlu0 %3714
    %3718 = vset.pattern.permute.xlu0 0
    %3719 = vperm.xlu0 %3718, %v3665
    %v3720 = vpop.permute.xlu0 %3719
    %3723 = vset.pattern.permute.xlu0 0
    %3724 = vperm.xlu0 %3723, %v3666
    %v3725 = vpop.permute.xlu0 %3724
    %3728 = vset.pattern.permute.xlu0 0
    %3729 = vperm.xlu0 %3728, %v3667
    %v3730 = vpop.permute.xlu0 %3729
    %3733 = vset.pattern.permute.xlu0 0
    %3734 = vperm.xlu0 %3733, %v3668
    %v3735 = vpop.permute.xlu0 %3734
    %3738 = vset.pattern.permute.xlu0 0
    %3739 = vperm.xlu0 %3738, %v3669
    %v3740 = vpop.permute.xlu0 %3739
    %3743 = vset.pattern.permute.xlu0 0
    %3744 = vperm.xlu0 %3743, %v3670
    %v3745 = vpop.permute.xlu0 %3744
    %3748 = vset.pattern.permute.xlu0 0
    %3749 = vperm.xlu0 %3748, %v3671
    %v3750 = vpop.permute.xlu0 %3749
    %3753 = vset.pattern.permute.xlu0 0
    %3754 = vperm.xlu0 %3753, %v3672
    %v3755 = vpop.permute.xlu0 %3754
    %3758 = vset.pattern.permute.xlu0 0
    %3759 = vperm.xlu0 %3758, %v3673
    %v3760 = vpop.permute.xlu0 %3759
    %3763 = vset.pattern.permute.xlu0 0
    %3764 = vperm.xlu0 %3763, %v3674
    %v3765 = vpop.permute.xlu0 %3764
    %3768 = vset.pattern.permute.xlu0 0
    %3769 = vperm.xlu0 %3768, %v3675
    %v3770 = vpop.permute.xlu0 %3769
    %v3772 = vmul.f32 %v3676, %v3695
    %v3773 = vmul.f32 %v3677, %v3700
    %v3774 = vmul.f32 %v3678, %v3705
    %v3775 = vmul.f32 %v3679, %v3710
    %v3776 = vmul.f32 %v3680, %v3715
    %v3777 = vmul.f32 %v3681, %v3720
    %v3778 = vmul.f32 %v3682, %v3725
    %v3779 = vmul.f32 %v3683, %v3730
    %v3780 = vmul.f32 %v3684, %v3735
    %v3781 = vmul.f32 %v3685, %v3740
    %v3782 = vmul.f32 %v3686, %v3745
    %v3783 = vmul.f32 %v3687, %v3750
    %v3784 = vmul.f32 %v3688, %v3755
    %v3785 = vmul.f32 %v3689, %v3760
    %v3786 = vmul.f32 %v3690, %v3765
    %v3787 = vmul.f32 %v3691, %v3770
    %v3788 = vld [vmem:[%s2284] sm:$0xff]
    %v3789 = vld [vmem:[%s2284 + $0x8] sm:$0xff]
    %v3790 = vld [vmem:[%s2284 + $0x10] sm:$0xff]
    %v3791 = vld [vmem:[%s2284 + $0x18] sm:$0xff]
    %v3792 = vld [vmem:[%s2284 + $0x20] sm:$0xff]
    %v3793 = vld [vmem:[%s2284 + $0x28] sm:$0xff]
    %v3794 = vld [vmem:[%s2284 + $0x30] sm:$0xff]
    %v3795 = vld [vmem:[%s2284 + $0x38] sm:$0xff]
    %v3796 = vld [vmem:[%s2284 + $0x40] sm:$0xff]
    %v3797 = vld [vmem:[%s2284 + $0x48] sm:$0xff]
    %v3798 = vld [vmem:[%s2284 + $0x50] sm:$0xff]
    %v3799 = vld [vmem:[%s2284 + $0x58] sm:$0xff]
    %v3800 = vld [vmem:[%s2284 + $0x60] sm:$0xff]
    %v3801 = vld [vmem:[%s2284 + $0x68] sm:$0xff]
    %v3802 = vld [vmem:[%s2284 + $0x70] sm:$0xff]
    %v3803 = vld [vmem:[%s2284 + $0x78] sm:$0xff]
    %v3804 = vmax.f32 %v3788, 1e-20
    %v3805 = vmax.f32 %v3789, 1e-20
    %v3806 = vmax.f32 %v3790, 1e-20
    %v3807 = vmax.f32 %v3791, 1e-20
    %v3808 = vmax.f32 %v3792, 1e-20
    %v3809 = vmax.f32 %v3793, 1e-20
    %v3810 = vmax.f32 %v3794, 1e-20
    %v3811 = vmax.f32 %v3795, 1e-20
    %v3812 = vmax.f32 %v3796, 1e-20
    %v3813 = vmax.f32 %v3797, 1e-20
    %v3814 = vmax.f32 %v3798, 1e-20
    %v3815 = vmax.f32 %v3799, 1e-20
    %v3816 = vmax.f32 %v3800, 1e-20
    %v3817 = vmax.f32 %v3801, 1e-20
    %v3818 = vmax.f32 %v3802, 1e-20
    %v3819 = vmax.f32 %v3803, 1e-20
    %v3820 = vrcp.pop %v3804
    %v3821 = vrcp.pop %v3805
    %v3822 = vrcp.pop %v3806
    %v3823 = vrcp.pop %v3807
    %v3824 = vrcp.pop %v3808
    %v3825 = vrcp.pop %v3809
    %v3826 = vrcp.pop %v3810
    %v3827 = vrcp.pop %v3811
    %v3828 = vrcp.pop %v3812
    %v3829 = vrcp.pop %v3813
    %v3830 = vrcp.pop %v3814
    %v3831 = vrcp.pop %v3815
    %v3832 = vrcp.pop %v3816
    %v3833 = vrcp.pop %v3817
    %v3834 = vrcp.pop %v3818
    %v3835 = vrcp.pop %v3819
    %v3836 = vld [vmem:[%s2381] sm:$0xff]
    %v3837 = vld [vmem:[%s2381 + $0x8] sm:$0xff]
    %v3838 = vld [vmem:[%s2381 + $0x10] sm:$0xff]
    %v3839 = vld [vmem:[%s2381 + $0x18] sm:$0xff]
    %v3840 = vld [vmem:[%s2381 + $0x20] sm:$0xff]
    %v3841 = vld [vmem:[%s2381 + $0x28] sm:$0xff]
    %v3842 = vld [vmem:[%s2381 + $0x30] sm:$0xff]
    %v3843 = vld [vmem:[%s2381 + $0x38] sm:$0xff]
    %v3844 = vld [vmem:[%s2381 + $0x40] sm:$0xff]
    %v3845 = vld [vmem:[%s2381 + $0x48] sm:$0xff]
    %v3846 = vld [vmem:[%s2381 + $0x50] sm:$0xff]
    %v3847 = vld [vmem:[%s2381 + $0x58] sm:$0xff]
    %v3848 = vld [vmem:[%s2381 + $0x60] sm:$0xff]
    %v3849 = vld [vmem:[%s2381 + $0x68] sm:$0xff]
    %v3850 = vld [vmem:[%s2381 + $0x70] sm:$0xff]
    %v3851 = vld [vmem:[%s2381 + $0x78] sm:$0xff]
    %3853 = vset.pattern.permute.xlu0 0
    %3854 = vperm.xlu0 %3853, %v3820
    %v3855 = vpop.permute.xlu0 %3854
    %3858 = vset.pattern.permute.xlu0 0
    %3859 = vperm.xlu0 %3858, %v3821
    %v3860 = vpop.permute.xlu0 %3859
    %3863 = vset.pattern.permute.xlu0 0
    %3864 = vperm.xlu0 %3863, %v3822
    %v3865 = vpop.permute.xlu0 %3864
    %3868 = vset.pattern.permute.xlu0 0
    %3869 = vperm.xlu0 %3868, %v3823
    %v3870 = vpop.permute.xlu0 %3869
    %3873 = vset.pattern.permute.xlu0 0
    %3874 = vperm.xlu0 %3873, %v3824
    %v3875 = vpop.permute.xlu0 %3874
    %3878 = vset.pattern.permute.xlu0 0
    %3879 = vperm.xlu0 %3878, %v3825
    %v3880 = vpop.permute.xlu0 %3879
    %3883 = vset.pattern.permute.xlu0 0
    %3884 = vperm.xlu0 %3883, %v3826
    %v3885 = vpop.permute.xlu0 %3884
    %3888 = vset.pattern.permute.xlu0 0
    %3889 = vperm.xlu0 %3888, %v3827
    %v3890 = vpop.permute.xlu0 %3889
    %3893 = vset.pattern.permute.xlu0 0
    %3894 = vperm.xlu0 %3893, %v3828
    %v3895 = vpop.permute.xlu0 %3894
    %3898 = vset.pattern.permute.xlu0 0
    %3899 = vperm.xlu0 %3898, %v3829
    %v3900 = vpop.permute.xlu0 %3899
    %3903 = vset.pattern.permute.xlu0 0
    %3904 = vperm.xlu0 %3903, %v3830
    %v3905 = vpop.permute.xlu0 %3904
    %3908 = vset.pattern.permute.xlu0 0
    %3909 = vperm.xlu0 %3908, %v3831
    %v3910 = vpop.permute.xlu0 %3909
    %3913 = vset.pattern.permute.xlu0 0
    %3914 = vperm.xlu0 %3913, %v3832
    %v3915 = vpop.permute.xlu0 %3914
    %3918 = vset.pattern.permute.xlu0 0
    %3919 = vperm.xlu0 %3918, %v3833
    %v3920 = vpop.permute.xlu0 %3919
    %3923 = vset.pattern.permute.xlu0 0
    %3924 = vperm.xlu0 %3923, %v3834
    %v3925 = vpop.permute.xlu0 %3924
    %3928 = vset.pattern.permute.xlu0 0
    %3929 = vperm.xlu0 %3928, %v3835
    %v3930 = vpop.permute.xlu0 %3929
    %v3932 = vmul.f32 %v3836, %v3855
    %v3933 = vmul.f32 %v3837, %v3860
    %v3934 = vmul.f32 %v3838, %v3865
    %v3935 = vmul.f32 %v3839, %v3870
    %v3936 = vmul.f32 %v3840, %v3875
    %v3937 = vmul.f32 %v3841, %v3880
    %v3938 = vmul.f32 %v3842, %v3885
    %v3939 = vmul.f32 %v3843, %v3890
    %v3940 = vmul.f32 %v3844, %v3895
    %v3941 = vmul.f32 %v3845, %v3900
    %v3942 = vmul.f32 %v3846, %v3905
    %v3943 = vmul.f32 %v3847, %v3910
    %v3944 = vmul.f32 %v3848, %v3915
    %v3945 = vmul.f32 %v3849, %v3920
    %v3946 = vmul.f32 %v3850, %v3925
    %v3947 = vmul.f32 %v3851, %v3930
    %v3948 = vld [vmem:[%s3078] sm:$0xff]
    %v3949 = vld [vmem:[%s3078 + $0x8] sm:$0xff]
    %v3950 = vld [vmem:[%s3078 + $0x10] sm:$0xff]
    %v3951 = vld [vmem:[%s3078 + $0x18] sm:$0xff]
    %v3952 = vld [vmem:[%s3078 + $0x20] sm:$0xff]
    %v3953 = vld [vmem:[%s3078 + $0x28] sm:$0xff]
    %v3954 = vld [vmem:[%s3078 + $0x30] sm:$0xff]
    %v3955 = vld [vmem:[%s3078 + $0x38] sm:$0xff]
    %v3956 = vld [vmem:[%s3078 + $0x40] sm:$0xff]
    %v3957 = vld [vmem:[%s3078 + $0x48] sm:$0xff]
    %v3958 = vld [vmem:[%s3078 + $0x50] sm:$0xff]
    %v3959 = vld [vmem:[%s3078 + $0x58] sm:$0xff]
    %v3960 = vld [vmem:[%s3078 + $0x60] sm:$0xff]
    %v3961 = vld [vmem:[%s3078 + $0x68] sm:$0xff]
    %v3962 = vld [vmem:[%s3078 + $0x70] sm:$0xff]
    %v3963 = vld [vmem:[%s3078 + $0x78] sm:$0xff]
    %v3964 = vmax.f32 %v3948, 1e-20
    %v3965 = vmax.f32 %v3949, 1e-20
    %v3966 = vmax.f32 %v3950, 1e-20
    %v3967 = vmax.f32 %v3951, 1e-20
    %v3968 = vmax.f32 %v3952, 1e-20
    %v3969 = vmax.f32 %v3953, 1e-20
    %v3970 = vmax.f32 %v3954, 1e-20
    %v3971 = vmax.f32 %v3955, 1e-20
    %v3972 = vmax.f32 %v3956, 1e-20
    %v3973 = vmax.f32 %v3957, 1e-20
    %v3974 = vmax.f32 %v3958, 1e-20
    %v3975 = vmax.f32 %v3959, 1e-20
    %v3976 = vmax.f32 %v3960, 1e-20
    %v3977 = vmax.f32 %v3961, 1e-20
    %v3978 = vmax.f32 %v3962, 1e-20
    %v3979 = vmax.f32 %v3963, 1e-20
    %v3980 = vrcp.pop %v3964
    %v3981 = vrcp.pop %v3965
    %v3982 = vrcp.pop %v3966
    %v3983 = vrcp.pop %v3967
    %v3984 = vrcp.pop %v3968
    %v3985 = vrcp.pop %v3969
    %v3986 = vrcp.pop %v3970
    %v3987 = vrcp.pop %v3971
    %v3988 = vrcp.pop %v3972
    %v3989 = vrcp.pop %v3973
    %v3990 = vrcp.pop %v3974
    %v3991 = vrcp.pop %v3975
    %v3992 = vrcp.pop %v3976
    %v3993 = vrcp.pop %v3977
    %v3994 = vrcp.pop %v3978
    %v3995 = vrcp.pop %v3979
    %v3996 = vld [vmem:[%s3175] sm:$0xff]
    %v3997 = vld [vmem:[%s3175 + $0x8] sm:$0xff]
    %v3998 = vld [vmem:[%s3175 + $0x10] sm:$0xff]
    %v3999 = vld [vmem:[%s3175 + $0x18] sm:$0xff]
    %v4000 = vld [vmem:[%s3175 + $0x20] sm:$0xff]
    %v4001 = vld [vmem:[%s3175 + $0x28] sm:$0xff]
    %v4002 = vld [vmem:[%s3175 + $0x30] sm:$0xff]
    %v4003 = vld [vmem:[%s3175 + $0x38] sm:$0xff]
    %v4004 = vld [vmem:[%s3175 + $0x40] sm:$0xff]
    %v4005 = vld [vmem:[%s3175 + $0x48] sm:$0xff]
    %v4006 = vld [vmem:[%s3175 + $0x50] sm:$0xff]
    %v4007 = vld [vmem:[%s3175 + $0x58] sm:$0xff]
    %v4008 = vld [vmem:[%s3175 + $0x60] sm:$0xff]
    %v4009 = vld [vmem:[%s3175 + $0x68] sm:$0xff]
    %v4010 = vld [vmem:[%s3175 + $0x70] sm:$0xff]
    %v4011 = vld [vmem:[%s3175 + $0x78] sm:$0xff]
    %4013 = vset.pattern.permute.xlu0 0
    %4014 = vperm.xlu0 %4013, %v3980
    %v4015 = vpop.permute.xlu0 %4014
    %4018 = vset.pattern.permute.xlu0 0
    %4019 = vperm.xlu0 %4018, %v3981
    %v4020 = vpop.permute.xlu0 %4019
    %4023 = vset.pattern.permute.xlu0 0
    %4024 = vperm.xlu0 %4023, %v3982
    %v4025 = vpop.permute.xlu0 %4024
    %4028 = vset.pattern.permute.xlu0 0
    %4029 = vperm.xlu0 %4028, %v3983
    %v4030 = vpop.permute.xlu0 %4029
    %4033 = vset.pattern.permute.xlu0 0
    %4034 = vperm.xlu0 %4033, %v3984
    %v4035 = vpop.permute.xlu0 %4034
    %4038 = vset.pattern.permute.xlu0 0
    %4039 = vperm.xlu0 %4038, %v3985
    %v4040 = vpop.permute.xlu0 %4039
    %4043 = vset.pattern.permute.xlu0 0
    %4044 = vperm.xlu0 %4043, %v3986
    %v4045 = vpop.permute.xlu0 %4044
    %4048 = vset.pattern.permute.xlu0 0
    %4049 = vperm.xlu0 %4048, %v3987
    %v4050 = vpop.permute.xlu0 %4049
    %4053 = vset.pattern.permute.xlu0 0
    %4054 = vperm.xlu0 %4053, %v3988
    %v4055 = vpop.permute.xlu0 %4054
    %4058 = vset.pattern.permute.xlu0 0
    %4059 = vperm.xlu0 %4058, %v3989
    %v4060 = vpop.permute.xlu0 %4059
    %4063 = vset.pattern.permute.xlu0 0
    %4064 = vperm.xlu0 %4063, %v3990
    %v4065 = vpop.permute.xlu0 %4064
    %4068 = vset.pattern.permute.xlu0 0
    %4069 = vperm.xlu0 %4068, %v3991
    %v4070 = vpop.permute.xlu0 %4069
    %4073 = vset.pattern.permute.xlu0 0
    %4074 = vperm.xlu0 %4073, %v3992
    %v4075 = vpop.permute.xlu0 %4074
    %4078 = vset.pattern.permute.xlu0 0
    %4079 = vperm.xlu0 %4078, %v3993
    %v4080 = vpop.permute.xlu0 %4079
    %4083 = vset.pattern.permute.xlu0 0
    %4084 = vperm.xlu0 %4083, %v3994
    %v4085 = vpop.permute.xlu0 %4084
    %4088 = vset.pattern.permute.xlu0 0
    %4089 = vperm.xlu0 %4088, %v3995
    %v4090 = vpop.permute.xlu0 %4089
    %v4092 = vmul.f32 %v3996, %v4015
    %v4093 = vmul.f32 %v3997, %v4020
    %v4094 = vmul.f32 %v3998, %v4025
    %v4095 = vmul.f32 %v3999, %v4030
    %v4096 = vmul.f32 %v4000, %v4035
    %v4097 = vmul.f32 %v4001, %v4040
    %v4098 = vmul.f32 %v4002, %v4045
    %v4099 = vmul.f32 %v4003, %v4050
    %v4100 = vmul.f32 %v4004, %v4055
    %v4101 = vmul.f32 %v4005, %v4060
    %v4102 = vmul.f32 %v4006, %v4065
    %v4103 = vmul.f32 %v4007, %v4070
    %v4104 = vmul.f32 %v4008, %v4075
    %v4105 = vmul.f32 %v4009, %v4080
    %v4106 = vmul.f32 %v4010, %v4085
    %v4107 = vmul.f32 %v4011, %v4090
    %4124 = vrot.lane.b32.xlu0 %v3772, 8
    %v4125 = vpop.permute.xlu0 %4124
    %4126 = vrot.lane.b32.xlu0 %v3773, 8
    %v4127 = vpop.permute.xlu0 %4126
    %4128 = vrot.lane.b32.xlu0 %v3774, 8
    %v4129 = vpop.permute.xlu0 %4128
    %4130 = vrot.lane.b32.xlu0 %v3775, 8
    %v4131 = vpop.permute.xlu0 %4130
    %4132 = vrot.lane.b32.xlu0 %v3776, 8
    %v4133 = vpop.permute.xlu0 %4132
    %4134 = vrot.lane.b32.xlu0 %v3777, 8
    %v4135 = vpop.permute.xlu0 %4134
    %4136 = vrot.lane.b32.xlu0 %v3778, 8
    %v4137 = vpop.permute.xlu0 %4136
    %4138 = vrot.lane.b32.xlu0 %v3779, 8
    %v4139 = vpop.permute.xlu0 %4138
    %4140 = vrot.lane.b32.xlu0 %v3780, 8
    %v4141 = vpop.permute.xlu0 %4140
    %4142 = vrot.lane.b32.xlu0 %v3781, 8
    %v4143 = vpop.permute.xlu0 %4142
    %4144 = vrot.lane.b32.xlu0 %v3782, 8
    %v4145 = vpop.permute.xlu0 %4144
    %4146 = vrot.lane.b32.xlu0 %v3783, 8
    %v4147 = vpop.permute.xlu0 %4146
    %4148 = vrot.lane.b32.xlu0 %v3784, 8
    %v4149 = vpop.permute.xlu0 %4148
    %4150 = vrot.lane.b32.xlu0 %v3785, 8
    %v4151 = vpop.permute.xlu0 %4150
    %4152 = vrot.lane.b32.xlu0 %v3786, 8
    %v4153 = vpop.permute.xlu0 %4152
    %4154 = vrot.lane.b32.xlu0 %v3787, 8
    %v4155 = vpop.permute.xlu0 %4154
    %4188 = vrot.lane.b32.xlu0 %v3932, 16
    %v4189 = vpop.permute.xlu0 %4188
    %4190 = vrot.lane.b32.xlu0 %v3933, 16
    %v4191 = vpop.permute.xlu0 %4190
    %4192 = vrot.lane.b32.xlu0 %v3934, 16
    %v4193 = vpop.permute.xlu0 %4192
    %4194 = vrot.lane.b32.xlu0 %v3935, 16
    %v4195 = vpop.permute.xlu0 %4194
    %4196 = vrot.lane.b32.xlu0 %v3936, 16
    %v4197 = vpop.permute.xlu0 %4196
    %4198 = vrot.lane.b32.xlu0 %v3937, 16
    %v4199 = vpop.permute.xlu0 %4198
    %4200 = vrot.lane.b32.xlu0 %v3938, 16
    %v4201 = vpop.permute.xlu0 %4200
    %4202 = vrot.lane.b32.xlu0 %v3939, 16
    %v4203 = vpop.permute.xlu0 %4202
    %4204 = vrot.lane.b32.xlu0 %v3940, 16
    %v4205 = vpop.permute.xlu0 %4204
    %4206 = vrot.lane.b32.xlu0 %v3941, 16
    %v4207 = vpop.permute.xlu0 %4206
    %4208 = vrot.lane.b32.xlu0 %v3942, 16
    %v4209 = vpop.permute.xlu0 %4208
    %4210 = vrot.lane.b32.xlu0 %v3943, 16
    %v4211 = vpop.permute.xlu0 %4210
    %4212 = vrot.lane.b32.xlu0 %v3944, 16
    %v4213 = vpop.permute.xlu0 %4212
    %4214 = vrot.lane.b32.xlu0 %v3945, 16
    %v4215 = vpop.permute.xlu0 %4214
    %4216 = vrot.lane.b32.xlu0 %v3946, 16
    %v4217 = vpop.permute.xlu0 %4216
    %4218 = vrot.lane.b32.xlu0 %v3947, 16
    %v4219 = vpop.permute.xlu0 %4218
    %4252 = vrot.lane.b32.xlu0 %v4092, 24
    %v4253 = vpop.permute.xlu0 %4252
    %4254 = vrot.lane.b32.xlu0 %v4093, 24
    %v4255 = vpop.permute.xlu0 %4254
    %4256 = vrot.lane.b32.xlu0 %v4094, 24
    %v4257 = vpop.permute.xlu0 %4256
    %4258 = vrot.lane.b32.xlu0 %v4095, 24
    %v4259 = vpop.permute.xlu0 %4258
    %4260 = vrot.lane.b32.xlu0 %v4096, 24
    %v4261 = vpop.permute.xlu0 %4260
    %4262 = vrot.lane.b32.xlu0 %v4097, 24
    %v4263 = vpop.permute.xlu0 %4262
    %4264 = vrot.lane.b32.xlu0 %v4098, 24
    %v4265 = vpop.permute.xlu0 %4264
    %4266 = vrot.lane.b32.xlu0 %v4099, 24
    %v4267 = vpop.permute.xlu0 %4266
    %4268 = vrot.lane.b32.xlu0 %v4100, 24
    %v4269 = vpop.permute.xlu0 %4268
    %4270 = vrot.lane.b32.xlu0 %v4101, 24
    %v4271 = vpop.permute.xlu0 %4270
    %4272 = vrot.lane.b32.xlu0 %v4102, 24
    %v4273 = vpop.permute.xlu0 %4272
    %4274 = vrot.lane.b32.xlu0 %v4103, 24
    %v4275 = vpop.permute.xlu0 %4274
    %4276 = vrot.lane.b32.xlu0 %v4104, 24
    %v4277 = vpop.permute.xlu0 %4276
    %4278 = vrot.lane.b32.xlu0 %v4105, 24
    %v4279 = vpop.permute.xlu0 %4278
    %4280 = vrot.lane.b32.xlu0 %v4106, 24
    %v4281 = vpop.permute.xlu0 %4280
    %4282 = vrot.lane.b32.xlu0 %v4107, 24
    %v4283 = vpop.permute.xlu0 %4282
    %v4300 = vsel %vm1050, %v3612, %v4125
    %v4301 = vsel %vm1050, %v3613, %v4127
    %v4302 = vsel %vm1050, %v3614, %v4129
    %v4303 = vsel %vm1050, %v3615, %v4131
    %v4304 = vsel %vm1050, %v3616, %v4133
    %v4305 = vsel %vm1050, %v3617, %v4135
    %v4306 = vsel %vm1050, %v3618, %v4137
    %v4307 = vsel %vm1050, %v3619, %v4139
    %v4308 = vsel %vm1050, %v3620, %v4141
    %v4309 = vsel %vm1050, %v3621, %v4143
    %v4310 = vsel %vm1050, %v3622, %v4145
    %v4311 = vsel %vm1050, %v3623, %v4147
    %v4312 = vsel %vm1050, %v3624, %v4149
    %v4313 = vsel %vm1050, %v3625, %v4151
    %v4314 = vsel %vm1050, %v3626, %v4153
    %v4315 = vsel %vm1050, %v3627, %v4155
    %vm4316 = vcmask 130048
    %v4317 = vsel %vm4316, %v4300, %v4189
    %v4318 = vsel %vm4316, %v4301, %v4191
    %v4319 = vsel %vm4316, %v4302, %v4193
    %v4320 = vsel %vm4316, %v4303, %v4195
    %v4321 = vsel %vm4316, %v4304, %v4197
    %v4322 = vsel %vm4316, %v4305, %v4199
    %v4323 = vsel %vm4316, %v4306, %v4201
    %v4324 = vsel %vm4316, %v4307, %v4203
    %v4325 = vsel %vm4316, %v4308, %v4205
    %v4326 = vsel %vm4316, %v4309, %v4207
    %v4327 = vsel %vm4316, %v4310, %v4209
    %v4328 = vsel %vm4316, %v4311, %v4211
    %v4329 = vsel %vm4316, %v4312, %v4213
    %v4330 = vsel %vm4316, %v4313, %v4215
    %v4331 = vsel %vm4316, %v4314, %v4217
    %v4332 = vsel %vm4316, %v4315, %v4219
    %vm4333 = vcmask 195584
    %v4334 = vsel %vm4333, %v4317, %v4253
    %v4335 = vsel %vm4333, %v4318, %v4255
    %v4336 = vsel %vm4333, %v4319, %v4257
    %v4337 = vsel %vm4333, %v4320, %v4259
    %v4338 = vsel %vm4333, %v4321, %v4261
    %v4339 = vsel %vm4333, %v4322, %v4263
    %v4340 = vsel %vm4333, %v4323, %v4265
    %v4341 = vsel %vm4333, %v4324, %v4267
    %v4342 = vsel %vm4333, %v4325, %v4269
    %v4343 = vsel %vm4333, %v4326, %v4271
    %v4344 = vsel %vm4333, %v4327, %v4273
    %v4345 = vsel %vm4333, %v4328, %v4275
    %v4346 = vsel %vm4333, %v4329, %v4277
    %v4347 = vsel %vm4333, %v4330, %v4279
    %v4348 = vsel %vm4333, %v4331, %v4281
    %v4349 = vsel %vm4333, %v4332, %v4283
    %v4350 = vld [vmem:[%s4] sm:$0x1]
    %v4352 = vlaneseq
    %v4353 = vshrl.u32 %v4352, 7
    %v4354 = vsub.s32 0, %v4353
    %v4355 = vrot.slane %v4350, %v4354
    %v4357 = vadd.f32 %v4334, %v4355
    %v4358 = vadd.f32 %v4335, %v4355
    %v4359 = vadd.f32 %v4336, %v4355
    %v4360 = vadd.f32 %v4337, %v4355
    %v4361 = vadd.f32 %v4338, %v4355
    %v4362 = vadd.f32 %v4339, %v4355
    %v4363 = vadd.f32 %v4340, %v4355
    %v4364 = vadd.f32 %v4341, %v4355
    %v4365 = vadd.f32 %v4342, %v4355
    %v4366 = vadd.f32 %v4343, %v4355
    %v4367 = vadd.f32 %v4344, %v4355
    %v4368 = vadd.f32 %v4345, %v4355
    %v4369 = vadd.f32 %v4346, %v4355
    %v4370 = vadd.f32 %v4347, %v4355
    %v4371 = vadd.f32 %v4348, %v4355
    %v4372 = vadd.f32 %v4349, %v4355
    %vm4373 = vcmp.gt.f32.partialorder %v4357, 0.0
    %vm4374 = vcmp.gt.f32.partialorder %v4358, 0.0
    %vm4375 = vcmp.gt.f32.partialorder %v4359, 0.0
    %vm4376 = vcmp.gt.f32.partialorder %v4360, 0.0
    %vm4377 = vcmp.gt.f32.partialorder %v4361, 0.0
    %vm4378 = vcmp.gt.f32.partialorder %v4362, 0.0
    %vm4379 = vcmp.gt.f32.partialorder %v4363, 0.0
    %vm4380 = vcmp.gt.f32.partialorder %v4364, 0.0
    %vm4381 = vcmp.gt.f32.partialorder %v4365, 0.0
    %vm4382 = vcmp.gt.f32.partialorder %v4366, 0.0
    %vm4383 = vcmp.gt.f32.partialorder %v4367, 0.0
    %vm4384 = vcmp.gt.f32.partialorder %v4368, 0.0
    %vm4385 = vcmp.gt.f32.partialorder %v4369, 0.0
    %vm4386 = vcmp.gt.f32.partialorder %v4370, 0.0
    %vm4387 = vcmp.gt.f32.partialorder %v4371, 0.0
    %vm4388 = vcmp.gt.f32.partialorder %v4372, 0.0
    %v4389 = vmul.f32 %v4357, 1.442695
    %v4390 = vpow.pop %v4389
    %v4391 = vmul.f32 %v4358, 1.442695
    %v4392 = vpow.pop %v4391
    %v4393 = vmul.f32 %v4359, 1.442695
    %v4394 = vpow.pop %v4393
    %v4395 = vmul.f32 %v4360, 1.442695
    %v4396 = vpow.pop %v4395
    %v4397 = vmul.f32 %v4361, 1.442695
    %v4398 = vpow.pop %v4397
    %v4399 = vmul.f32 %v4362, 1.442695
    %v4400 = vpow.pop %v4399
    %v4401 = vmul.f32 %v4363, 1.442695
    %v4402 = vpow.pop %v4401
    %v4403 = vmul.f32 %v4364, 1.442695
    %v4404 = vpow.pop %v4403
    %v4405 = vmul.f32 %v4365, 1.442695
    %v4406 = vpow.pop %v4405
    %v4407 = vmul.f32 %v4366, 1.442695
    %v4408 = vpow.pop %v4407
    %v4409 = vmul.f32 %v4367, 1.442695
    %v4410 = vpow.pop %v4409
    %v4411 = vmul.f32 %v4368, 1.442695
    %v4412 = vpow.pop %v4411
    %v4413 = vmul.f32 %v4369, 1.442695
    %v4414 = vpow.pop %v4413
    %v4415 = vmul.f32 %v4370, 1.442695
    %v4416 = vpow.pop %v4415
    %v4417 = vmul.f32 %v4371, 1.442695
    %v4418 = vpow.pop %v4417
    %v4419 = vmul.f32 %v4372, 1.442695
    %v4420 = vpow.pop %v4419
    %v4421 = vsub.f32 %v4390, 1.0
    %v4422 = vsub.f32 %v4392, 1.0
    %v4423 = vsub.f32 %v4394, 1.0
    %v4424 = vsub.f32 %v4396, 1.0
    %v4425 = vsub.f32 %v4398, 1.0
    %v4426 = vsub.f32 %v4400, 1.0
    %v4427 = vsub.f32 %v4402, 1.0
    %v4428 = vsub.f32 %v4404, 1.0
    %v4429 = vsub.f32 %v4406, 1.0
    %v4430 = vsub.f32 %v4408, 1.0
    %v4431 = vsub.f32 %v4410, 1.0
    %v4432 = vsub.f32 %v4412, 1.0
    %v4433 = vsub.f32 %v4414, 1.0
    %v4434 = vsub.f32 %v4416, 1.0
    %v4435 = vsub.f32 %v4418, 1.0
    %v4436 = vsub.f32 %v4420, 1.0
    %v4437 = vsel %vm4373, %v4357, %v4421
    %v4438 = vsel %vm4374, %v4358, %v4422
    %v4439 = vsel %vm4375, %v4359, %v4423
    %v4440 = vsel %vm4376, %v4360, %v4424
    %v4441 = vsel %vm4377, %v4361, %v4425
    %v4442 = vsel %vm4378, %v4362, %v4426
    %v4443 = vsel %vm4379, %v4363, %v4427
    %v4444 = vsel %vm4380, %v4364, %v4428
    %v4445 = vsel %vm4381, %v4365, %v4429
    %v4446 = vsel %vm4382, %v4366, %v4430
    %v4447 = vsel %vm4383, %v4367, %v4431
    %v4448 = vsel %vm4384, %v4368, %v4432
    %v4449 = vsel %vm4385, %v4369, %v4433
    %v4450 = vsel %vm4386, %v4370, %v4434
    %v4451 = vsel %vm4387, %v4371, %v4435
    %v4452 = vsel %vm4388, %v4372, %v4436
    %vm4453 = vcmask 261120
    %4454 = vst.msk [vmem:[%s5] sm:$0xff] %vm4453, %v4437
    %4455 = vst.msk [vmem:[%s5 + $0x8] sm:$0xff] %vm4453, %v4438
    %4456 = vst.msk [vmem:[%s5 + $0x10] sm:$0xff] %vm4453, %v4439
    %4457 = vst.msk [vmem:[%s5 + $0x18] sm:$0xff] %vm4453, %v4440
    %4458 = vst.msk [vmem:[%s5 + $0x20] sm:$0xff] %vm4453, %v4441
    %4459 = vst.msk [vmem:[%s5 + $0x28] sm:$0xff] %vm4453, %v4442
    %4460 = vst.msk [vmem:[%s5 + $0x30] sm:$0xff] %vm4453, %v4443
    %4461 = vst.msk [vmem:[%s5 + $0x38] sm:$0xff] %vm4453, %v4444
    %4462 = vst.msk [vmem:[%s5 + $0x40] sm:$0xff] %vm4453, %v4445
    %4463 = vst.msk [vmem:[%s5 + $0x48] sm:$0xff] %vm4453, %v4446
    %4464 = vst.msk [vmem:[%s5 + $0x50] sm:$0xff] %vm4453, %v4447
    %4465 = vst.msk [vmem:[%s5 + $0x58] sm:$0xff] %vm4453, %v4448
    %4466 = vst.msk [vmem:[%s5 + $0x60] sm:$0xff] %vm4453, %v4449
    %4467 = vst.msk [vmem:[%s5 + $0x68] sm:$0xff] %vm4453, %v4450
    %4468 = vst.msk [vmem:[%s5 + $0x70] sm:$0xff] %vm4453, %v4451
    %4469 = vst.msk [vmem:[%s5 + $0x78] sm:$0xff] %vm4453, %v4452
  $region29: #{gat_encoder_forward.2} parent=0 // pred_fallthru
    _
  // Predicated region
  $region30: #{gat_encoder_forward.2} parent=0 // pred_check
    _
  $region31: #{gat_encoder_forward.2} parent=0 // pred_check_branch
    %4471 = sbr.rel (0) target = $region33
  $region32: #{gat_encoder_forward.2} parent=0 // pred_region
    _
  $region33: #{gat_encoder_forward.2} parent=0 // pred_fallthru
    _
  // Predicated region
  $region34: #{gat_encoder_forward.2} parent=0 // pred_check
    _
  $region35: #{gat_encoder_forward.2} parent=0 // pred_check_branch
    %4473 = sbr.rel (0) target = $region37
  $region36: #{gat_encoder_forward.2} parent=0 // pred_region
    _
  $region37: #{gat_encoder_forward.2} parent=0 // pred_fallthru
    _

// kernel: gat_encoder_forward.3
$region0: #{gat_encoder_forward.3}
  #allocation0 [shape = 'u32[]', space=smem, size = 0x4, offset = 0x4, fixed_abs, tag = 'smem constant byte address 0x4 - core index']
  #allocation1 [shape = 'u32[144,128]{1,0:T(1,128)}', space=vmem, size = 0x12000, scoped, tag = 'internal scratch']
  #allocation2 [shape = 'f32[1,128,1]{2,1,0:T(8,128)}', space=vmem, size = 0x10000, scoped, tag = 'scratch operand']
  #allocation3 [shape = 'f32[1,128,1]{2,1,0:T(8,128)}', space=vmem, size = 0x10000, scoped, tag = 'scratch operand']
  #allocation4 [shape = 'f32[1,128,16]{2,1,0:T(8,128)}', space=vmem, size = 0x10000, scoped, tag = 'scratch operand']
  %s0 = inlined_call_operand.vmem [shape: f32[128,1], index: 0, kind: input, shape index: {}]
  %s1 = inlined_call_operand.vmem [shape: f32[1,128], index: 1, kind: input, shape index: {}]
  %s2 = inlined_call_operand.vmem [shape: bf16[128,16], index: 2, kind: input, shape index: {}]
  %s3 = inlined_call_operand.vmem [shape: bf16[1,128,128], index: 3, kind: input, shape index: {}]
  %s4 = inlined_call_operand.vmem [shape: f32[1,16], index: 4, kind: input, shape index: {}]
  %s5 = inlined_call_operand.vmem [shape: f32[128,16], index: 5, kind: output, shape index: {}]
  %s6 = sld [smem:[#allocation0]]
  $region38: #{gat_encoder_forward.3} parent=0
    _
  %s8 = ssub.s32 1, %s6
  %s9 = scalar_select 0, %s8, %s6
  // Predicated region
  $region2: #{gat_encoder_forward.3} parent=0 // pred_check
    _
  $region3: #{gat_encoder_forward.3} parent=0 // pred_check_branch
    %11 = sbr.rel (0) target = $region5
  $region4: #{gat_encoder_forward.3} parent=0 // pred_region
    _
  $region5: #{gat_encoder_forward.3} parent=0 // pred_fallthru
    _
  // Predicated region
  $region6: #{gat_encoder_forward.3} parent=0 // pred_check
    _
  $region7: #{gat_encoder_forward.3} parent=0 // pred_check_branch
    %13 = sbr.rel (0) target = $region9
  $region8: #{gat_encoder_forward.3} parent=0 // pred_region
    _
  $region9: #{gat_encoder_forward.3} parent=0 // pred_fallthru
    _
  // Predicated region
  $region10: #{gat_encoder_forward.3} parent=0 // pred_check
    _
  $region11: #{gat_encoder_forward.3} parent=0 // pred_check_branch
    %15 = sbr.rel (0) target = $region13
  $region12: #{gat_encoder_forward.3} parent=0 // pred_region
    _
  $region13: #{gat_encoder_forward.3} parent=0 // pred_fallthru
    _
  // Predicated region
  $region14: #{gat_encoder_forward.3} parent=0 // pred_check
    _
  $region15: #{gat_encoder_forward.3} parent=0 // pred_check_branch
    %17 = sbr.rel (0) target = $region17
  $region16: #{gat_encoder_forward.3} parent=0 // pred_region
    _
  $region17: #{gat_encoder_forward.3} parent=0 // pred_fallthru
    _
  // Predicated region
  $region18: #{gat_encoder_forward.3} parent=0 // pred_check
    _
  $region19: #{gat_encoder_forward.3} parent=0 // pred_check_branch
    %19 = sbr.rel (0) target = $region21
  $region20: #{gat_encoder_forward.3} parent=0 // pred_region
    _
  $region21: #{gat_encoder_forward.3} parent=0 // pred_fallthru
    _
  %p21 = scmp.eq.s32.totalorder 0, 0
  // Predicated region
  $region22: #{gat_encoder_forward.3} parent=0 // pred_check
    %p22 = pneg %p21
  $region23: #{gat_encoder_forward.3} parent=0 // pred_check_branch
    %24 = sbr.rel (%p22) target = $region25
  $region24: #{gat_encoder_forward.3} parent=0 // pred_region
    %vm25 = vcmask 7168
    %26 = vst.msk [vmem:[#allocation2] sm:$0xff] %vm25, -inf
    %27 = vst.msk [vmem:[#allocation2 + $0x8] sm:$0xff] %vm25, -inf
    %28 = vst.msk [vmem:[#allocation2 + $0x10] sm:$0xff] %vm25, -inf
    %29 = vst.msk [vmem:[#allocation2 + $0x18] sm:$0xff] %vm25, -inf
    %30 = vst.msk [vmem:[#allocation2 + $0x20] sm:$0xff] %vm25, -inf
    %31 = vst.msk [vmem:[#allocation2 + $0x28] sm:$0xff] %vm25, -inf
    %32 = vst.msk [vmem:[#allocation2 + $0x30] sm:$0xff] %vm25, -inf
    %33 = vst.msk [vmem:[#allocation2 + $0x38] sm:$0xff] %vm25, -inf
    %34 = vst.msk [vmem:[#allocation2 + $0x40] sm:$0xff] %vm25, -inf
    %35 = vst.msk [vmem:[#allocation2 + $0x48] sm:$0xff] %vm25, -inf
    %36 = vst.msk [vmem:[#allocation2 + $0x50] sm:$0xff] %vm25, -inf
    %37 = vst.msk [vmem:[#allocation2 + $0x58] sm:$0xff] %vm25, -inf
    %38 = vst.msk [vmem:[#allocation2 + $0x60] sm:$0xff] %vm25, -inf
    %39 = vst.msk [vmem:[#allocation2 + $0x68] sm:$0xff] %vm25, -inf
    %40 = vst.msk [vmem:[#allocation2 + $0x70] sm:$0xff] %vm25, -inf
    %41 = vst.msk [vmem:[#allocation2 + $0x78] sm:$0xff] %vm25, -inf
    %42 = vst.msk [vmem:[#allocation3] sm:$0xff] %vm25, 0.0
    %43 = vst.msk [vmem:[#allocation3 + $0x8] sm:$0xff] %vm25, 0.0
    %44 = vst.msk [vmem:[#allocation3 + $0x10] sm:$0xff] %vm25, 0.0
    %45 = vst.msk [vmem:[#allocation3 + $0x18] sm:$0xff] %vm25, 0.0
    %46 = vst.msk [vmem:[#allocation3 + $0x20] sm:$0xff] %vm25, 0.0
    %47 = vst.msk [vmem:[#allocation3 + $0x28] sm:$0xff] %vm25, 0.0
    %48 = vst.msk [vmem:[#allocation3 + $0x30] sm:$0xff] %vm25, 0.0
    %49 = vst.msk [vmem:[#allocation3 + $0x38] sm:$0xff] %vm25, 0.0
    %50 = vst.msk [vmem:[#allocation3 + $0x40] sm:$0xff] %vm25, 0.0
    %51 = vst.msk [vmem:[#allocation3 + $0x48] sm:$0xff] %vm25, 0.0
    %52 = vst.msk [vmem:[#allocation3 + $0x50] sm:$0xff] %vm25, 0.0
    %53 = vst.msk [vmem:[#allocation3 + $0x58] sm:$0xff] %vm25, 0.0
    %54 = vst.msk [vmem:[#allocation3 + $0x60] sm:$0xff] %vm25, 0.0
    %55 = vst.msk [vmem:[#allocation3 + $0x68] sm:$0xff] %vm25, 0.0
    %56 = vst.msk [vmem:[#allocation3 + $0x70] sm:$0xff] %vm25, 0.0
    %57 = vst.msk [vmem:[#allocation3 + $0x78] sm:$0xff] %vm25, 0.0
    %vm58 = vcmask 130048
    %59 = vst.msk [vmem:[#allocation4] sm:$0xff] %vm58, 0.0
    %60 = vst.msk [vmem:[#allocation4 + $0x8] sm:$0xff] %vm58, 0.0
    %61 = vst.msk [vmem:[#allocation4 + $0x10] sm:$0xff] %vm58, 0.0
    %62 = vst.msk [vmem:[#allocation4 + $0x18] sm:$0xff] %vm58, 0.0
    %63 = vst.msk [vmem:[#allocation4 + $0x20] sm:$0xff] %vm58, 0.0
    %64 = vst.msk [vmem:[#allocation4 + $0x28] sm:$0xff] %vm58, 0.0
    %65 = vst.msk [vmem:[#allocation4 + $0x30] sm:$0xff] %vm58, 0.0
    %66 = vst.msk [vmem:[#allocation4 + $0x38] sm:$0xff] %vm58, 0.0
    %67 = vst.msk [vmem:[#allocation4 + $0x40] sm:$0xff] %vm58, 0.0
    %68 = vst.msk [vmem:[#allocation4 + $0x48] sm:$0xff] %vm58, 0.0
    %69 = vst.msk [vmem:[#allocation4 + $0x50] sm:$0xff] %vm58, 0.0
    %70 = vst.msk [vmem:[#allocation4 + $0x58] sm:$0xff] %vm58, 0.0
    %71 = vst.msk [vmem:[#allocation4 + $0x60] sm:$0xff] %vm58, 0.0
    %72 = vst.msk [vmem:[#allocation4 + $0x68] sm:$0xff] %vm58, 0.0
    %73 = vst.msk [vmem:[#allocation4 + $0x70] sm:$0xff] %vm58, 0.0
    %74 = vst.msk [vmem:[#allocation4 + $0x78] sm:$0xff] %vm58, 0.0
  $region25: #{gat_encoder_forward.3} parent=0 // pred_fallthru
    _
  %v75 = vld [vmem:[%s0] sm:$0xff]
  %v76 = vld [vmem:[%s0 + $0x8] sm:$0xff]
  %v77 = vld [vmem:[%s0 + $0x10] sm:$0xff]
  %v78 = vld [vmem:[%s0 + $0x18] sm:$0xff]
  %v79 = vld [vmem:[%s0 + $0x20] sm:$0xff]
  %v80 = vld [vmem:[%s0 + $0x28] sm:$0xff]
  %v81 = vld [vmem:[%s0 + $0x30] sm:$0xff]
  %v82 = vld [vmem:[%s0 + $0x38] sm:$0xff]
  %v83 = vld [vmem:[%s0 + $0x40] sm:$0xff]
  %v84 = vld [vmem:[%s0 + $0x48] sm:$0xff]
  %v85 = vld [vmem:[%s0 + $0x50] sm:$0xff]
  %v86 = vld [vmem:[%s0 + $0x58] sm:$0xff]
  %v87 = vld [vmem:[%s0 + $0x60] sm:$0xff]
  %v88 = vld [vmem:[%s0 + $0x68] sm:$0xff]
  %v89 = vld [vmem:[%s0 + $0x70] sm:$0xff]
  %v90 = vld [vmem:[%s0 + $0x78] sm:$0xff]
  %v91 = vld [vmem:[%s2] sm:$0xf]
  %v92 = vld [vmem:[%s2 + $0x4] sm:$0xf]
  %v93 = vld [vmem:[%s2 + $0x8] sm:$0xf]
  %v94 = vld [vmem:[%s2 + $0xc] sm:$0xf]
  %v95 = vld [vmem:[%s2 + $0x10] sm:$0xf]
  %v96 = vld [vmem:[%s2 + $0x14] sm:$0xf]
  %v97 = vld [vmem:[%s2 + $0x18] sm:$0xf]
  %v98 = vld [vmem:[%s2 + $0x1c] sm:$0xf]
  %v99 = vld [vmem:[%s2 + $0x20] sm:$0xf]
  %v100 = vld [vmem:[%s2 + $0x24] sm:$0xf]
  %v101 = vld [vmem:[%s2 + $0x28] sm:$0xf]
  %v102 = vld [vmem:[%s2 + $0x2c] sm:$0xf]
  %v103 = vld [vmem:[%s2 + $0x30] sm:$0xf]
  %v104 = vld [vmem:[%s2 + $0x34] sm:$0xf]
  %v105 = vld [vmem:[%s2 + $0x38] sm:$0xf]
  %v106 = vld [vmem:[%s2 + $0x3c] sm:$0xf]
  %v107 = vld [vmem:[%s1] sm:$0x1]
  %109 = vset.pattern.permute.xlu0 0
  %110 = vperm.xlu0 %109, %v75
  %v111 = vpop.permute.xlu0 %110
  %114 = vset.pattern.permute.xlu0 0
  %115 = vperm.xlu0 %114, %v76
  %v116 = vpop.permute.xlu0 %115
  %119 = vset.pattern.permute.xlu0 0
  %120 = vperm.xlu0 %119, %v77
  %v121 = vpop.permute.xlu0 %120
  %124 = vset.pattern.permute.xlu0 0
  %125 = vperm.xlu0 %124, %v78
  %v126 = vpop.permute.xlu0 %125
  %129 = vset.pattern.permute.xlu0 0
  %130 = vperm.xlu0 %129, %v79
  %v131 = vpop.permute.xlu0 %130
  %134 = vset.pattern.permute.xlu0 0
  %135 = vperm.xlu0 %134, %v80
  %v136 = vpop.permute.xlu0 %135
  %139 = vset.pattern.permute.xlu0 0
  %140 = vperm.xlu0 %139, %v81
  %v141 = vpop.permute.xlu0 %140
  %144 = vset.pattern.permute.xlu0 0
  %145 = vperm.xlu0 %144, %v82
  %v146 = vpop.permute.xlu0 %145
  %149 = vset.pattern.permute.xlu0 0
  %150 = vperm.xlu0 %149, %v83
  %v151 = vpop.permute.xlu0 %150
  %154 = vset.pattern.permute.xlu0 0
  %155 = vperm.xlu0 %154, %v84
  %v156 = vpop.permute.xlu0 %155
  %159 = vset.pattern.permute.xlu0 0
  %160 = vperm.xlu0 %159, %v85
  %v161 = vpop.permute.xlu0 %160
  %164 = vset.pattern.permute.xlu0 0
  %165 = vperm.xlu0 %164, %v86
  %v166 = vpop.permute.xlu0 %165
  %169 = vset.pattern.permute.xlu0 0
  %170 = vperm.xlu0 %169, %v87
  %v171 = vpop.permute.xlu0 %170
  %174 = vset.pattern.permute.xlu0 0
  %175 = vperm.xlu0 %174, %v88
  %v176 = vpop.permute.xlu0 %175
  %179 = vset.pattern.permute.xlu0 0
  %180 = vperm.xlu0 %179, %v89
  %v181 = vpop.permute.xlu0 %180
  %184 = vset.pattern.permute.xlu0 0
  %185 = vperm.xlu0 %184, %v90
  %v186 = vpop.permute.xlu0 %185
  %v189 = vlaneseq
  %v190 = vshrl.u32 %v189, 7
  %v191 = vsub.s32 0, %v190
  %v192 = vrot.slane %v107, %v191
  %v194 = vadd.f32 %v111, %v192
  %v195 = vadd.f32 %v116, %v192
  %v196 = vadd.f32 %v121, %v192
  %v197 = vadd.f32 %v126, %v192
  %v198 = vadd.f32 %v131, %v192
  %v199 = vadd.f32 %v136, %v192
  %v200 = vadd.f32 %v141, %v192
  %v201 = vadd.f32 %v146, %v192
  %v202 = vadd.f32 %v151, %v192
  %v203 = vadd.f32 %v156, %v192
  %v204 = vadd.f32 %v161, %v192
  %v205 = vadd.f32 %v166, %v192
  %v206 = vadd.f32 %v171, %v192
  %v207 = vadd.f32 %v176, %v192
  %v208 = vadd.f32 %v181, %v192
  %v209 = vadd.f32 %v186, %v192
  %v210 = vld [vmem:[%s3] sm:$0xf]
  %v211 = vld [vmem:[%s3 + $0x4] sm:$0xf]
  %v212 = vld [vmem:[%s3 + $0x8] sm:$0xf]
  %v213 = vld [vmem:[%s3 + $0xc] sm:$0xf]
  %v214 = vld [vmem:[%s3 + $0x10] sm:$0xf]
  %v215 = vld [vmem:[%s3 + $0x14] sm:$0xf]
  %v216 = vld [vmem:[%s3 + $0x18] sm:$0xf]
  %v217 = vld [vmem:[%s3 + $0x1c] sm:$0xf]
  %v218 = vld [vmem:[%s3 + $0x20] sm:$0xf]
  %v219 = vld [vmem:[%s3 + $0x24] sm:$0xf]
  %v220 = vld [vmem:[%s3 + $0x28] sm:$0xf]
  %v221 = vld [vmem:[%s3 + $0x2c] sm:$0xf]
  %v222 = vld [vmem:[%s3 + $0x30] sm:$0xf]
  %v223 = vld [vmem:[%s3 + $0x34] sm:$0xf]
  %v224 = vld [vmem:[%s3 + $0x38] sm:$0xf]
  %v225 = vld [vmem:[%s3 + $0x3c] sm:$0xf]
  %v226 = vunpack.c.l.bf16 %v210
  %v227 = vunpack.c.l.bf16 %v211
  %v228 = vunpack.c.l.bf16 %v212
  %v229 = vunpack.c.l.bf16 %v213
  %v230 = vunpack.c.l.bf16 %v214
  %v231 = vunpack.c.l.bf16 %v215
  %v232 = vunpack.c.l.bf16 %v216
  %v233 = vunpack.c.l.bf16 %v217
  %v234 = vunpack.c.l.bf16 %v218
  %v235 = vunpack.c.l.bf16 %v219
  %v236 = vunpack.c.l.bf16 %v220
  %v237 = vunpack.c.l.bf16 %v221
  %v238 = vunpack.c.l.bf16 %v222
  %v239 = vunpack.c.l.bf16 %v223
  %v240 = vunpack.c.l.bf16 %v224
  %v241 = vunpack.c.l.bf16 %v225
  %v242 = vadd.f32 %v194, %v226
  %v243 = vadd.f32 %v195, %v227
  %v244 = vadd.f32 %v196, %v228
  %v245 = vadd.f32 %v197, %v229
  %v246 = vadd.f32 %v198, %v230
  %v247 = vadd.f32 %v199, %v231
  %v248 = vadd.f32 %v200, %v232
  %v249 = vadd.f32 %v201, %v233
  %v250 = vadd.f32 %v202, %v234
  %v251 = vadd.f32 %v203, %v235
  %v252 = vadd.f32 %v204, %v236
  %v253 = vadd.f32 %v205, %v237
  %v254 = vadd.f32 %v206, %v238
  %v255 = vadd.f32 %v207, %v239
  %v256 = vadd.f32 %v208, %v240
  %v257 = vadd.f32 %v209, %v241
  %v258 = vmul.f32 %v242, 0.2
  %v259 = vmul.f32 %v243, 0.2
  %v260 = vmul.f32 %v244, 0.2
  %v261 = vmul.f32 %v245, 0.2
  %v262 = vmul.f32 %v246, 0.2
  %v263 = vmul.f32 %v247, 0.2
  %v264 = vmul.f32 %v248, 0.2
  %v265 = vmul.f32 %v249, 0.2
  %v266 = vmul.f32 %v250, 0.2
  %v267 = vmul.f32 %v251, 0.2
  %v268 = vmul.f32 %v252, 0.2
  %v269 = vmul.f32 %v253, 0.2
  %v270 = vmul.f32 %v254, 0.2
  %v271 = vmul.f32 %v255, 0.2
  %v272 = vmul.f32 %v256, 0.2
  %v273 = vmul.f32 %v257, 0.2
  %v274 = vmax.f32 %v242, %v258
  %v275 = vmax.f32 %v243, %v259
  %v276 = vmax.f32 %v244, %v260
  %v277 = vmax.f32 %v245, %v261
  %v278 = vmax.f32 %v246, %v262
  %v279 = vmax.f32 %v247, %v263
  %v280 = vmax.f32 %v248, %v264
  %v281 = vmax.f32 %v249, %v265
  %v282 = vmax.f32 %v250, %v266
  %v283 = vmax.f32 %v251, %v267
  %v284 = vmax.f32 %v252, %v268
  %v285 = vmax.f32 %v253, %v269
  %v286 = vmax.f32 %v254, %v270
  %v287 = vmax.f32 %v255, %v271
  %v288 = vmax.f32 %v256, %v272
  %v289 = vmax.f32 %v257, %v273
  %v290 = vld [vmem:[#allocation2] sm:$0xff]
  %v291 = vld [vmem:[#allocation2 + $0x8] sm:$0xff]
  %v292 = vld [vmem:[#allocation2 + $0x10] sm:$0xff]
  %v293 = vld [vmem:[#allocation2 + $0x18] sm:$0xff]
  %v294 = vld [vmem:[#allocation2 + $0x20] sm:$0xff]
  %v295 = vld [vmem:[#allocation2 + $0x28] sm:$0xff]
  %v296 = vld [vmem:[#allocation2 + $0x30] sm:$0xff]
  %v297 = vld [vmem:[#allocation2 + $0x38] sm:$0xff]
  %v298 = vld [vmem:[#allocation2 + $0x40] sm:$0xff]
  %v299 = vld [vmem:[#allocation2 + $0x48] sm:$0xff]
  %v300 = vld [vmem:[#allocation2 + $0x50] sm:$0xff]
  %v301 = vld [vmem:[#allocation2 + $0x58] sm:$0xff]
  %v302 = vld [vmem:[#allocation2 + $0x60] sm:$0xff]
  %v303 = vld [vmem:[#allocation2 + $0x68] sm:$0xff]
  %v304 = vld [vmem:[#allocation2 + $0x70] sm:$0xff]
  %v305 = vld [vmem:[#allocation2 + $0x78] sm:$0xff]
  %306 = vmax.xlane.f32.xlu0 %v274
  %v307 = vpop.xlane.xlu0 %306
  %308 = vmax.xlane.f32.xlu0 %v275
  %v309 = vpop.xlane.xlu0 %308
  %310 = vmax.xlane.f32.xlu0 %v276
  %v311 = vpop.xlane.xlu0 %310
  %312 = vmax.xlane.f32.xlu0 %v277
  %v313 = vpop.xlane.xlu0 %312
  %314 = vmax.xlane.f32.xlu0 %v278
  %v315 = vpop.xlane.xlu0 %314
  %316 = vmax.xlane.f32.xlu0 %v279
  %v317 = vpop.xlane.xlu0 %316
  %318 = vmax.xlane.f32.xlu0 %v280
  %v319 = vpop.xlane.xlu0 %318
  %320 = vmax.xlane.f32.xlu0 %v281
  %v321 = vpop.xlane.xlu0 %320
  %322 = vmax.xlane.f32.xlu0 %v282
  %v323 = vpop.xlane.xlu0 %322
  %324 = vmax.xlane.f32.xlu0 %v283
  %v325 = vpop.xlane.xlu0 %324
  %326 = vmax.xlane.f32.xlu0 %v284
  %v327 = vpop.xlane.xlu0 %326
  %328 = vmax.xlane.f32.xlu0 %v285
  %v329 = vpop.xlane.xlu0 %328
  %330 = vmax.xlane.f32.xlu0 %v286
  %v331 = vpop.xlane.xlu0 %330
  %332 = vmax.xlane.f32.xlu0 %v287
  %v333 = vpop.xlane.xlu0 %332
  %334 = vmax.xlane.f32.xlu0 %v288
  %v335 = vpop.xlane.xlu0 %334
  %336 = vmax.xlane.f32.xlu0 %v289
  %v337 = vpop.xlane.xlu0 %336
  %v338 = vmax.f32 %v290, %v307
  %v339 = vmax.f32 %v291, %v309
  %v340 = vmax.f32 %v292, %v311
  %v341 = vmax.f32 %v293, %v313
  %v342 = vmax.f32 %v294, %v315
  %v343 = vmax.f32 %v295, %v317
  %v344 = vmax.f32 %v296, %v319
  %v345 = vmax.f32 %v297, %v321
  %v346 = vmax.f32 %v298, %v323
  %v347 = vmax.f32 %v299, %v325
  %v348 = vmax.f32 %v300, %v327
  %v349 = vmax.f32 %v301, %v329
  %v350 = vmax.f32 %v302, %v331
  %v351 = vmax.f32 %v303, %v333
  %v352 = vmax.f32 %v304, %v335
  %v353 = vmax.f32 %v305, %v337
  %v354 = vsub.f32 %v290, %v338
  %v355 = vsub.f32 %v291, %v339
  %v356 = vsub.f32 %v292, %v340
  %v357 = vsub.f32 %v293, %v341
  %v358 = vsub.f32 %v294, %v342
  %v359 = vsub.f32 %v295, %v343
  %v360 = vsub.f32 %v296, %v344
  %v361 = vsub.f32 %v297, %v345
  %v362 = vsub.f32 %v298, %v346
  %v363 = vsub.f32 %v299, %v347
  %v364 = vsub.f32 %v300, %v348
  %v365 = vsub.f32 %v301, %v349
  %v366 = vsub.f32 %v302, %v350
  %v367 = vsub.f32 %v303, %v351
  %v368 = vsub.f32 %v304, %v352
  %v369 = vsub.f32 %v305, %v353
  %v370 = vmul.f32 %v354, 1.442695
  %v371 = vpow.pop %v370
  %v372 = vmul.f32 %v355, 1.442695
  %v373 = vpow.pop %v372
  %v374 = vmul.f32 %v356, 1.442695
  %v375 = vpow.pop %v374
  %v376 = vmul.f32 %v357, 1.442695
  %v377 = vpow.pop %v376
  %v378 = vmul.f32 %v358, 1.442695
  %v379 = vpow.pop %v378
  %v380 = vmul.f32 %v359, 1.442695
  %v381 = vpow.pop %v380
  %v382 = vmul.f32 %v360, 1.442695
  %v383 = vpow.pop %v382
  %v384 = vmul.f32 %v361, 1.442695
  %v385 = vpow.pop %v384
  %v386 = vmul.f32 %v362, 1.442695
  %v387 = vpow.pop %v386
  %v388 = vmul.f32 %v363, 1.442695
  %v389 = vpow.pop %v388
  %v390 = vmul.f32 %v364, 1.442695
  %v391 = vpow.pop %v390
  %v392 = vmul.f32 %v365, 1.442695
  %v393 = vpow.pop %v392
  %v394 = vmul.f32 %v366, 1.442695
  %v395 = vpow.pop %v394
  %v396 = vmul.f32 %v367, 1.442695
  %v397 = vpow.pop %v396
  %v398 = vmul.f32 %v368, 1.442695
  %v399 = vpow.pop %v398
  %v400 = vmul.f32 %v369, 1.442695
  %v401 = vpow.pop %v400
  %403 = vset.pattern.permute.xlu0 0
  %404 = vperm.xlu0 %403, %v338
  %v405 = vpop.permute.xlu0 %404
  %408 = vset.pattern.permute.xlu0 0
  %409 = vperm.xlu0 %408, %v339
  %v410 = vpop.permute.xlu0 %409
  %413 = vset.pattern.permute.xlu0 0
  %414 = vperm.xlu0 %413, %v340
  %v415 = vpop.permute.xlu0 %414
  %418 = vset.pattern.permute.xlu0 0
  %419 = vperm.xlu0 %418, %v341
  %v420 = vpop.permute.xlu0 %419
  %423 = vset.pattern.permute.xlu0 0
  %424 = vperm.xlu0 %423, %v342
  %v425 = vpop.permute.xlu0 %424
  %428 = vset.pattern.permute.xlu0 0
  %429 = vperm.xlu0 %428, %v343
  %v430 = vpop.permute.xlu0 %429
  %433 = vset.pattern.permute.xlu0 0
  %434 = vperm.xlu0 %433, %v344
  %v435 = vpop.permute.xlu0 %434
  %438 = vset.pattern.permute.xlu0 0
  %439 = vperm.xlu0 %438, %v345
  %v440 = vpop.permute.xlu0 %439
  %443 = vset.pattern.permute.xlu0 0
  %444 = vperm.xlu0 %443, %v346
  %v445 = vpop.permute.xlu0 %444
  %448 = vset.pattern.permute.xlu0 0
  %449 = vperm.xlu0 %448, %v347
  %v450 = vpop.permute.xlu0 %449
  %453 = vset.pattern.permute.xlu0 0
  %454 = vperm.xlu0 %453, %v348
  %v455 = vpop.permute.xlu0 %454
  %458 = vset.pattern.permute.xlu0 0
  %459 = vperm.xlu0 %458, %v349
  %v460 = vpop.permute.xlu0 %459
  %463 = vset.pattern.permute.xlu0 0
  %464 = vperm.xlu0 %463, %v350
  %v465 = vpop.permute.xlu0 %464
  %468 = vset.pattern.permute.xlu0 0
  %469 = vperm.xlu0 %468, %v351
  %v470 = vpop.permute.xlu0 %469
  %473 = vset.pattern.permute.xlu0 0
  %474 = vperm.xlu0 %473, %v352
  %v475 = vpop.permute.xlu0 %474
  %478 = vset.pattern.permute.xlu0 0
  %479 = vperm.xlu0 %478, %v353
  %v480 = vpop.permute.xlu0 %479
  %v482 = vsub.f32 %v274, %v405
  %v483 = vsub.f32 %v275, %v410
  %v484 = vsub.f32 %v276, %v415
  %v485 = vsub.f32 %v277, %v420
  %v486 = vsub.f32 %v278, %v425
  %v487 = vsub.f32 %v279, %v430
  %v488 = vsub.f32 %v280, %v435
  %v489 = vsub.f32 %v281, %v440
  %v490 = vsub.f32 %v282, %v445
  %v491 = vsub.f32 %v283, %v450
  %v492 = vsub.f32 %v284, %v455
  %v493 = vsub.f32 %v285, %v460
  %v494 = vsub.f32 %v286, %v465
  %v495 = vsub.f32 %v287, %v470
  %v496 = vsub.f32 %v288, %v475
  %v497 = vsub.f32 %v289, %v480
  %v498 = vmul.f32 %v482, 1.442695
  %v499 = vpow.pop %v498
  %v500 = vmul.f32 %v483, 1.442695
  %v501 = vpow.pop %v500
  %v502 = vmul.f32 %v484, 1.442695
  %v503 = vpow.pop %v502
  %v504 = vmul.f32 %v485, 1.442695
  %v505 = vpow.pop %v504
  %v506 = vmul.f32 %v486, 1.442695
  %v507 = vpow.pop %v506
  %v508 = vmul.f32 %v487, 1.442695
  %v509 = vpow.pop %v508
  %v510 = vmul.f32 %v488, 1.442695
  %v511 = vpow.pop %v510
  %v512 = vmul.f32 %v489, 1.442695
  %v513 = vpow.pop %v512
  %v514 = vmul.f32 %v490, 1.442695
  %v515 = vpow.pop %v514
  %v516 = vmul.f32 %v491, 1.442695
  %v517 = vpow.pop %v516
  %v518 = vmul.f32 %v492, 1.442695
  %v519 = vpow.pop %v518
  %v520 = vmul.f32 %v493, 1.442695
  %v521 = vpow.pop %v520
  %v522 = vmul.f32 %v494, 1.442695
  %v523 = vpow.pop %v522
  %v524 = vmul.f32 %v495, 1.442695
  %v525 = vpow.pop %v524
  %v526 = vmul.f32 %v496, 1.442695
  %v527 = vpow.pop %v526
  %v528 = vmul.f32 %v497, 1.442695
  %v529 = vpow.pop %v528
  %v530 = vld [vmem:[#allocation3] sm:$0xff]
  %v531 = vld [vmem:[#allocation3 + $0x8] sm:$0xff]
  %v532 = vld [vmem:[#allocation3 + $0x10] sm:$0xff]
  %v533 = vld [vmem:[#allocation3 + $0x18] sm:$0xff]
  %v534 = vld [vmem:[#allocation3 + $0x20] sm:$0xff]
  %v535 = vld [vmem:[#allocation3 + $0x28] sm:$0xff]
  %v536 = vld [vmem:[#allocation3 + $0x30] sm:$0xff]
  %v537 = vld [vmem:[#allocation3 + $0x38] sm:$0xff]
  %v538 = vld [vmem:[#allocation3 + $0x40] sm:$0xff]
  %v539 = vld [vmem:[#allocation3 + $0x48] sm:$0xff]
  %v540 = vld [vmem:[#allocation3 + $0x50] sm:$0xff]
  %v541 = vld [vmem:[#allocation3 + $0x58] sm:$0xff]
  %v542 = vld [vmem:[#allocation3 + $0x60] sm:$0xff]
  %v543 = vld [vmem:[#allocation3 + $0x68] sm:$0xff]
  %v544 = vld [vmem:[#allocation3 + $0x70] sm:$0xff]
  %v545 = vld [vmem:[#allocation3 + $0x78] sm:$0xff]
  %v546 = vmul.f32 %v371, %v530
  %v547 = vmul.f32 %v373, %v531
  %v548 = vmul.f32 %v375, %v532
  %v549 = vmul.f32 %v377, %v533
  %v550 = vmul.f32 %v379, %v534
  %v551 = vmul.f32 %v381, %v535
  %v552 = vmul.f32 %v383, %v536
  %v553 = vmul.f32 %v385, %v537
  %v554 = vmul.f32 %v387, %v538
  %v555 = vmul.f32 %v389, %v539
  %v556 = vmul.f32 %v391, %v540
  %v557 = vmul.f32 %v393, %v541
  %v558 = vmul.f32 %v395, %v542
  %v559 = vmul.f32 %v397, %v543
  %v560 = vmul.f32 %v399, %v544
  %v561 = vmul.f32 %v401, %v545
  %562 = vadd.xlane.f32.xlu0 %v499
  %v563 = vpop.xlane.xlu0 %562
  %564 = vadd.xlane.f32.xlu0 %v501
  %v565 = vpop.xlane.xlu0 %564
  %566 = vadd.xlane.f32.xlu0 %v503
  %v567 = vpop.xlane.xlu0 %566
  %568 = vadd.xlane.f32.xlu0 %v505
  %v569 = vpop.xlane.xlu0 %568
  %570 = vadd.xlane.f32.xlu0 %v507
  %v571 = vpop.xlane.xlu0 %570
  %572 = vadd.xlane.f32.xlu0 %v509
  %v573 = vpop.xlane.xlu0 %572
  %574 = vadd.xlane.f32.xlu0 %v511
  %v575 = vpop.xlane.xlu0 %574
  %576 = vadd.xlane.f32.xlu0 %v513
  %v577 = vpop.xlane.xlu0 %576
  %578 = vadd.xlane.f32.xlu0 %v515
  %v579 = vpop.xlane.xlu0 %578
  %580 = vadd.xlane.f32.xlu0 %v517
  %v581 = vpop.xlane.xlu0 %580
  %582 = vadd.xlane.f32.xlu0 %v519
  %v583 = vpop.xlane.xlu0 %582
  %584 = vadd.xlane.f32.xlu0 %v521
  %v585 = vpop.xlane.xlu0 %584
  %586 = vadd.xlane.f32.xlu0 %v523
  %v587 = vpop.xlane.xlu0 %586
  %588 = vadd.xlane.f32.xlu0 %v525
  %v589 = vpop.xlane.xlu0 %588
  %590 = vadd.xlane.f32.xlu0 %v527
  %v591 = vpop.xlane.xlu0 %590
  %592 = vadd.xlane.f32.xlu0 %v529
  %v593 = vpop.xlane.xlu0 %592
  %v594 = vadd.f32 %v546, %v563
  %v595 = vadd.f32 %v547, %v565
  %v596 = vadd.f32 %v548, %v567
  %v597 = vadd.f32 %v549, %v569
  %v598 = vadd.f32 %v550, %v571
  %v599 = vadd.f32 %v551, %v573
  %v600 = vadd.f32 %v552, %v575
  %v601 = vadd.f32 %v553, %v577
  %v602 = vadd.f32 %v554, %v579
  %v603 = vadd.f32 %v555, %v581
  %v604 = vadd.f32 %v556, %v583
  %v605 = vadd.f32 %v557, %v585
  %v606 = vadd.f32 %v558, %v587
  %v607 = vadd.f32 %v559, %v589
  %v608 = vadd.f32 %v560, %v591
  %v609 = vadd.f32 %v561, %v593
  %vm610 = vcmask 7168
  %611 = vst.msk [vmem:[#allocation3] sm:$0xff] %vm610, %v594
  %612 = vst.msk [vmem:[#allocation3 + $0x8] sm:$0xff] %vm610, %v595
  %613 = vst.msk [vmem:[#allocation3 + $0x10] sm:$0xff] %vm610, %v596
  %614 = vst.msk [vmem:[#allocation3 + $0x18] sm:$0xff] %vm610, %v597
  %615 = vst.msk [vmem:[#allocation3 + $0x20] sm:$0xff] %vm610, %v598
  %616 = vst.msk [vmem:[#allocation3 + $0x28] sm:$0xff] %vm610, %v599
  %617 = vst.msk [vmem:[#allocation3 + $0x30] sm:$0xff] %vm610, %v600
  %618 = vst.msk [vmem:[#allocation3 + $0x38] sm:$0xff] %vm610, %v601
  %619 = vst.msk [vmem:[#allocation3 + $0x40] sm:$0xff] %vm610, %v602
  %620 = vst.msk [vmem:[#allocation3 + $0x48] sm:$0xff] %vm610, %v603
  %621 = vst.msk [vmem:[#allocation3 + $0x50] sm:$0xff] %vm610, %v604
  %622 = vst.msk [vmem:[#allocation3 + $0x58] sm:$0xff] %vm610, %v605
  %623 = vst.msk [vmem:[#allocation3 + $0x60] sm:$0xff] %vm610, %v606
  %624 = vst.msk [vmem:[#allocation3 + $0x68] sm:$0xff] %vm610, %v607
  %625 = vst.msk [vmem:[#allocation3 + $0x70] sm:$0xff] %vm610, %v608
  %626 = vst.msk [vmem:[#allocation3 + $0x78] sm:$0xff] %vm610, %v609
  %v627 = vld [vmem:[#allocation4] sm:$0xff]
  %v628 = vld [vmem:[#allocation4 + $0x8] sm:$0xff]
  %v629 = vld [vmem:[#allocation4 + $0x10] sm:$0xff]
  %v630 = vld [vmem:[#allocation4 + $0x18] sm:$0xff]
  %v631 = vld [vmem:[#allocation4 + $0x20] sm:$0xff]
  %v632 = vld [vmem:[#allocation4 + $0x28] sm:$0xff]
  %v633 = vld [vmem:[#allocation4 + $0x30] sm:$0xff]
  %v634 = vld [vmem:[#allocation4 + $0x38] sm:$0xff]
  %v635 = vld [vmem:[#allocation4 + $0x40] sm:$0xff]
  %v636 = vld [vmem:[#allocation4 + $0x48] sm:$0xff]
  %v637 = vld [vmem:[#allocation4 + $0x50] sm:$0xff]
  %v638 = vld [vmem:[#allocation4 + $0x58] sm:$0xff]
  %v639 = vld [vmem:[#allocation4 + $0x60] sm:$0xff]
  %v640 = vld [vmem:[#allocation4 + $0x68] sm:$0xff]
  %v641 = vld [vmem:[#allocation4 + $0x70] sm:$0xff]
  %v642 = vld [vmem:[#allocation4 + $0x78] sm:$0xff]
  %644 = vset.pattern.permute.xlu0 0
  %645 = vperm.xlu0 %644, %v371
  %v646 = vpop.permute.xlu0 %645
  %649 = vset.pattern.permute.xlu0 0
  %650 = vperm.xlu0 %649, %v373
  %v651 = vpop.permute.xlu0 %650
  %654 = vset.pattern.permute.xlu0 0
  %655 = vperm.xlu0 %654, %v375
  %v656 = vpop.permute.xlu0 %655
  %659 = vset.pattern.permute.xlu0 0
  %660 = vperm.xlu0 %659, %v377
  %v661 = vpop.permute.xlu0 %660
  %664 = vset.pattern.permute.xlu0 0
  %665 = vperm.xlu0 %664, %v379
  %v666 = vpop.permute.xlu0 %665
  %669 = vset.pattern.permute.xlu0 0
  %670 = vperm.xlu0 %669, %v381
  %v671 = vpop.permute.xlu0 %670
  %674 = vset.pattern.permute.xlu0 0
  %675 = vperm.xlu0 %674, %v383
  %v676 = vpop.permute.xlu0 %675
  %679 = vset.pattern.permute.xlu0 0
  %680 = vperm.xlu0 %679, %v385
  %v681 = vpop.permute.xlu0 %680
  %684 = vset.pattern.permute.xlu0 0
  %685 = vperm.xlu0 %684, %v387
  %v686 = vpop.permute.xlu0 %685
  %689 = vset.pattern.permute.xlu0 0
  %690 = vperm.xlu0 %689, %v389
  %v691 = vpop.permute.xlu0 %690
  %694 = vset.pattern.permute.xlu0 0
  %695 = vperm.xlu0 %694, %v391
  %v696 = vpop.permute.xlu0 %695
  %699 = vset.pattern.permute.xlu0 0
  %700 = vperm.xlu0 %699, %v393
  %v701 = vpop.permute.xlu0 %700
  %704 = vset.pattern.permute.xlu0 0
  %705 = vperm.xlu0 %704, %v395
  %v706 = vpop.permute.xlu0 %705
  %709 = vset.pattern.permute.xlu0 0
  %710 = vperm.xlu0 %709, %v397
  %v711 = vpop.permute.xlu0 %710
  %714 = vset.pattern.permute.xlu0 0
  %715 = vperm.xlu0 %714, %v399
  %v716 = vpop.permute.xlu0 %715
  %719 = vset.pattern.permute.xlu0 0
  %720 = vperm.xlu0 %719, %v401
  %v721 = vpop.permute.xlu0 %720
  %v723 = vmul.f32 %v646, %v627
  %v724 = vmul.f32 %v651, %v628
  %v725 = vmul.f32 %v656, %v629
  %v726 = vmul.f32 %v661, %v630
  %v727 = vmul.f32 %v666, %v631
  %v728 = vmul.f32 %v671, %v632
  %v729 = vmul.f32 %v676, %v633
  %v730 = vmul.f32 %v681, %v634
  %v731 = vmul.f32 %v686, %v635
  %v732 = vmul.f32 %v691, %v636
  %v733 = vmul.f32 %v696, %v637
  %v734 = vmul.f32 %v701, %v638
  %v735 = vmul.f32 %v706, %v639
  %v736 = vmul.f32 %v711, %v640
  %v737 = vmul.f32 %v716, %v641
  %v738 = vmul.f32 %v721, %v642
  %v739 = vpack.c.bf16 %v501, %v499
  %v740 = vpack.c.bf16 %v505, %v503
  %v741 = vpack.c.bf16 %v509, %v507
  %v742 = vpack.c.bf16 %v513, %v511
  %v743 = vpack.c.bf16 %v517, %v515
  %v744 = vpack.c.bf16 %v521, %v519
  %v745 = vpack.c.bf16 %v525, %v523
  %v746 = vpack.c.bf16 %v529, %v527
  %v763 = vunpack.c.l.b16 %v91
  %v764 = vunpack.c.l.b16 %v92
  %v765 = vunpack.c.l.b16 %v93
  %v766 = vunpack.c.l.b16 %v94
  %v767 = vunpack.c.l.b16 %v95
  %v768 = vunpack.c.l.b16 %v96
  %v769 = vunpack.c.l.b16 %v97
  %v770 = vunpack.c.l.b16 %v98
  %v771 = vunpack.c.l.b16 %v99
  %v772 = vunpack.c.l.b16 %v100
  %v773 = vunpack.c.l.b16 %v101
  %v774 = vunpack.c.l.b16 %v102
  %v775 = vunpack.c.l.b16 %v103
  %v776 = vunpack.c.l.b16 %v104
  %v777 = vunpack.c.l.b16 %v105
  %v778 = vunpack.c.l.b16 %v106
  %v779 = vpack.c.b16 %v764, %v763
  %v780 = vpack.c.b16 %v766, %v765
  %v781 = vpack.c.b16 %v768, %v767
  %v782 = vpack.c.b16 %v770, %v769
  %v783 = vpack.c.b16 %v772, %v771
  %v784 = vpack.c.b16 %v774, %v773
  %v785 = vpack.c.b16 %v776, %v775
  %v786 = vpack.c.b16 %v778, %v777
  %795 = vmatprep.subr.bf16.mxu0 0
  %796 = vmatpush1.bf16.msra.mxu0 %v786
  %797 = vmatprep.subr.bf16.mxu0 0
  %798 = vmatpush1.bf16.msra.mxu0 %v785
  %799 = vmatprep.subr.bf16.mxu0 0
  %800 = vmatpush1.bf16.msra.mxu0 %v784
  %801 = vmatprep.subr.bf16.mxu0 0
  %802 = vmatpush1.bf16.msra.mxu0 %v783
  %803 = vmatprep.subr.bf16.mxu0 0
  %804 = vmatpush1.bf16.msra.mxu0 %v782
  %805 = vmatprep.subr.bf16.mxu0 0
  %806 = vmatpush1.bf16.msra.mxu0 %v781
  %807 = vmatprep.subr.bf16.mxu0 0
  %808 = vmatpush1.bf16.msra.mxu0 %v780
  %809 = vmatprep.subr.bf16.mxu0 0
  %810 = vmatpush1.bf16.msra.mxu0 %v779
  %811 = vmatprep.subr.bf16.mxu0 0
  %812 = vmatpush2.bf16.msra.mxu0 0
  %813 = vmatprep.subr.bf16.mxu0 0
  %814 = vmatpush2.bf16.msra.mxu0 0
  %815 = vmatprep.subr.bf16.mxu0 0
  %816 = vmatpush2.bf16.msra.mxu0 0
  %817 = vmatprep.subr.bf16.mxu0 0
  %818 = vmatpush2.bf16.msra.mxu0 0
  %819 = vmatprep.subr.bf16.mxu0 0
  %820 = vmatpush2.bf16.msra.mxu0 0
  %821 = vmatprep.subr.bf16.mxu0 0
  %822 = vmatpush2.bf16.msra.mxu0 0
  %823 = vmatprep.subr.bf16.mxu0 0
  %824 = vmatpush2.bf16.msra.mxu0 0
  %825 = vmatprep.subr.bf16.mxu0 0
  %826 = vmatpush2.bf16.msra.mxu0 0
  %827 = vmatprep.mubr.bf16.mxu0 0
  %828 = vmatmul.mubr.bf16.gmra.mxu0 %v739
  %v829 = vpop.f32.mrf.mxu0
  %v830 = vadd.f32 0.0, %v829
  %v831 = vpop.f32.mrf.mxu0
  %v832 = vpop.f32.mrf.mxu0
  %v833 = vadd.f32 0.0, %v832
  %v834 = vpop.f32.mrf.mxu0
  %835 = vmatprep.mubr.bf16.mxu0 0
  %836 = vmatmul.mubr.bf16.gmra.mxu0 %v740
  %v837 = vpop.f32.mrf.mxu0
  %v838 = vadd.f32 0.0, %v837
  %v839 = vpop.f32.mrf.mxu0
  %v840 = vpop.f32.mrf.mxu0
  %v841 = vadd.f32 0.0, %v840
  %v842 = vpop.f32.mrf.mxu0
  %843 = vmatprep.mubr.bf16.mxu0 0
  %844 = vmatmul.mubr.bf16.gmra.mxu0 %v741
  %v845 = vpop.f32.mrf.mxu0
  %v846 = vadd.f32 0.0, %v845
  %v847 = vpop.f32.mrf.mxu0
  %v848 = vpop.f32.mrf.mxu0
  %v849 = vadd.f32 0.0, %v848
  %v850 = vpop.f32.mrf.mxu0
  %851 = vmatprep.mubr.bf16.mxu0 0
  %852 = vmatmul.mubr.bf16.gmra.mxu0 %v742
  %v853 = vpop.f32.mrf.mxu0
  %v854 = vadd.f32 0.0, %v853
  %v855 = vpop.f32.mrf.mxu0
  %v856 = vpop.f32.mrf.mxu0
  %v857 = vadd.f32 0.0, %v856
  %v858 = vpop.f32.mrf.mxu0
  %859 = vmatprep.mubr.bf16.mxu0 0
  %860 = vmatmul.mubr.bf16.gmra.mxu0 %v743
  %v861 = vpop.f32.mrf.mxu0
  %v862 = vadd.f32 0.0, %v861
  %v863 = vpop.f32.mrf.mxu0
  %v864 = vpop.f32.mrf.mxu0
  %v865 = vadd.f32 0.0, %v864
  %v866 = vpop.f32.mrf.mxu0
  %867 = vmatprep.mubr.bf16.mxu0 0
  %868 = vmatmul.mubr.bf16.gmra.mxu0 %v744
  %v869 = vpop.f32.mrf.mxu0
  %v870 = vadd.f32 0.0, %v869
  %v871 = vpop.f32.mrf.mxu0
  %v872 = vpop.f32.mrf.mxu0
  %v873 = vadd.f32 0.0, %v872
  %v874 = vpop.f32.mrf.mxu0
  %875 = vmatprep.mubr.bf16.mxu0 0
  %876 = vmatmul.mubr.bf16.gmra.mxu0 %v745
  %v877 = vpop.f32.mrf.mxu0
  %v878 = vadd.f32 0.0, %v877
  %v879 = vpop.f32.mrf.mxu0
  %v880 = vpop.f32.mrf.mxu0
  %v881 = vadd.f32 0.0, %v880
  %v882 = vpop.f32.mrf.mxu0
  %883 = vmatprep.mubr.bf16.mxu0 0
  %884 = vmatmul.mubr.bf16.gmra.mxu0 %v746
  %v885 = vpop.f32.mrf.mxu0
  %v886 = vadd.f32 0.0, %v885
  %v887 = vpop.f32.mrf.mxu0
  %v888 = vpop.f32.mrf.mxu0
  %v889 = vadd.f32 0.0, %v888
  %v890 = vpop.f32.mrf.mxu0
  %891 = vdwg.mxu0
  %v892 = vadd.f32 %v723, %v830
  %v893 = vadd.f32 %v724, %v833
  %v894 = vadd.f32 %v725, %v838
  %v895 = vadd.f32 %v726, %v841
  %v896 = vadd.f32 %v727, %v846
  %v897 = vadd.f32 %v728, %v849
  %v898 = vadd.f32 %v729, %v854
  %v899 = vadd.f32 %v730, %v857
  %v900 = vadd.f32 %v731, %v862
  %v901 = vadd.f32 %v732, %v865
  %v902 = vadd.f32 %v733, %v870
  %v903 = vadd.f32 %v734, %v873
  %v904 = vadd.f32 %v735, %v878
  %v905 = vadd.f32 %v736, %v881
  %v906 = vadd.f32 %v737, %v886
  %v907 = vadd.f32 %v738, %v889
  %vm908 = vcmask 130048
  %909 = vst.msk [vmem:[#allocation4] sm:$0xff] %vm908, %v892
  %910 = vst.msk [vmem:[#allocation4 + $0x8] sm:$0xff] %vm908, %v893
  %911 = vst.msk [vmem:[#allocation4 + $0x10] sm:$0xff] %vm908, %v894
  %912 = vst.msk [vmem:[#allocation4 + $0x18] sm:$0xff] %vm908, %v895
  %913 = vst.msk [vmem:[#allocation4 + $0x20] sm:$0xff] %vm908, %v896
  %914 = vst.msk [vmem:[#allocation4 + $0x28] sm:$0xff] %vm908, %v897
  %915 = vst.msk [vmem:[#allocation4 + $0x30] sm:$0xff] %vm908, %v898
  %916 = vst.msk [vmem:[#allocation4 + $0x38] sm:$0xff] %vm908, %v899
  %917 = vst.msk [vmem:[#allocation4 + $0x40] sm:$0xff] %vm908, %v900
  %918 = vst.msk [vmem:[#allocation4 + $0x48] sm:$0xff] %vm908, %v901
  %919 = vst.msk [vmem:[#allocation4 + $0x50] sm:$0xff] %vm908, %v902
  %920 = vst.msk [vmem:[#allocation4 + $0x58] sm:$0xff] %vm908, %v903
  %921 = vst.msk [vmem:[#allocation4 + $0x60] sm:$0xff] %vm908, %v904
  %922 = vst.msk [vmem:[#allocation4 + $0x68] sm:$0xff] %vm908, %v905
  %923 = vst.msk [vmem:[#allocation4 + $0x70] sm:$0xff] %vm908, %v906
  %924 = vst.msk [vmem:[#allocation4 + $0x78] sm:$0xff] %vm908, %v907
  %925 = vst.msk [vmem:[#allocation2] sm:$0xff] %vm610, %v338
  %926 = vst.msk [vmem:[#allocation2 + $0x8] sm:$0xff] %vm610, %v339
  %927 = vst.msk [vmem:[#allocation2 + $0x10] sm:$0xff] %vm610, %v340
  %928 = vst.msk [vmem:[#allocation2 + $0x18] sm:$0xff] %vm610, %v341
  %929 = vst.msk [vmem:[#allocation2 + $0x20] sm:$0xff] %vm610, %v342
  %930 = vst.msk [vmem:[#allocation2 + $0x28] sm:$0xff] %vm610, %v343
  %931 = vst.msk [vmem:[#allocation2 + $0x30] sm:$0xff] %vm610, %v344
  %932 = vst.msk [vmem:[#allocation2 + $0x38] sm:$0xff] %vm610, %v345
  %933 = vst.msk [vmem:[#allocation2 + $0x40] sm:$0xff] %vm610, %v346
  %934 = vst.msk [vmem:[#allocation2 + $0x48] sm:$0xff] %vm610, %v347
  %935 = vst.msk [vmem:[#allocation2 + $0x50] sm:$0xff] %vm610, %v348
  %936 = vst.msk [vmem:[#allocation2 + $0x58] sm:$0xff] %vm610, %v349
  %937 = vst.msk [vmem:[#allocation2 + $0x60] sm:$0xff] %vm610, %v350
  %938 = vst.msk [vmem:[#allocation2 + $0x68] sm:$0xff] %vm610, %v351
  %939 = vst.msk [vmem:[#allocation2 + $0x70] sm:$0xff] %vm610, %v352
  %940 = vst.msk [vmem:[#allocation2 + $0x78] sm:$0xff] %vm610, %v353
  // Predicated region
  $region26: #{gat_encoder_forward.3} parent=0 // pred_check
    %p941 = pneg %p21
  $region27: #{gat_encoder_forward.3} parent=0 // pred_check_branch
    %943 = sbr.rel (%p941) target = $region29
  $region28: #{gat_encoder_forward.3} parent=0 // pred_region
    %v944 = vld [vmem:[#allocation3] sm:$0xff]
    %v945 = vld [vmem:[#allocation3 + $0x8] sm:$0xff]
    %v946 = vld [vmem:[#allocation3 + $0x10] sm:$0xff]
    %v947 = vld [vmem:[#allocation3 + $0x18] sm:$0xff]
    %v948 = vld [vmem:[#allocation3 + $0x20] sm:$0xff]
    %v949 = vld [vmem:[#allocation3 + $0x28] sm:$0xff]
    %v950 = vld [vmem:[#allocation3 + $0x30] sm:$0xff]
    %v951 = vld [vmem:[#allocation3 + $0x38] sm:$0xff]
    %v952 = vld [vmem:[#allocation3 + $0x40] sm:$0xff]
    %v953 = vld [vmem:[#allocation3 + $0x48] sm:$0xff]
    %v954 = vld [vmem:[#allocation3 + $0x50] sm:$0xff]
    %v955 = vld [vmem:[#allocation3 + $0x58] sm:$0xff]
    %v956 = vld [vmem:[#allocation3 + $0x60] sm:$0xff]
    %v957 = vld [vmem:[#allocation3 + $0x68] sm:$0xff]
    %v958 = vld [vmem:[#allocation3 + $0x70] sm:$0xff]
    %v959 = vld [vmem:[#allocation3 + $0x78] sm:$0xff]
    %v960 = vmax.f32 %v944, 1e-20
    %v961 = vmax.f32 %v945, 1e-20
    %v962 = vmax.f32 %v946, 1e-20
    %v963 = vmax.f32 %v947, 1e-20
    %v964 = vmax.f32 %v948, 1e-20
    %v965 = vmax.f32 %v949, 1e-20
    %v966 = vmax.f32 %v950, 1e-20
    %v967 = vmax.f32 %v951, 1e-20
    %v968 = vmax.f32 %v952, 1e-20
    %v969 = vmax.f32 %v953, 1e-20
    %v970 = vmax.f32 %v954, 1e-20
    %v971 = vmax.f32 %v955, 1e-20
    %v972 = vmax.f32 %v956, 1e-20
    %v973 = vmax.f32 %v957, 1e-20
    %v974 = vmax.f32 %v958, 1e-20
    %v975 = vmax.f32 %v959, 1e-20
    %v976 = vrcp.pop %v960
    %v977 = vrcp.pop %v961
    %v978 = vrcp.pop %v962
    %v979 = vrcp.pop %v963
    %v980 = vrcp.pop %v964
    %v981 = vrcp.pop %v965
    %v982 = vrcp.pop %v966
    %v983 = vrcp.pop %v967
    %v984 = vrcp.pop %v968
    %v985 = vrcp.pop %v969
    %v986 = vrcp.pop %v970
    %v987 = vrcp.pop %v971
    %v988 = vrcp.pop %v972
    %v989 = vrcp.pop %v973
    %v990 = vrcp.pop %v974
    %v991 = vrcp.pop %v975
    %v992 = vld [vmem:[#allocation4] sm:$0xff]
    %v993 = vld [vmem:[#allocation4 + $0x8] sm:$0xff]
    %v994 = vld [vmem:[#allocation4 + $0x10] sm:$0xff]
    %v995 = vld [vmem:[#allocation4 + $0x18] sm:$0xff]
    %v996 = vld [vmem:[#allocation4 + $0x20] sm:$0xff]
    %v997 = vld [vmem:[#allocation4 + $0x28] sm:$0xff]
    %v998 = vld [vmem:[#allocation4 + $0x30] sm:$0xff]
    %v999 = vld [vmem:[#allocation4 + $0x38] sm:$0xff]
    %v1000 = vld [vmem:[#allocation4 + $0x40] sm:$0xff]
    %v1001 = vld [vmem:[#allocation4 + $0x48] sm:$0xff]
    %v1002 = vld [vmem:[#allocation4 + $0x50] sm:$0xff]
    %v1003 = vld [vmem:[#allocation4 + $0x58] sm:$0xff]
    %v1004 = vld [vmem:[#allocation4 + $0x60] sm:$0xff]
    %v1005 = vld [vmem:[#allocation4 + $0x68] sm:$0xff]
    %v1006 = vld [vmem:[#allocation4 + $0x70] sm:$0xff]
    %v1007 = vld [vmem:[#allocation4 + $0x78] sm:$0xff]
    %1009 = vset.pattern.permute.xlu0 0
    %1010 = vperm.xlu0 %1009, %v976
    %v1011 = vpop.permute.xlu0 %1010
    %1014 = vset.pattern.permute.xlu0 0
    %1015 = vperm.xlu0 %1014, %v977
    %v1016 = vpop.permute.xlu0 %1015
    %1019 = vset.pattern.permute.xlu0 0
    %1020 = vperm.xlu0 %1019, %v978
    %v1021 = vpop.permute.xlu0 %1020
    %1024 = vset.pattern.permute.xlu0 0
    %1025 = vperm.xlu0 %1024, %v979
    %v1026 = vpop.permute.xlu0 %1025
    %1029 = vset.pattern.permute.xlu0 0
    %1030 = vperm.xlu0 %1029, %v980
    %v1031 = vpop.permute.xlu0 %1030
    %1034 = vset.pattern.permute.xlu0 0
    %1035 = vperm.xlu0 %1034, %v981
    %v1036 = vpop.permute.xlu0 %1035
    %1039 = vset.pattern.permute.xlu0 0
    %1040 = vperm.xlu0 %1039, %v982
    %v1041 = vpop.permute.xlu0 %1040
    %1044 = vset.pattern.permute.xlu0 0
    %1045 = vperm.xlu0 %1044, %v983
    %v1046 = vpop.permute.xlu0 %1045
    %1049 = vset.pattern.permute.xlu0 0
    %1050 = vperm.xlu0 %1049, %v984
    %v1051 = vpop.permute.xlu0 %1050
    %1054 = vset.pattern.permute.xlu0 0
    %1055 = vperm.xlu0 %1054, %v985
    %v1056 = vpop.permute.xlu0 %1055
    %1059 = vset.pattern.permute.xlu0 0
    %1060 = vperm.xlu0 %1059, %v986
    %v1061 = vpop.permute.xlu0 %1060
    %1064 = vset.pattern.permute.xlu0 0
    %1065 = vperm.xlu0 %1064, %v987
    %v1066 = vpop.permute.xlu0 %1065
    %1069 = vset.pattern.permute.xlu0 0
    %1070 = vperm.xlu0 %1069, %v988
    %v1071 = vpop.permute.xlu0 %1070
    %1074 = vset.pattern.permute.xlu0 0
    %1075 = vperm.xlu0 %1074, %v989
    %v1076 = vpop.permute.xlu0 %1075
    %1079 = vset.pattern.permute.xlu0 0
    %1080 = vperm.xlu0 %1079, %v990
    %v1081 = vpop.permute.xlu0 %1080
    %1084 = vset.pattern.permute.xlu0 0
    %1085 = vperm.xlu0 %1084, %v991
    %v1086 = vpop.permute.xlu0 %1085
    %v1088 = vmul.f32 %v992, %v1011
    %v1089 = vmul.f32 %v993, %v1016
    %v1090 = vmul.f32 %v994, %v1021
    %v1091 = vmul.f32 %v995, %v1026
    %v1092 = vmul.f32 %v996, %v1031
    %v1093 = vmul.f32 %v997, %v1036
    %v1094 = vmul.f32 %v998, %v1041
    %v1095 = vmul.f32 %v999, %v1046
    %v1096 = vmul.f32 %v1000, %v1051
    %v1097 = vmul.f32 %v1001, %v1056
    %v1098 = vmul.f32 %v1002, %v1061
    %v1099 = vmul.f32 %v1003, %v1066
    %v1100 = vmul.f32 %v1004, %v1071
    %v1101 = vmul.f32 %v1005, %v1076
    %v1102 = vmul.f32 %v1006, %v1081
    %v1103 = vmul.f32 %v1007, %v1086
    %v1104 = vld [vmem:[%s4] sm:$0x1]
    %v1106 = vlaneseq
    %v1107 = vshrl.u32 %v1106, 7
    %v1108 = vsub.s32 0, %v1107
    %v1109 = vrot.slane %v1104, %v1108
    %v1111 = vadd.f32 %v1088, %v1109
    %v1112 = vadd.f32 %v1089, %v1109
    %v1113 = vadd.f32 %v1090, %v1109
    %v1114 = vadd.f32 %v1091, %v1109
    %v1115 = vadd.f32 %v1092, %v1109
    %v1116 = vadd.f32 %v1093, %v1109
    %v1117 = vadd.f32 %v1094, %v1109
    %v1118 = vadd.f32 %v1095, %v1109
    %v1119 = vadd.f32 %v1096, %v1109
    %v1120 = vadd.f32 %v1097, %v1109
    %v1121 = vadd.f32 %v1098, %v1109
    %v1122 = vadd.f32 %v1099, %v1109
    %v1123 = vadd.f32 %v1100, %v1109
    %v1124 = vadd.f32 %v1101, %v1109
    %v1125 = vadd.f32 %v1102, %v1109
    %v1126 = vadd.f32 %v1103, %v1109
    %1127 = vst.msk [vmem:[%s5] sm:$0xff] %vm908, %v1111
    %1128 = vst.msk [vmem:[%s5 + $0x8] sm:$0xff] %vm908, %v1112
    %1129 = vst.msk [vmem:[%s5 + $0x10] sm:$0xff] %vm908, %v1113
    %1130 = vst.msk [vmem:[%s5 + $0x18] sm:$0xff] %vm908, %v1114
    %1131 = vst.msk [vmem:[%s5 + $0x20] sm:$0xff] %vm908, %v1115
    %1132 = vst.msk [vmem:[%s5 + $0x28] sm:$0xff] %vm908, %v1116
    %1133 = vst.msk [vmem:[%s5 + $0x30] sm:$0xff] %vm908, %v1117
    %1134 = vst.msk [vmem:[%s5 + $0x38] sm:$0xff] %vm908, %v1118
    %1135 = vst.msk [vmem:[%s5 + $0x40] sm:$0xff] %vm908, %v1119
    %1136 = vst.msk [vmem:[%s5 + $0x48] sm:$0xff] %vm908, %v1120
    %1137 = vst.msk [vmem:[%s5 + $0x50] sm:$0xff] %vm908, %v1121
    %1138 = vst.msk [vmem:[%s5 + $0x58] sm:$0xff] %vm908, %v1122
    %1139 = vst.msk [vmem:[%s5 + $0x60] sm:$0xff] %vm908, %v1123
    %1140 = vst.msk [vmem:[%s5 + $0x68] sm:$0xff] %vm908, %v1124
    %1141 = vst.msk [vmem:[%s5 + $0x70] sm:$0xff] %vm908, %v1125
    %1142 = vst.msk [vmem:[%s5 + $0x78] sm:$0xff] %vm908, %v1126
  $region29: #{gat_encoder_forward.3} parent=0 // pred_fallthru
    _
  // Predicated region
  $region30: #{gat_encoder_forward.3} parent=0 // pred_check
    _
  $region31: #{gat_encoder_forward.3} parent=0 // pred_check_branch
    %1144 = sbr.rel (0) target = $region33
  $region32: #{gat_encoder_forward.3} parent=0 // pred_region
    _
  $region33: #{gat_encoder_forward.3} parent=0 // pred_fallthru
    _
  // Predicated region
  $region34: #{gat_encoder_forward.3} parent=0 // pred_check
    _
  $region35: #{gat_encoder_forward.3} parent=0 // pred_check_branch
    %1146 = sbr.rel (0) target = $region37
  $region36: #{gat_encoder_forward.3} parent=0 // pred_region
    _
  $region37: #{gat_encoder_forward.3} parent=0 // pred_fallthru
    _

</llo_original>
